<compile_context>
chip_gen: v6e
topology: v6e:2x2x1
jax: 0.10.0
libtpu: 0.0.40
codegen_flags: <defaults>
</compile_context>

<pallas_src>
import jax
import jax.numpy as jnp
from jax.experimental import pallas as pl
from jax.experimental.pallas import tpu as pltpu


def _round_up(x, m):
    return (x + m - 1) // m * m


def _decomposer_kernel(x_ref,
                       w1, b1, w2, b2, w3, b3, w4, b4, w5, b5,
                       wh, bh,
                       out_ref):
    # x arrives as f32; cast to the matmul dtype (weights' dtype) in-kernel so
    # the wrapper never does a whole-batch pad/cast pass over HBM.
    h = x_ref[...].astype(w1.dtype)
    # Shared encoder: 5 x (Linear -> ReLU). MXU matmuls in bf16 with f32
    # accumulation; bias-add / ReLU in f32, cast back for the next layer.
    for w_ref, b_ref in ((w1, b1), (w2, b2), (w3, b3), (w4, b4), (w5, b5)):
        acc = jnp.dot(h, w_ref[...], preferred_element_type=jnp.float32) + b_ref[...]
        h = jnp.maximum(acc, 0.0).astype(w_ref.dtype)
    # Fused heads: one lane-dense (hidden, 128) matmul.  Columns [0:D] are the
    # common head, [D:2D] the specific head, the rest zero padding so the store
    # is a full 128-lane unmasked vst stream.
    out_ref[...] = (jnp.dot(h, wh[...], preferred_element_type=jnp.float32)
                    + bh[...]).astype(out_ref.dtype)


def prepare_params(params, matmul_dtype=jnp.bfloat16):
    """One-time preprocessing (do NOT call per forward): cast weights to the
    matmul dtype and build the fused, lane-padded head weight/bias."""
    input_dim = params["wc"].shape[1]
    n_heads = 2 * input_dim
    n_pad = _round_up(n_heads, 128)
    wh = jnp.pad(jnp.concatenate([params["wc"], params["ws"]], axis=1),
                 ((0, 0), (0, n_pad - n_heads))).astype(matmul_dtype)
    bh = jnp.pad(jnp.concatenate([params["bc"], params["bs"]], axis=1),
                 ((0, 0), (0, n_pad - n_heads))).astype(jnp.float32)
    args = []
    for i in range(1, 6):
        args.append(params[f"w{i}"].astype(matmul_dtype))
        args.append(params[f"b{i}"].astype(jnp.float32))
    args.append(wh)
    args.append(bh)
    return {"args": tuple(args), "input_dim": input_dim, "n_pad": n_pad}


def _choose_tile_b(B, cap=1024):
    # >= 2 grid steps so the "parallel" batch axis can shard across v7x's two
    # TensorCores; multiple of 16 so bf16 x/h tiles avoid sublane-masked access.
    half = -(-B // 2)                       # cdiv(B, 2)
    return min(cap, _round_up(max(half, 16), 16))


def decomposer_forward(x, prepared, *, tile_b=None, out_dtype=jnp.float32):
    """Forward pass of DecomposerNet.

    x: (B, input_dim) float32.
    prepared: output of prepare_params().
    Returns (common, specific), each (B, input_dim) float32.
    """
    B, input_dim = x.shape
    assert input_dim == prepared["input_dim"]
    n_pad = prepared["n_pad"]
    weight_args = prepared["args"]

    if tile_b is None:
        tile_b = _choose_tile_b(B)
    tile_b = max(16, _round_up(tile_b, 16))
    num_tiles = pl.cdiv(B, tile_b)          # ragged last block handled by Pallas

    x_spec = pl.BlockSpec((tile_b, input_dim), lambda i: (i, 0))
    out_spec = pl.BlockSpec((tile_b, n_pad), lambda i: (i, 0))

    def _run(single_buffer_weights):
        def const_spec(shape):
            nd = len(shape)
            kwargs = {}
            if single_buffer_weights:
                # Block index never changes -> a second VMEM copy is wasted.
                kwargs["pipeline_mode"] = pl.Buffered(1)
            return pl.BlockSpec(shape, lambda i, _nd=nd: (0,) * _nd, **kwargs)

        weight_specs = [const_spec(w.shape) for w in weight_args]
        return pl.pallas_call(
            _decomposer_kernel,
            out_shape=jax.ShapeDtypeStruct((B, n_pad), out_dtype),
            grid_spec=pltpu.PrefetchScalarGridSpec(
                num_scalar_prefetch=0,
                grid=(num_tiles,),
                in_specs=[x_spec] + weight_specs,
                out_specs=out_spec,
            ),
            compiler_params=pltpu.CompilerParams(
                dimension_semantics=("parallel",),   # shard batch tiles across TCs (v7x)
                vmem_limit_bytes=32 * 1024 * 1024,   # fits v5e/v6e/v7x with headroom
            ),
        )(x, *weight_args)

    try:
        out = _run(True)
    except Exception:
        # Fallback for jax versions without BlockSpec pipeline_mode support;
        # identical computation, just default double-buffered weight specs.
        out = _run(False)

    common = out[:, :input_dim].astype(jnp.float32)
    specific = out[:, input_dim:2 * input_dim].astype(jnp.float32)
    return common, specific


def init_params(key, input_dim, hidden_dim):
    """Deterministic init mimicking nn.Linear (uniform +/- 1/sqrt(fan_in)).
    Weights stored as (in_features, out_features); biases as (1, out)."""
    dims = [(input_dim, hidden_dim)] + [(hidden_dim, hidden_dim)] * 4
    params = {}
    keys = jax.random.split(key, 7)
    for idx, (fan_in, fan_out) in enumerate(dims, start=1):
        kw, kb = jax.random.split(keys[idx - 1])
        bound = 1.0 / jnp.sqrt(fan_in)
        params[f"w{idx}"] = jax.random.uniform(kw, (fan_in, fan_out),
                                               jnp.float32, -bound, bound)
        params[f"b{idx}"] = jax.random.uniform(kb, (1, fan_out),
                                               jnp.float32, -bound, bound)
    for name, k in (("c", keys[5]), ("s", keys[6])):
        kw, kb = jax.random.split(k)
        bound = 1.0 / jnp.sqrt(hidden_dim)
        params[f"w{name}"] = jax.random.uniform(kw, (hidden_dim, input_dim),
                                                jnp.float32, -bound, bound)
        params[f"b{name}"] = jax.random.uniform(kb, (1, input_dim),
                                                jnp.float32, -bound, bound)
    return params


def reference_forward_f32(x, p):
    h = x
    for i in range(1, 6):
        h = jnp.maximum(h @ p[f"w{i}"] + p[f"b{i}"], 0.0)
    return h @ p["wc"] + p["bc"], h @ p["ws"] + p["bs"]


def reference_forward_mixed(x, p, matmul_dtype=jnp.bfloat16):
    # Mimics the kernel's precision: bf16 matmul operands, f32 accumulate/ReLU.
    h = x.astype(matmul_dtype)
    for i in range(1, 6):
        acc = jnp.dot(h, p[f"w{i}"].astype(matmul_dtype),
                      preferred_element_type=jnp.float32) + p[f"b{i}"]
        h = jnp.maximum(acc, 0.0).astype(matmul_dtype)
    c = jnp.dot(h, p["wc"].astype(matmul_dtype),
                preferred_element_type=jnp.float32) + p["bc"]
    s = jnp.dot(h, p["ws"].astype(matmul_dtype),
                preferred_element_type=jnp.float32) + p["bs"]
    return c, s


if __name__ == "__main__":
    key = jax.random.PRNGKey(0)
    k_x, k_p = jax.random.split(key)

    # Ragged batch (300): tile_b = 160 -> grid of 2 steps, last block masked.
    batch, input_dim, hidden_dim = 300, 32, 256
    x = jax.random.normal(k_x, (batch, input_dim), jnp.float32)
    params = init_params(k_p, input_dim, hidden_dim)
    prepared = prepare_params(params)        # one-time bf16 cast + head fusion

    common, specific = decomposer_forward(x, prepared)
    jax.block_until_ready((common, specific))

    assert common.shape == (batch, input_dim)
    assert specific.shape == (batch, input_dim)

    # Tight check against a reference with identical mixed precision.
    ref_c, ref_s = reference_forward_mixed(x, params)
    assert jnp.allclose(common, ref_c, atol=2e-3, rtol=1e-2)
    assert jnp.allclose(specific, ref_s, atol=2e-3, rtol=1e-2)

    # Looser sanity check against the pure-f32 reference (bf16 rounding only).
    ref_c32, ref_s32 = reference_forward_f32(x, params)
    assert jnp.allclose(common, ref_c32, atol=5e-2, rtol=5e-2)
    assert jnp.allclose(specific, ref_s32, atol=5e-2, rtol=5e-2)

    print("KERNEL_OK")
</pallas_src>

<mosaic_0001>
module attributes {stable_mosaic.version = 11 : i64} {
  func.func @_decomposer_kernel(%arg0: i32, %arg1: memref<160x32xf32, #tpu.memory_space<vmem>>, %arg2: memref<32x256xbf16, #tpu.memory_space<vmem>>, %arg3: memref<1x256xf32, #tpu.memory_space<vmem>>, %arg4: memref<256x256xbf16, #tpu.memory_space<vmem>>, %arg5: memref<1x256xf32, #tpu.memory_space<vmem>>, %arg6: memref<256x256xbf16, #tpu.memory_space<vmem>>, %arg7: memref<1x256xf32, #tpu.memory_space<vmem>>, %arg8: memref<256x256xbf16, #tpu.memory_space<vmem>>, %arg9: memref<1x256xf32, #tpu.memory_space<vmem>>, %arg10: memref<256x256xbf16, #tpu.memory_space<vmem>>, %arg11: memref<1x256xf32, #tpu.memory_space<vmem>>, %arg12: memref<256x128xbf16, #tpu.memory_space<vmem>>, %arg13: memref<1x128xf32, #tpu.memory_space<vmem>>, %arg14: memref<160x128xf32, #tpu.memory_space<vmem>>) attributes {dimension_semantics = [#tpu.dimension_semantics<parallel>], iteration_bounds = array<i64: 2>, scalar_prefetch = 0 : i64, scratch_operands = 0 : i64, tpu.core_type = #tpu.core_type<tc>, window_params = [{transform_indices = @transform_0, window_bounds = array<i64: 160, 32>}, {pipeline_mode = #tpu.pipeline_mode<synchronous>, transform_indices = @transform_1, window_bounds = array<i64: 32, 256>}, {pipeline_mode = #tpu.pipeline_mode<synchronous>, transform_indices = @transform_2, window_bounds = array<i64: 1, 256>}, {pipeline_mode = #tpu.pipeline_mode<synchronous>, transform_indices = @transform_3, window_bounds = array<i64: 256, 256>}, {pipeline_mode = #tpu.pipeline_mode<synchronous>, transform_indices = @transform_4, window_bounds = array<i64: 1, 256>}, {pipeline_mode = #tpu.pipeline_mode<synchronous>, transform_indices = @transform_5, window_bounds = array<i64: 256, 256>}, {pipeline_mode = #tpu.pipeline_mode<synchronous>, transform_indices = @transform_6, window_bounds = array<i64: 1, 256>}, {pipeline_mode = #tpu.pipeline_mode<synchronous>, transform_indices = @transform_7, window_bounds = array<i64: 256, 256>}, {pipeline_mode = #tpu.pipeline_mode<synchronous>, transform_indices = @transform_8, window_bounds = array<i64: 1, 256>}, {pipeline_mode = #tpu.pipeline_mode<synchronous>, transform_indices = @transform_9, window_bounds = array<i64: 256, 256>}, {pipeline_mode = #tpu.pipeline_mode<synchronous>, transform_indices = @transform_10, window_bounds = array<i64: 1, 256>}, {pipeline_mode = #tpu.pipeline_mode<synchronous>, transform_indices = @transform_11, window_bounds = array<i64: 256, 128>}, {pipeline_mode = #tpu.pipeline_mode<synchronous>, transform_indices = @transform_12, window_bounds = array<i64: 1, 128>}, {transform_indices = @transform_13, window_bounds = array<i64: 160, 128>}]} {
    %c0 = arith.constant 0 : index
    %c0_0 = arith.constant 0 : index
    %0 = vector.load %arg1[%c0, %c0_0] : memref<160x32xf32, #tpu.memory_space<vmem>>, vector<160x32xf32>
    %1 = arith.truncf %0 : vector<160x32xf32> to vector<160x32xbf16>
    %c0_1 = arith.constant 0 : index
    %c0_2 = arith.constant 0 : index
    %2 = vector.load %arg2[%c0_1, %c0_2] : memref<32x256xbf16, #tpu.memory_space<vmem>>, vector<32x256xbf16>
    %cst = arith.constant dense<0.000000e+00> : vector<160x256xf32>
    %3 = tpu.matmul %1, %2, %cst {dimension_numbers = #tpu.dot_dimension_numbers<[1], [0], [0], [1], [0, 0, 1, 1], [], []>} : vector<160x32xbf16>, vector<32x256xbf16>, vector<160x256xf32> -> vector<160x256xf32>
    %c0_3 = arith.constant 0 : index
    %c0_4 = arith.constant 0 : index
    %4 = vector.load %arg3[%c0_3, %c0_4] : memref<1x256xf32, #tpu.memory_space<vmem>>, vector<1x256xf32>
    %5 = vector.broadcast %4 : vector<1x256xf32> to vector<160x256xf32>
    %6 = arith.addf %3, %5 : vector<160x256xf32>
    %cst_5 = arith.constant 0.000000e+00 : f32
    %7 = vector.broadcast %cst_5 : f32 to vector<160x256xf32>
    %8 = arith.maximumf %6, %7 : vector<160x256xf32>
    %9 = arith.truncf %8 : vector<160x256xf32> to vector<160x256xbf16>
    %c0_6 = arith.constant 0 : index
    %c0_7 = arith.constant 0 : index
    %10 = vector.load %arg4[%c0_6, %c0_7] : memref<256x256xbf16, #tpu.memory_space<vmem>>, vector<256x256xbf16>
    %cst_8 = arith.constant dense<0.000000e+00> : vector<160x256xf32>
    %11 = tpu.matmul %9, %10, %cst_8 {dimension_numbers = #tpu.dot_dimension_numbers<[1], [0], [0], [1], [0, 0, 1, 1], [], []>} : vector<160x256xbf16>, vector<256x256xbf16>, vector<160x256xf32> -> vector<160x256xf32>
    %c0_9 = arith.constant 0 : index
    %c0_10 = arith.constant 0 : index
    %12 = vector.load %arg5[%c0_9, %c0_10] : memref<1x256xf32, #tpu.memory_space<vmem>>, vector<1x256xf32>
    %13 = vector.broadcast %12 : vector<1x256xf32> to vector<160x256xf32>
    %14 = arith.addf %11, %13 : vector<160x256xf32>
    %cst_11 = arith.constant 0.000000e+00 : f32
    %15 = vector.broadcast %cst_11 : f32 to vector<160x256xf32>
    %16 = arith.maximumf %14, %15 : vector<160x256xf32>
    %17 = arith.truncf %16 : vector<160x256xf32> to vector<160x256xbf16>
    %c0_12 = arith.constant 0 : index
    %c0_13 = arith.constant 0 : index
    %18 = vector.load %arg6[%c0_12, %c0_13] : memref<256x256xbf16, #tpu.memory_space<vmem>>, vector<256x256xbf16>
    %cst_14 = arith.constant dense<0.000000e+00> : vector<160x256xf32>
    %19 = tpu.matmul %17, %18, %cst_14 {dimension_numbers = #tpu.dot_dimension_numbers<[1], [0], [0], [1], [0, 0, 1, 1], [], []>} : vector<160x256xbf16>, vector<256x256xbf16>, vector<160x256xf32> -> vector<160x256xf32>
    %c0_15 = arith.constant 0 : index
    %c0_16 = arith.constant 0 : index
    %20 = vector.load %arg7[%c0_15, %c0_16] : memref<1x256xf32, #tpu.memory_space<vmem>>, vector<1x256xf32>
    %21 = vector.broadcast %20 : vector<1x256xf32> to vector<160x256xf32>
    %22 = arith.addf %19, %21 : vector<160x256xf32>
    %cst_17 = arith.constant 0.000000e+00 : f32
    %23 = vector.broadcast %cst_17 : f32 to vector<160x256xf32>
    %24 = arith.maximumf %22, %23 : vector<160x256xf32>
    %25 = arith.truncf %24 : vector<160x256xf32> to vector<160x256xbf16>
    %c0_18 = arith.constant 0 : index
    %c0_19 = arith.constant 0 : index
    %26 = vector.load %arg8[%c0_18, %c0_19] : memref<256x256xbf16, #tpu.memory_space<vmem>>, vector<256x256xbf16>
    %cst_20 = arith.constant dense<0.000000e+00> : vector<160x256xf32>
    %27 = tpu.matmul %25, %26, %cst_20 {dimension_numbers = #tpu.dot_dimension_numbers<[1], [0], [0], [1], [0, 0, 1, 1], [], []>} : vector<160x256xbf16>, vector<256x256xbf16>, vector<160x256xf32> -> vector<160x256xf32>
    %c0_21 = arith.constant 0 : index
    %c0_22 = arith.constant 0 : index
    %28 = vector.load %arg9[%c0_21, %c0_22] : memref<1x256xf32, #tpu.memory_space<vmem>>, vector<1x256xf32>
    %29 = vector.broadcast %28 : vector<1x256xf32> to vector<160x256xf32>
    %30 = arith.addf %27, %29 : vector<160x256xf32>
    %cst_23 = arith.constant 0.000000e+00 : f32
    %31 = vector.broadcast %cst_23 : f32 to vector<160x256xf32>
    %32 = arith.maximumf %30, %31 : vector<160x256xf32>
    %33 = arith.truncf %32 : vector<160x256xf32> to vector<160x256xbf16>
    %c0_24 = arith.constant 0 : index
    %c0_25 = arith.constant 0 : index
    %34 = vector.load %arg10[%c0_24, %c0_25] : memref<256x256xbf16, #tpu.memory_space<vmem>>, vector<256x256xbf16>
    %cst_26 = arith.constant dense<0.000000e+00> : vector<160x256xf32>
    %35 = tpu.matmul %33, %34, %cst_26 {dimension_numbers = #tpu.dot_dimension_numbers<[1], [0], [0], [1], [0, 0, 1, 1], [], []>} : vector<160x256xbf16>, vector<256x256xbf16>, vector<160x256xf32> -> vector<160x256xf32>
    %c0_27 = arith.constant 0 : index
    %c0_28 = arith.constant 0 : index
    %36 = vector.load %arg11[%c0_27, %c0_28] : memref<1x256xf32, #tpu.memory_space<vmem>>, vector<1x256xf32>
    %37 = vector.broadcast %36 : vector<1x256xf32> to vector<160x256xf32>
    %38 = arith.addf %35, %37 : vector<160x256xf32>
    %cst_29 = arith.constant 0.000000e+00 : f32
    %39 = vector.broadcast %cst_29 : f32 to vector<160x256xf32>
    %40 = arith.maximumf %38, %39 : vector<160x256xf32>
    %41 = arith.truncf %40 : vector<160x256xf32> to vector<160x256xbf16>
    %c0_30 = arith.constant 0 : index
    %c0_31 = arith.constant 0 : index
    %42 = vector.load %arg12[%c0_30, %c0_31] : memref<256x128xbf16, #tpu.memory_space<vmem>>, vector<256x128xbf16>
    %cst_32 = arith.constant dense<0.000000e+00> : vector<160x128xf32>
    %43 = tpu.matmul %41, %42, %cst_32 {dimension_numbers = #tpu.dot_dimension_numbers<[1], [0], [0], [1], [0, 0, 1, 1], [], []>} : vector<160x256xbf16>, vector<256x128xbf16>, vector<160x128xf32> -> vector<160x128xf32>
    %c0_33 = arith.constant 0 : index
    %c0_34 = arith.constant 0 : index
    %44 = vector.load %arg13[%c0_33, %c0_34] : memref<1x128xf32, #tpu.memory_space<vmem>>, vector<1x128xf32>
    %45 = vector.broadcast %44 : vector<1x128xf32> to vector<160x128xf32>
    %46 = arith.addf %43, %45 : vector<160x128xf32>
    %c0_35 = arith.constant 0 : index
    %c0_36 = arith.constant 0 : index
    %47 = vector.load %arg14[%c0_35, %c0_36] : memref<160x128xf32, #tpu.memory_space<vmem>>, vector<160x128xf32>
    tpu.vector_store %arg14[%c0_35, %c0_36], %46 {strides = array<i32>} : memref<160x128xf32, #tpu.memory_space<vmem>>, vector<160x128xf32>,
    return
  }
  func.func @transform_0(%arg0: i32) -> (i32, i32) {
    %c0_i32 = arith.constant 0 : i32
    %c0_i32_0 = arith.constant 0 : i32
    return %arg0, %c0_i32 : i32, i32
  }
  func.func @transform_1(%arg0: i32) -> (i32, i32) {
    %c0_i32 = arith.constant 0 : i32
    %c0_i32_0 = arith.constant 0 : i32
    %c0_i32_1 = arith.constant 0 : i32
    return %c0_i32, %c0_i32_0 : i32, i32
  }
  func.func @transform_2(%arg0: i32) -> (i32, i32) {
    %c0_i32 = arith.constant 0 : i32
    %c0_i32_0 = arith.constant 0 : i32
    %c0_i32_1 = arith.constant 0 : i32
    return %c0_i32, %c0_i32_0 : i32, i32
  }
  func.func @transform_3(%arg0: i32) -> (i32, i32) {
    %c0_i32 = arith.constant 0 : i32
    %c0_i32_0 = arith.constant 0 : i32
    %c0_i32_1 = arith.constant 0 : i32
    return %c0_i32, %c0_i32_0 : i32, i32
  }
  func.func @transform_4(%arg0: i32) -> (i32, i32) {
    %c0_i32 = arith.constant 0 : i32
    %c0_i32_0 = arith.constant 0 : i32
    %c0_i32_1 = arith.constant 0 : i32
    return %c0_i32, %c0_i32_0 : i32, i32
  }
  func.func @transform_5(%arg0: i32) -> (i32, i32) {
    %c0_i32 = arith.constant 0 : i32
    %c0_i32_0 = arith.constant 0 : i32
    %c0_i32_1 = arith.constant 0 : i32
    return %c0_i32, %c0_i32_0 : i32, i32
  }
  func.func @transform_6(%arg0: i32) -> (i32, i32) {
    %c0_i32 = arith.constant 0 : i32
    %c0_i32_0 = arith.constant 0 : i32
    %c0_i32_1 = arith.constant 0 : i32
    return %c0_i32, %c0_i32_0 : i32, i32
  }
  func.func @transform_7(%arg0: i32) -> (i32, i32) {
    %c0_i32 = arith.constant 0 : i32
    %c0_i32_0 = arith.constant 0 : i32
    %c0_i32_1 = arith.constant 0 : i32
    return %c0_i32, %c0_i32_0 : i32, i32
  }
  func.func @transform_8(%arg0: i32) -> (i32, i32) {
    %c0_i32 = arith.constant 0 : i32
    %c0_i32_0 = arith.constant 0 : i32
    %c0_i32_1 = arith.constant 0 : i32
    return %c0_i32, %c0_i32_0 : i32, i32
  }
  func.func @transform_9(%arg0: i32) -> (i32, i32) {
    %c0_i32 = arith.constant 0 : i32
    %c0_i32_0 = arith.constant 0 : i32
    %c0_i32_1 = arith.constant 0 : i32
    return %c0_i32, %c0_i32_0 : i32, i32
  }
  func.func @transform_10(%arg0: i32) -> (i32, i32) {
    %c0_i32 = arith.constant 0 : i32
    %c0_i32_0 = arith.constant 0 : i32
    %c0_i32_1 = arith.constant 0 : i32
    return %c0_i32, %c0_i32_0 : i32, i32
  }
  func.func @transform_11(%arg0: i32) -> (i32, i32) {
    %c0_i32 = arith.constant 0 : i32
    %c0_i32_0 = arith.constant 0 : i32
    %c0_i32_1 = arith.constant 0 : i32
    return %c0_i32, %c0_i32_0 : i32, i32
  }
  func.func @transform_12(%arg0: i32) -> (i32, i32) {
    %c0_i32 = arith.constant 0 : i32
    %c0_i32_0 = arith.constant 0 : i32
    %c0_i32_1 = arith.constant 0 : i32
    return %c0_i32, %c0_i32_0 : i32, i32
  }
  func.func @transform_13(%arg0: i32) -> (i32, i32) {
    %c0_i32 = arith.constant 0 : i32
    %c0_i32_0 = arith.constant 0 : i32
    return %arg0, %c0_i32 : i32, i32
  }
}

module attributes {stable_mosaic.version = 11 : i64} {
  func.func @_decomposer_kernel(%arg0: i32, %arg1: memref<160x32xf32, #tpu.memory_space<vmem>>, %arg2: memref<32x256xbf16, #tpu.memory_space<vmem>>, %arg3: memref<1x256xf32, #tpu.memory_space<vmem>>, %arg4: memref<256x256xbf16, #tpu.memory_space<vmem>>, %arg5: memref<1x256xf32, #tpu.memory_space<vmem>>, %arg6: memref<256x256xbf16, #tpu.memory_space<vmem>>, %arg7: memref<1x256xf32, #tpu.memory_space<vmem>>, %arg8: memref<256x256xbf16, #tpu.memory_space<vmem>>, %arg9: memref<1x256xf32, #tpu.memory_space<vmem>>, %arg10: memref<256x256xbf16, #tpu.memory_space<vmem>>, %arg11: memref<1x256xf32, #tpu.memory_space<vmem>>, %arg12: memref<256x128xbf16, #tpu.memory_space<vmem>>, %arg13: memref<1x128xf32, #tpu.memory_space<vmem>>, %arg14: memref<160x128xf32, #tpu.memory_space<vmem>>) attributes {dimension_semantics = [#tpu.dimension_semantics<parallel>], iteration_bounds = array<i64: 2>, scalar_prefetch = 0 : i64, scratch_operands = 0 : i64, tpu.core_type = #tpu.core_type<tc>, window_params = [{transform_indices = @transform_0, window_bounds = array<i64: 160, 32>}, {pipeline_mode = #tpu.pipeline_mode<synchronous>, transform_indices = @transform_1, window_bounds = array<i64: 32, 256>}, {pipeline_mode = #tpu.pipeline_mode<synchronous>, transform_indices = @transform_2, window_bounds = array<i64: 1, 256>}, {pipeline_mode = #tpu.pipeline_mode<synchronous>, transform_indices = @transform_3, window_bounds = array<i64: 256, 256>}, {pipeline_mode = #tpu.pipeline_mode<synchronous>, transform_indices = @transform_4, window_bounds = array<i64: 1, 256>}, {pipeline_mode = #tpu.pipeline_mode<synchronous>, transform_indices = @transform_5, window_bounds = array<i64: 256, 256>}, {pipeline_mode = #tpu.pipeline_mode<synchronous>, transform_indices = @transform_6, window_bounds = array<i64: 1, 256>}, {pipeline_mode = #tpu.pipeline_mode<synchronous>, transform_indices = @transform_7, window_bounds = array<i64: 256, 256>}, {pipeline_mode = #tpu.pipeline_mode<synchronous>, transform_indices = @transform_8, window_bounds = array<i64: 1, 256>}, {pipeline_mode = #tpu.pipeline_mode<synchronous>, transform_indices = @transform_9, window_bounds = array<i64: 256, 256>}, {pipeline_mode = #tpu.pipeline_mode<synchronous>, transform_indices = @transform_10, window_bounds = array<i64: 1, 256>}, {pipeline_mode = #tpu.pipeline_mode<synchronous>, transform_indices = @transform_11, window_bounds = array<i64: 256, 128>}, {pipeline_mode = #tpu.pipeline_mode<synchronous>, transform_indices = @transform_12, window_bounds = array<i64: 1, 128>}, {transform_indices = @transform_13, window_bounds = array<i64: 160, 128>}]} {
    %c0 = arith.constant 0 : index
    %c0_0 = arith.constant 0 : index
    %0 = vector.load %arg1[%c0, %c0_0] : memref<160x32xf32, #tpu.memory_space<vmem>>, vector<160x32xf32>
    %1 = arith.truncf %0 : vector<160x32xf32> to vector<160x32xbf16>
    %c0_1 = arith.constant 0 : index
    %c0_2 = arith.constant 0 : index
    %2 = vector.load %arg2[%c0_1, %c0_2] : memref<32x256xbf16, #tpu.memory_space<vmem>>, vector<32x256xbf16>
    %cst = arith.constant dense<0.000000e+00> : vector<160x256xf32>
    %3 = tpu.matmul %1, %2, %cst {dimension_numbers = #tpu.dot_dimension_numbers<[1], [0], [0], [1], [0, 0, 1, 1], [], []>} : vector<160x32xbf16>, vector<32x256xbf16>, vector<160x256xf32> -> vector<160x256xf32>
    %c0_3 = arith.constant 0 : index
    %c0_4 = arith.constant 0 : index
    %4 = vector.load %arg3[%c0_3, %c0_4] : memref<1x256xf32, #tpu.memory_space<vmem>>, vector<1x256xf32>
    %5 = vector.broadcast %4 : vector<1x256xf32> to vector<160x256xf32>
    %6 = arith.addf %3, %5 : vector<160x256xf32>
    %cst_5 = arith.constant 0.000000e+00 : f32
    %7 = vector.broadcast %cst_5 : f32 to vector<160x256xf32>
    %8 = arith.maximumf %6, %7 : vector<160x256xf32>
    %9 = arith.truncf %8 : vector<160x256xf32> to vector<160x256xbf16>
    %c0_6 = arith.constant 0 : index
    %c0_7 = arith.constant 0 : index
    %10 = vector.load %arg4[%c0_6, %c0_7] : memref<256x256xbf16, #tpu.memory_space<vmem>>, vector<256x256xbf16>
    %cst_8 = arith.constant dense<0.000000e+00> : vector<160x256xf32>
    %11 = tpu.matmul %9, %10, %cst_8 {dimension_numbers = #tpu.dot_dimension_numbers<[1], [0], [0], [1], [0, 0, 1, 1], [], []>} : vector<160x256xbf16>, vector<256x256xbf16>, vector<160x256xf32> -> vector<160x256xf32>
    %c0_9 = arith.constant 0 : index
    %c0_10 = arith.constant 0 : index
    %12 = vector.load %arg5[%c0_9, %c0_10] : memref<1x256xf32, #tpu.memory_space<vmem>>, vector<1x256xf32>
    %13 = vector.broadcast %12 : vector<1x256xf32> to vector<160x256xf32>
    %14 = arith.addf %11, %13 : vector<160x256xf32>
    %cst_11 = arith.constant 0.000000e+00 : f32
    %15 = vector.broadcast %cst_11 : f32 to vector<160x256xf32>
    %16 = arith.maximumf %14, %15 : vector<160x256xf32>
    %17 = arith.truncf %16 : vector<160x256xf32> to vector<160x256xbf16>
    %c0_12 = arith.constant 0 : index
    %c0_13 = arith.constant 0 : index
    %18 = vector.load %arg6[%c0_12, %c0_13] : memref<256x256xbf16, #tpu.memory_space<vmem>>, vector<256x256xbf16>
    %cst_14 = arith.constant dense<0.000000e+00> : vector<160x256xf32>
    %19 = tpu.matmul %17, %18, %cst_14 {dimension_numbers = #tpu.dot_dimension_numbers<[1], [0], [0], [1], [0, 0, 1, 1], [], []>} : vector<160x256xbf16>, vector<256x256xbf16>, vector<160x256xf32> -> vector<160x256xf32>
    %c0_15 = arith.constant 0 : index
    %c0_16 = arith.constant 0 : index
    %20 = vector.load %arg7[%c0_15, %c0_16] : memref<1x256xf32, #tpu.memory_space<vmem>>, vector<1x256xf32>
    %21 = vector.broadcast %20 : vector<1x256xf32> to vector<160x256xf32>
    %22 = arith.addf %19, %21 : vector<160x256xf32>
    %cst_17 = arith.constant 0.000000e+00 : f32
    %23 = vector.broadcast %cst_17 : f32 to vector<160x256xf32>
    %24 = arith.maximumf %22, %23 : vector<160x256xf32>
    %25 = arith.truncf %24 : vector<160x256xf32> to vector<160x256xbf16>
    %c0_18 = arith.constant 0 : index
    %c0_19 = arith.constant 0 : index
    %26 = vector.load %arg8[%c0_18, %c0_19] : memref<256x256xbf16, #tpu.memory_space<vmem>>, vector<256x256xbf16>
    %cst_20 = arith.constant dense<0.000000e+00> : vector<160x256xf32>
    %27 = tpu.matmul %25, %26, %cst_20 {dimension_numbers = #tpu.dot_dimension_numbers<[1], [0], [0], [1], [0, 0, 1, 1], [], []>} : vector<160x256xbf16>, vector<256x256xbf16>, vector<160x256xf32> -> vector<160x256xf32>
    %c0_21 = arith.constant 0 : index
    %c0_22 = arith.constant 0 : index
    %28 = vector.load %arg9[%c0_21, %c0_22] : memref<1x256xf32, #tpu.memory_space<vmem>>, vector<1x256xf32>
    %29 = vector.broadcast %28 : vector<1x256xf32> to vector<160x256xf32>
    %30 = arith.addf %27, %29 : vector<160x256xf32>
    %cst_23 = arith.constant 0.000000e+00 : f32
    %31 = vector.broadcast %cst_23 : f32 to vector<160x256xf32>
    %32 = arith.maximumf %30, %31 : vector<160x256xf32>
    %33 = arith.truncf %32 : vector<160x256xf32> to vector<160x256xbf16>
    %c0_24 = arith.constant 0 : index
    %c0_25 = arith.constant 0 : index
    %34 = vector.load %arg10[%c0_24, %c0_25] : memref<256x256xbf16, #tpu.memory_space<vmem>>, vector<256x256xbf16>
    %cst_26 = arith.constant dense<0.000000e+00> : vector<160x256xf32>
    %35 = tpu.matmul %33, %34, %cst_26 {dimension_numbers = #tpu.dot_dimension_numbers<[1], [0], [0], [1], [0, 0, 1, 1], [], []>} : vector<160x256xbf16>, vector<256x256xbf16>, vector<160x256xf32> -> vector<160x256xf32>
    %c0_27 = arith.constant 0 : index
    %c0_28 = arith.constant 0 : index
    %36 = vector.load %arg11[%c0_27, %c0_28] : memref<1x256xf32, #tpu.memory_space<vmem>>, vector<1x256xf32>
    %37 = vector.broadcast %36 : vector<1x256xf32> to vector<160x256xf32>
    %38 = arith.addf %35, %37 : vector<160x256xf32>
    %cst_29 = arith.constant 0.000000e+00 : f32
    %39 = vector.broadcast %cst_29 : f32 to vector<160x256xf32>
    %40 = arith.maximumf %38, %39 : vector<160x256xf32>
    %41 = arith.truncf %40 : vector<160x256xf32> to vector<160x256xbf16>
    %c0_30 = arith.constant 0 : index
    %c0_31 = arith.constant 0 : index
    %42 = vector.load %arg12[%c0_30, %c0_31] : memref<256x128xbf16, #tpu.memory_space<vmem>>, vector<256x128xbf16>
    %cst_32 = arith.constant dense<0.000000e+00> : vector<160x128xf32>
    %43 = tpu.matmul %41, %42, %cst_32 {dimension_numbers = #tpu.dot_dimension_numbers<[1], [0], [0], [1], [0, 0, 1, 1], [], []>} : vector<160x256xbf16>, vector<256x128xbf16>, vector<160x128xf32> -> vector<160x128xf32>
    %c0_33 = arith.constant 0 : index
    %c0_34 = arith.constant 0 : index
    %44 = vector.load %arg13[%c0_33, %c0_34] : memref<1x128xf32, #tpu.memory_space<vmem>>, vector<1x128xf32>
    %45 = vector.broadcast %44 : vector<1x128xf32> to vector<160x128xf32>
    %46 = arith.addf %43, %45 : vector<160x128xf32>
    %c0_35 = arith.constant 0 : index
    %c0_36 = arith.constant 0 : index
    %47 = vector.load %arg14[%c0_35, %c0_36] : memref<160x128xf32, #tpu.memory_space<vmem>>, vector<160x128xf32>
    tpu.vector_store %arg14[%c0_35, %c0_36], %46 {strides = array<i32>} : memref<160x128xf32, #tpu.memory_space<vmem>>, vector<160x128xf32>,
    return
  }
  func.func @transform_0(%arg0: i32) -> (i32, i32) {
    %c0_i32 = arith.constant 0 : i32
    %c0_i32_0 = arith.constant 0 : i32
    return %arg0, %c0_i32 : i32, i32
  }
  func.func @transform_1(%arg0: i32) -> (i32, i32) {
    %c0_i32 = arith.constant 0 : i32
    %c0_i32_0 = arith.constant 0 : i32
    %c0_i32_1 = arith.constant 0 : i32
    return %c0_i32, %c0_i32_0 : i32, i32
  }
  func.func @transform_2(%arg0: i32) -> (i32, i32) {
    %c0_i32 = arith.constant 0 : i32
    %c0_i32_0 = arith.constant 0 : i32
    %c0_i32_1 = arith.constant 0 : i32
    return %c0_i32, %c0_i32_0 : i32, i32
  }
  func.func @transform_3(%arg0: i32) -> (i32, i32) {
    %c0_i32 = arith.constant 0 : i32
    %c0_i32_0 = arith.constant 0 : i32
    %c0_i32_1 = arith.constant 0 : i32
    return %c0_i32, %c0_i32_0 : i32, i32
  }
  func.func @transform_4(%arg0: i32) -> (i32, i32) {
    %c0_i32 = arith.constant 0 : i32
    %c0_i32_0 = arith.constant 0 : i32
    %c0_i32_1 = arith.constant 0 : i32
    return %c0_i32, %c0_i32_0 : i32, i32
  }
  func.func @transform_5(%arg0: i32) -> (i32, i32) {
    %c0_i32 = arith.constant 0 : i32
    %c0_i32_0 = arith.constant 0 : i32
    %c0_i32_1 = arith.constant 0 : i32
    return %c0_i32, %c0_i32_0 : i32, i32
  }
  func.func @transform_6(%arg0: i32) -> (i32, i32) {
    %c0_i32 = arith.constant 0 : i32
    %c0_i32_0 = arith.constant 0 : i32
    %c0_i32_1 = arith.constant 0 : i32
    return %c0_i32, %c0_i32_0 : i32, i32
  }
  func.func @transform_7(%arg0: i32) -> (i32, i32) {
    %c0_i32 = arith.constant 0 : i32
    %c0_i32_0 = arith.constant 0 : i32
    %c0_i32_1 = arith.constant 0 : i32
    return %c0_i32, %c0_i32_0 : i32, i32
  }
  func.func @transform_8(%arg0: i32) -> (i32, i32) {
    %c0_i32 = arith.constant 0 : i32
    %c0_i32_0 = arith.constant 0 : i32
    %c0_i32_1 = arith.constant 0 : i32
    return %c0_i32, %c0_i32_0 : i32, i32
  }
  func.func @transform_9(%arg0: i32) -> (i32, i32) {
    %c0_i32 = arith.constant 0 : i32
    %c0_i32_0 = arith.constant 0 : i32
    %c0_i32_1 = arith.constant 0 : i32
    return %c0_i32, %c0_i32_0 : i32, i32
  }
  func.func @transform_10(%arg0: i32) -> (i32, i32) {
    %c0_i32 = arith.constant 0 : i32
    %c0_i32_0 = arith.constant 0 : i32
    %c0_i32_1 = arith.constant 0 : i32
    return %c0_i32, %c0_i32_0 : i32, i32
  }
  func.func @transform_11(%arg0: i32) -> (i32, i32) {
    %c0_i32 = arith.constant 0 : i32
    %c0_i32_0 = arith.constant 0 : i32
    %c0_i32_1 = arith.constant 0 : i32
    return %c0_i32, %c0_i32_0 : i32, i32
  }
  func.func @transform_12(%arg0: i32) -> (i32, i32) {
    %c0_i32 = arith.constant 0 : i32
    %c0_i32_0 = arith.constant 0 : i32
    %c0_i32_1 = arith.constant 0 : i32
    return %c0_i32, %c0_i32_0 : i32, i32
  }
  func.func @transform_13(%arg0: i32) -> (i32, i32) {
    %c0_i32 = arith.constant 0 : i32
    %c0_i32_0 = arith.constant 0 : i32
    return %arg0, %c0_i32 : i32, i32
  }
}

</mosaic_0001>

<llo_original>
// kernel: tpu_custom_call.1
$region0: #{tpu_custom_call.1}
  #allocation0 [shape = 'u32[]', space=smem, size = 0x4, offset = 0x4, fixed_abs, tag = 'smem constant byte address 0x4 - core index']
  #allocation1 [shape = 'u32[144,128]{1,0:T(1,128)}', space=vmem, size = 0x12000, scoped, tag = 'internal scratch']
  %s0 = inlined_call_operand.vmem [shape: f32[300,32], index: 0, kind: input, shape index: {}]
  %s1 = inlined_call_operand.hbm [shape: bf16[32,256], index: 1, kind: input, shape index: {}]
  %s2 = inlined_call_operand.vmem [shape: f32[1,256], index: 2, kind: input, shape index: {}]
  %s3 = inlined_call_operand.vmem [shape: bf16[256,256], index: 3, kind: input, shape index: {}]
  %s4 = inlined_call_operand.vmem [shape: f32[1,256], index: 4, kind: input, shape index: {}]
  %s5 = inlined_call_operand.hbm [shape: bf16[256,256], index: 5, kind: input, shape index: {}]
  %s6 = inlined_call_operand.vmem [shape: f32[1,256], index: 6, kind: input, shape index: {}]
  %s7 = inlined_call_operand.hbm [shape: bf16[256,256], index: 7, kind: input, shape index: {}]
  %s8 = inlined_call_operand.vmem [shape: f32[1,256], index: 8, kind: input, shape index: {}]
  %s9 = inlined_call_operand.hbm [shape: bf16[256,256], index: 9, kind: input, shape index: {}]
  %s10 = inlined_call_operand.vmem [shape: f32[1,256], index: 10, kind: input, shape index: {}]
  %s11 = inlined_call_operand.vmem [shape: bf16[256,128], index: 11, kind: input, shape index: {}]
  %s12 = inlined_call_operand.vmem [shape: f32[1,128], index: 12, kind: input, shape index: {}]
  %s13 = inlined_call_operand.hbm [shape: f32[300,128], index: 13, kind: output, shape index: {}]
  %s14 = sld [smem:[#allocation0]]
  $region101: #{tpu_custom_call.1} parent=0
    _
  %s16 = ssub.s32 1, %s14
  %s17 = scalar_select 0, %s16, %s14
  $region1: #{tpu_custom_call.1} parent=0
    #allocation2 [shape = 'u8[16384]{0}', space=vmem, size = 0x4000, scoped, tag = 'input window, operand 1, single buffered']
    #allocation3 [shape = 's32[2]{0}', space=sflag, size = 0x8, scoped, tag = 'scoped memory for tpu_custom_call.1']
    #allocation4 [shape = 's32[2]{0}', space=sflag, size = 0x8, scoped, tag = 'scoped memory for tpu_custom_call.1']
    #allocation5 [shape = 'u8[131072]{0}', space=vmem, size = 0x20000, scoped, tag = 'input window, operand 5, single buffered']
    #allocation6 [shape = 's32[1]{0}', space=sflag, size = 0x4, scoped, tag = 'scoped memory for tpu_custom_call.1']
    #allocation7 [shape = 'u8[131072]{0}', space=vmem, size = 0x20000, scoped, tag = 'input window, operand 7, single buffered']
    #allocation8 [shape = 'u8[131072]{0}', space=vmem, size = 0x20000, scoped, tag = 'input window, operand 9, single buffered']
    #allocation9 [shape = 's32[1]{0}', space=sflag, size = 0x4, scoped, tag = 'scoped memory for tpu_custom_call.1']
    #allocation10 [shape = 'u8[163840]{0}', space=vmem, size = 0x28000, scoped, tag = 'output window, operand 0']
    %18 = vsyncpa [#allocation3], 0
    %19 = vsyncpa [#allocation6], 0
    %20 = vsyncpa [#allocation9], 0
    %21 = vsyncpa [#allocation4], 0
    %s22 = scalar_lea.sflag [#allocation4], 1
    %23 = vsyncpa %s22, 0
    loop: start=0, step=1, limit=4
    $region2: #{tpu_custom_call.1} parent=1 // loop_pre_header
      _
    $region3: #{tpu_custom_call.1} parent=1 // loop_header
      %s25 = sphi 0, %s29
      %p26 = scmp.ge.s32.totalorder %s25, 4
      %s35 = sphi 0, %s37
      %s38 = sphi 0, %s35
      %s39 = sphi 0, %s38
      %s55 = sphi 0, %s39
      %s59 = sphi 0, %s59
      %s61 = sphi 0, %s59
      %s62 = sphi 0, %s61
      %s76 = sphi 0, %s62
      %s80 = sphi 0, %s80
      %s82 = sphi 0, %s80
      %s83 = sphi 0, %s82
      %s97 = sphi 0, %s83
      %s101 = sphi 0, %s101
      %s103 = sphi 0, %s101
      %s104 = sphi 0, %s103
      %s118 = sphi 0, %s104
      %s122 = sphi 0, %s122
      %s124 = sphi 0, %s122
      %s125 = sphi 0, %s124
      %s139 = sphi 0, %s125
      %s143 = sphi 0, %s143
      %s145 = sphi 0, %s143
      %s146 = sphi 0, %s145
      %s160 = sphi 0, %s146
      %s164 = sphi 0, %s164
      %s166 = sphi 0, %s164
      %s167 = sphi 0, %s166
      %s181 = sphi 0, %s167
      %s185 = sphi 0, %s185
      %s187 = sphi 0, %s185
      %s188 = sphi 0, %s187
      %s202 = sphi 0, %s188
      %s206 = sphi 0, %s206
      %s208 = sphi 0, %s206
      %s209 = sphi 0, %s208
      %s223 = sphi 0, %s209
      %s227 = sphi 0, %s227
      %s229 = sphi 0, %s227
      %s230 = sphi 0, %s229
      %s244 = sphi 0, %s230
      %s248 = sphi 0, %s248
      %s250 = sphi 0, %s248
      %s251 = sphi 0, %s250
      %s265 = sphi 0, %s251
      %s269 = sphi 0, %s269
      %s271 = sphi 0, %s269
      %s272 = sphi 0, %s271
      %s286 = sphi 0, %s272
      %s290 = sphi 0, %s290
      %s292 = sphi 0, %s290
      %s293 = sphi 0, %s292
      %s307 = sphi 0, %s293
      %s313 = sphi 0, %s315
      %s316 = sphi 0, %s313
      %s317 = sphi 0, %s316
      %s333 = sphi 0, %s317
    $region4: #{tpu_custom_call.1} parent=1 // loop_header_branch
      %28 = sbr.rel (%p26) target = $region8
    $region5: #{tpu_custom_call.1} parent=1 // loop_body
      %s30 = ssub.s32 %s25, 1
      %s31 = ssub.s32 %s25, 2
      %s32 = sadd.s32 %s25, 1
      %s33 = ssub.s32 %s25, %s32
      %p34 = scmp.eq.s32.totalorder %s33, 0
      %s36 = sadd.s32 %s35, 1
      %s37 = scalar_select %p34, %s35, %s36
      %p40 = pneg %p34
      %p41 = scmp.eq.s32.totalorder %s25, 1
      %p42 = por %p40, %p41
      %p43 = scmp.ne.s32.totalorder %s35, %s38
      %p44 = scmp.eq.s32.totalorder %s25, 0
      %p45 = por %p43, %p44
      %p46 = scmp.ne.s32.totalorder %s35, %s38
      %p47 = scmp.eq.s32.totalorder %s30, 1
      %p48 = por %p46, %p47
      %p49 = scmp.ne.s32.totalorder %s38, %s39
      %p50 = scmp.eq.s32.totalorder %s30, 0
      %p51 = por %p49, %p50
      %p52 = scmp.ne.s32.totalorder %s38, %s39
      %p53 = scmp.eq.s32.totalorder %s31, 1
      %p54 = por %p52, %p53
      %p56 = scmp.ne.s32.totalorder %s39, %s55
      %p57 = scmp.eq.s32.totalorder %s31, 0
      %p58 = por %p56, %p57
      %s60 = sadd.s32 %s59, 1
      %p63 = scmp.eq.s32.totalorder %s25, 1
      %p64 = scmp.ne.s32.totalorder %s59, %s61
      %p65 = scmp.eq.s32.totalorder %s25, 0
      %p66 = por %p64, %p65
      %p67 = scmp.ne.s32.totalorder %s59, %s61
      %p68 = scmp.eq.s32.totalorder %s30, 1
      %p69 = por %p67, %p68
      %p70 = scmp.ne.s32.totalorder %s61, %s62
      %p71 = scmp.eq.s32.totalorder %s30, 0
      %p72 = por %p70, %p71
      %p73 = scmp.ne.s32.totalorder %s61, %s62
      %p74 = scmp.eq.s32.totalorder %s31, 1
      %p75 = por %p73, %p74
      %p77 = scmp.ne.s32.totalorder %s62, %s76
      %p78 = scmp.eq.s32.totalorder %s31, 0
      %p79 = por %p77, %p78
      %s81 = sadd.s32 %s80, 1
      %p84 = scmp.eq.s32.totalorder %s25, 1
      %p85 = scmp.ne.s32.totalorder %s80, %s82
      %p86 = scmp.eq.s32.totalorder %s25, 0
      %p87 = por %p85, %p86
      %p88 = scmp.ne.s32.totalorder %s80, %s82
      %p89 = scmp.eq.s32.totalorder %s30, 1
      %p90 = por %p88, %p89
      %p91 = scmp.ne.s32.totalorder %s82, %s83
      %p92 = scmp.eq.s32.totalorder %s30, 0
      %p93 = por %p91, %p92
      %p94 = scmp.ne.s32.totalorder %s82, %s83
      %p95 = scmp.eq.s32.totalorder %s31, 1
      %p96 = por %p94, %p95
      %p98 = scmp.ne.s32.totalorder %s83, %s97
      %p99 = scmp.eq.s32.totalorder %s31, 0
      %p100 = por %p98, %p99
      %s102 = sadd.s32 %s101, 1
      %p105 = scmp.eq.s32.totalorder %s25, 1
      %p106 = scmp.ne.s32.totalorder %s101, %s103
      %p107 = scmp.eq.s32.totalorder %s25, 0
      %p108 = por %p106, %p107
      %p109 = scmp.ne.s32.totalorder %s101, %s103
      %p110 = scmp.eq.s32.totalorder %s30, 1
      %p111 = por %p109, %p110
      %p112 = scmp.ne.s32.totalorder %s103, %s104
      %p113 = scmp.eq.s32.totalorder %s30, 0
      %p114 = por %p112, %p113
      %p115 = scmp.ne.s32.totalorder %s103, %s104
      %p116 = scmp.eq.s32.totalorder %s31, 1
      %p117 = por %p115, %p116
      %p119 = scmp.ne.s32.totalorder %s104, %s118
      %p120 = scmp.eq.s32.totalorder %s31, 0
      %p121 = por %p119, %p120
      %s123 = sadd.s32 %s122, 1
      %p126 = scmp.eq.s32.totalorder %s25, 1
      %p127 = scmp.ne.s32.totalorder %s122, %s124
      %p128 = scmp.eq.s32.totalorder %s25, 0
      %p129 = por %p127, %p128
      %p130 = scmp.ne.s32.totalorder %s122, %s124
      %p131 = scmp.eq.s32.totalorder %s30, 1
      %p132 = por %p130, %p131
      %p133 = scmp.ne.s32.totalorder %s124, %s125
      %p134 = scmp.eq.s32.totalorder %s30, 0
      %p135 = por %p133, %p134
      %p136 = scmp.ne.s32.totalorder %s124, %s125
      %p137 = scmp.eq.s32.totalorder %s31, 1
      %p138 = por %p136, %p137
      %p140 = scmp.ne.s32.totalorder %s125, %s139
      %p141 = scmp.eq.s32.totalorder %s31, 0
      %p142 = por %p140, %p141
      %s144 = sadd.s32 %s143, 1
      %p147 = scmp.eq.s32.totalorder %s25, 1
      %p148 = scmp.ne.s32.totalorder %s143, %s145
      %p149 = scmp.eq.s32.totalorder %s25, 0
      %p150 = por %p148, %p149
      %p151 = scmp.ne.s32.totalorder %s143, %s145
      %p152 = scmp.eq.s32.totalorder %s30, 1
      %p153 = por %p151, %p152
      %p154 = scmp.ne.s32.totalorder %s145, %s146
      %p155 = scmp.eq.s32.totalorder %s30, 0
      %p156 = por %p154, %p155
      %p157 = scmp.ne.s32.totalorder %s145, %s146
      %p158 = scmp.eq.s32.totalorder %s31, 1
      %p159 = por %p157, %p158
      %p161 = scmp.ne.s32.totalorder %s146, %s160
      %p162 = scmp.eq.s32.totalorder %s31, 0
      %p163 = por %p161, %p162
      %s165 = sadd.s32 %s164, 1
      %p168 = scmp.eq.s32.totalorder %s25, 1
      %p169 = scmp.ne.s32.totalorder %s164, %s166
      %p170 = scmp.eq.s32.totalorder %s25, 0
      %p171 = por %p169, %p170
      %p172 = scmp.ne.s32.totalorder %s164, %s166
      %p173 = scmp.eq.s32.totalorder %s30, 1
      %p174 = por %p172, %p173
      %p175 = scmp.ne.s32.totalorder %s166, %s167
      %p176 = scmp.eq.s32.totalorder %s30, 0
      %p177 = por %p175, %p176
      %p178 = scmp.ne.s32.totalorder %s166, %s167
      %p179 = scmp.eq.s32.totalorder %s31, 1
      %p180 = por %p178, %p179
      %p182 = scmp.ne.s32.totalorder %s167, %s181
      %p183 = scmp.eq.s32.totalorder %s31, 0
      %p184 = por %p182, %p183
      %s186 = sadd.s32 %s185, 1
      %p189 = scmp.eq.s32.totalorder %s25, 1
      %p190 = scmp.ne.s32.totalorder %s185, %s187
      %p191 = scmp.eq.s32.totalorder %s25, 0
      %p192 = por %p190, %p191
      %p193 = scmp.ne.s32.totalorder %s185, %s187
      %p194 = scmp.eq.s32.totalorder %s30, 1
      %p195 = por %p193, %p194
      %p196 = scmp.ne.s32.totalorder %s187, %s188
      %p197 = scmp.eq.s32.totalorder %s30, 0
      %p198 = por %p196, %p197
      %p199 = scmp.ne.s32.totalorder %s187, %s188
      %p200 = scmp.eq.s32.totalorder %s31, 1
      %p201 = por %p199, %p200
      %p203 = scmp.ne.s32.totalorder %s188, %s202
      %p204 = scmp.eq.s32.totalorder %s31, 0
      %p205 = por %p203, %p204
      %s207 = sadd.s32 %s206, 1
      %p210 = scmp.eq.s32.totalorder %s25, 1
      %p211 = scmp.ne.s32.totalorder %s206, %s208
      %p212 = scmp.eq.s32.totalorder %s25, 0
      %p213 = por %p211, %p212
      %p214 = scmp.ne.s32.totalorder %s206, %s208
      %p215 = scmp.eq.s32.totalorder %s30, 1
      %p216 = por %p214, %p215
      %p217 = scmp.ne.s32.totalorder %s208, %s209
      %p218 = scmp.eq.s32.totalorder %s30, 0
      %p219 = por %p217, %p218
      %p220 = scmp.ne.s32.totalorder %s208, %s209
      %p221 = scmp.eq.s32.totalorder %s31, 1
      %p222 = por %p220, %p221
      %p224 = scmp.ne.s32.totalorder %s209, %s223
      %p225 = scmp.eq.s32.totalorder %s31, 0
      %p226 = por %p224, %p225
      %s228 = sadd.s32 %s227, 1
      %p231 = scmp.eq.s32.totalorder %s25, 1
      %p232 = scmp.ne.s32.totalorder %s227, %s229
      %p233 = scmp.eq.s32.totalorder %s25, 0
      %p234 = por %p232, %p233
      %p235 = scmp.ne.s32.totalorder %s227, %s229
      %p236 = scmp.eq.s32.totalorder %s30, 1
      %p237 = por %p235, %p236
      %p238 = scmp.ne.s32.totalorder %s229, %s230
      %p239 = scmp.eq.s32.totalorder %s30, 0
      %p240 = por %p238, %p239
      %p241 = scmp.ne.s32.totalorder %s229, %s230
      %p242 = scmp.eq.s32.totalorder %s31, 1
      %p243 = por %p241, %p242
      %p245 = scmp.ne.s32.totalorder %s230, %s244
      %p246 = scmp.eq.s32.totalorder %s31, 0
      %p247 = por %p245, %p246
      %s249 = sadd.s32 %s248, 1
      %p252 = scmp.eq.s32.totalorder %s25, 1
      %p253 = scmp.ne.s32.totalorder %s248, %s250
      %p254 = scmp.eq.s32.totalorder %s25, 0
      %p255 = por %p253, %p254
      %p256 = scmp.ne.s32.totalorder %s248, %s250
      %p257 = scmp.eq.s32.totalorder %s30, 1
      %p258 = por %p256, %p257
      %p259 = scmp.ne.s32.totalorder %s250, %s251
      %p260 = scmp.eq.s32.totalorder %s30, 0
      %p261 = por %p259, %p260
      %p262 = scmp.ne.s32.totalorder %s250, %s251
      %p263 = scmp.eq.s32.totalorder %s31, 1
      %p264 = por %p262, %p263
      %p266 = scmp.ne.s32.totalorder %s251, %s265
      %p267 = scmp.eq.s32.totalorder %s31, 0
      %p268 = por %p266, %p267
      %s270 = sadd.s32 %s269, 1
      %p273 = scmp.eq.s32.totalorder %s25, 1
      %p274 = scmp.ne.s32.totalorder %s269, %s271
      %p275 = scmp.eq.s32.totalorder %s25, 0
      %p276 = por %p274, %p275
      %p277 = scmp.ne.s32.totalorder %s269, %s271
      %p278 = scmp.eq.s32.totalorder %s30, 1
      %p279 = por %p277, %p278
      %p280 = scmp.ne.s32.totalorder %s271, %s272
      %p281 = scmp.eq.s32.totalorder %s30, 0
      %p282 = por %p280, %p281
      %p283 = scmp.ne.s32.totalorder %s271, %s272
      %p284 = scmp.eq.s32.totalorder %s31, 1
      %p285 = por %p283, %p284
      %p287 = scmp.ne.s32.totalorder %s272, %s286
      %p288 = scmp.eq.s32.totalorder %s31, 0
      %p289 = por %p287, %p288
      %s291 = sadd.s32 %s290, 1
      %p294 = scmp.eq.s32.totalorder %s25, 1
      %p295 = scmp.ne.s32.totalorder %s290, %s292
      %p296 = scmp.eq.s32.totalorder %s25, 0
      %p297 = por %p295, %p296
      %p298 = scmp.ne.s32.totalorder %s290, %s292
      %p299 = scmp.eq.s32.totalorder %s30, 1
      %p300 = por %p298, %p299
      %p301 = scmp.ne.s32.totalorder %s292, %s293
      %p302 = scmp.eq.s32.totalorder %s30, 0
      %p303 = por %p301, %p302
      %p304 = scmp.ne.s32.totalorder %s292, %s293
      %p305 = scmp.eq.s32.totalorder %s31, 1
      %p306 = por %p304, %p305
      %p308 = scmp.ne.s32.totalorder %s293, %s307
      %p309 = scmp.eq.s32.totalorder %s31, 0
      %p310 = por %p308, %p309
      %s311 = ssub.s32 %s25, %s32
      %p312 = scmp.eq.s32.totalorder %s311, 0
      %s314 = sadd.s32 %s313, 1
      %s315 = scalar_select %p312, %s313, %s314
      %p318 = pneg %p312
      %p319 = scmp.eq.s32.totalorder %s25, 1
      %p320 = por %p318, %p319
      %p321 = scmp.ne.s32.totalorder %s313, %s316
      %p322 = scmp.eq.s32.totalorder %s25, 0
      %p323 = por %p321, %p322
      %p324 = scmp.ne.s32.totalorder %s313, %s316
      %p325 = scmp.eq.s32.totalorder %s30, 1
      %p326 = por %p324, %p325
      %p327 = scmp.ne.s32.totalorder %s316, %s317
      %p328 = scmp.eq.s32.totalorder %s30, 0
      %p329 = por %p327, %p328
      %p330 = scmp.ne.s32.totalorder %s316, %s317
      %p331 = scmp.eq.s32.totalorder %s31, 1
      %p332 = por %p330, %p331
      %p334 = scmp.ne.s32.totalorder %s317, %s333
      %p335 = scmp.eq.s32.totalorder %s31, 0
      %p336 = por %p334, %p335
      %p337 = scmp.le.s32.totalorder 1, %s25
      %p338 = scmp.lt.s32.totalorder %s25, 3
      %p339 = pnand %p337, %p338
      %p340 = pneg %p339
      // Predicated region
      $region9: #{tpu_custom_call.1} parent=5 // pred_check
        _
      $region10: #{tpu_custom_call.1} parent=5 // pred_check_branch
        %342 = sbr.rel (%p339) target = $region12
      $region11: #{tpu_custom_call.1} parent=5 // pred_region
        %s343 = ssub.s32 %s25, 1
        // Predicated region
        $region13: #{tpu_custom_call.1} parent=11 // pred_check
          %p344 = pneg %p72
        $region14: #{tpu_custom_call.1} parent=11 // pred_check_branch
          %346 = sbr.rel (%p344) target = $region16
        $region15: #{tpu_custom_call.1} parent=11 // pred_region
          %s348 = ssub.s32 512, 512
          %349 = vsyncadd [#allocation3], %s348
          %s350 = sshll.u32 [#allocation2], 4
          %s351 = int_to_ptr.vmem [resolvable:$true] %s350
          %356 = dma.hbm_to_vmem [thread:$0]  %s1, 512, %s351, [#allocation3], 128, 128, 8
        $region16: #{tpu_custom_call.1} parent=11 // pred_fallthru
          _
        // Predicated region
        $region17: #{tpu_custom_call.1} parent=11 // pred_check
          %p357 = pneg %p93
        $region18: #{tpu_custom_call.1} parent=11 // pred_check_branch
          %359 = sbr.rel (%p357) target = $region20
        $region19: #{tpu_custom_call.1} parent=11 // pred_region
          _
        $region20: #{tpu_custom_call.1} parent=11 // pred_fallthru
          _
        // Predicated region
        $region21: #{tpu_custom_call.1} parent=11 // pred_check
          %p360 = pneg %p114
        $region22: #{tpu_custom_call.1} parent=11 // pred_check_branch
          %362 = sbr.rel (%p360) target = $region24
        $region23: #{tpu_custom_call.1} parent=11 // pred_region
          _
        $region24: #{tpu_custom_call.1} parent=11 // pred_fallthru
          _
        // Predicated region
        $region25: #{tpu_custom_call.1} parent=11 // pred_check
          %p363 = pneg %p135
        $region26: #{tpu_custom_call.1} parent=11 // pred_check_branch
          %365 = sbr.rel (%p363) target = $region28
        $region27: #{tpu_custom_call.1} parent=11 // pred_region
          _
        $region28: #{tpu_custom_call.1} parent=11 // pred_fallthru
          _
        // Predicated region
        $region29: #{tpu_custom_call.1} parent=11 // pred_check
          %p366 = pneg %p156
        $region30: #{tpu_custom_call.1} parent=11 // pred_check_branch
          %368 = sbr.rel (%p366) target = $region32
        $region31: #{tpu_custom_call.1} parent=11 // pred_region
          %s370 = ssub.s32 4096, 4096
          %371 = vsyncadd [#allocation6], %s370
          %s372 = sshll.u32 [#allocation5], 4
          %s373 = int_to_ptr.vmem [resolvable:$true] %s372
          %378 = dma.hbm_to_vmem [thread:$0]  %s5, 4096, %s373, [#allocation6], 128, 128, 8
        $region32: #{tpu_custom_call.1} parent=11 // pred_fallthru
          _
        // Predicated region
        $region33: #{tpu_custom_call.1} parent=11 // pred_check
          %p379 = pneg %p177
        $region34: #{tpu_custom_call.1} parent=11 // pred_check_branch
          %381 = sbr.rel (%p379) target = $region36
        $region35: #{tpu_custom_call.1} parent=11 // pred_region
          _
        $region36: #{tpu_custom_call.1} parent=11 // pred_fallthru
          _
        // Predicated region
        $region37: #{tpu_custom_call.1} parent=11 // pred_check
          %p382 = pneg %p198
        $region38: #{tpu_custom_call.1} parent=11 // pred_check_branch
          %384 = sbr.rel (%p382) target = $region40
        $region39: #{tpu_custom_call.1} parent=11 // pred_region
          %s386 = ssub.s32 4096, 4096
          %387 = vsyncadd [#allocation6], %s386
          %s388 = sshll.u32 [#allocation7], 4
          %s389 = int_to_ptr.vmem [resolvable:$true] %s388
          %394 = dma.hbm_to_vmem [thread:$0]  %s7, 4096, %s389, [#allocation6], 128, 128, 8
        $region40: #{tpu_custom_call.1} parent=11 // pred_fallthru
          _
        // Predicated region
        $region41: #{tpu_custom_call.1} parent=11 // pred_check
          %p395 = pneg %p219
        $region42: #{tpu_custom_call.1} parent=11 // pred_check_branch
          %397 = sbr.rel (%p395) target = $region44
        $region43: #{tpu_custom_call.1} parent=11 // pred_region
          _
        $region44: #{tpu_custom_call.1} parent=11 // pred_fallthru
          _
        // Predicated region
        $region45: #{tpu_custom_call.1} parent=11 // pred_check
          %p398 = pneg %p240
        $region46: #{tpu_custom_call.1} parent=11 // pred_check_branch
          %400 = sbr.rel (%p398) target = $region48
        $region47: #{tpu_custom_call.1} parent=11 // pred_region
          %s402 = ssub.s32 4096, 4096
          %403 = vsyncadd [#allocation9], %s402
          %s404 = sshll.u32 [#allocation8], 4
          %s405 = int_to_ptr.vmem [resolvable:$true] %s404
          %410 = dma.hbm_to_vmem [thread:$0]  %s9, 4096, %s405, [#allocation9], 128, 128, 8
        $region48: #{tpu_custom_call.1} parent=11 // pred_fallthru
          _
        // Predicated region
        $region49: #{tpu_custom_call.1} parent=11 // pred_check
          %p411 = pneg %p261
        $region50: #{tpu_custom_call.1} parent=11 // pred_check_branch
          %413 = sbr.rel (%p411) target = $region52
        $region51: #{tpu_custom_call.1} parent=11 // pred_region
          _
        $region52: #{tpu_custom_call.1} parent=11 // pred_fallthru
          _
        // Predicated region
        $region53: #{tpu_custom_call.1} parent=11 // pred_check
          %p414 = pneg %p282
        $region54: #{tpu_custom_call.1} parent=11 // pred_check_branch
          %416 = sbr.rel (%p414) target = $region56
        $region55: #{tpu_custom_call.1} parent=11 // pred_region
          _
        $region56: #{tpu_custom_call.1} parent=11 // pred_fallthru
          _
        // Predicated region
        $region57: #{tpu_custom_call.1} parent=11 // pred_check
          %p417 = pneg %p303
        $region58: #{tpu_custom_call.1} parent=11 // pred_check_branch
          %419 = sbr.rel (%p417) target = $region60
        $region59: #{tpu_custom_call.1} parent=11 // pred_region
          _
        $region60: #{tpu_custom_call.1} parent=11 // pred_fallthru
          _
      $region12: #{tpu_custom_call.1} parent=5 // pred_fallthru
        _
      %p420 = scmp.lt.s32.totalorder %s25, 2
      // Predicated region
      $region61: #{tpu_custom_call.1} parent=5 // pred_check
        %p421 = pneg %p420
      $region62: #{tpu_custom_call.1} parent=5 // pred_check_branch
        %423 = sbr.rel (%p421) target = $region64
      $region63: #{tpu_custom_call.1} parent=5 // pred_region
        // Predicated region
        $region65: #{tpu_custom_call.1} parent=63 // pred_check
          %p424 = pneg %p45
        $region66: #{tpu_custom_call.1} parent=63 // pred_check_branch
          %426 = sbr.rel (%p424) target = $region68
        $region67: #{tpu_custom_call.1} parent=63 // pred_region
          %s427 = smul.u32 20, %s25
          %s428 = ssub.s32 38, %s427
          %p429 = scmp.lt.s32.totalorder %s428, 20
          %s430 = scalar_select %p429, %s428, 20
          %s431 = smul.u32 128, %s430
          %p432 = scmp.lt.s32.totalorder %s427, 37
          %s433 = scalar_select %p432, %s427, 37
          %s434 = smul.addr %s433, 8
          %s435 = scalar_lea.vmem %s0, %s434
          %s436 = smul.u32 20, %s25
          %s437 = ssub.s32 38, %s436
          %p438 = scmp.lt.s32.totalorder %s437, 20
          %s439 = scalar_select %p438, %s437, 20
          %s440 = smul.u32 128, %s439
        $region68: #{tpu_custom_call.1} parent=63 // pred_fallthru
          _
      $region64: #{tpu_custom_call.1} parent=5 // pred_fallthru
        _
      %p441 = scmp.le.s32.totalorder 1, %s25
      %p442 = scmp.lt.s32.totalorder %s25, 3
      %p443 = pnand %p441, %p442
      %p444 = pneg %p443
      // Predicated region
      $region69: #{tpu_custom_call.1} parent=5 // pred_check
        _
      $region70: #{tpu_custom_call.1} parent=5 // pred_check_branch
        %446 = sbr.rel (%p443) target = $region72
      $region71: #{tpu_custom_call.1} parent=5 // pred_region
        %s447 = ssub.s32 %s25, 1
        // Predicated region
        $region73: #{tpu_custom_call.1} parent=71 // pred_check
          %p448 = pneg %p72
        $region74: #{tpu_custom_call.1} parent=71 // pred_check_branch
          %450 = sbr.rel (%p448) target = $region76
        $region75: #{tpu_custom_call.1} parent=71 // pred_region
          %451 = dma.done [#allocation3], 512
        $region76: #{tpu_custom_call.1} parent=71 // pred_fallthru
          _
        // Predicated region
        $region77: #{tpu_custom_call.1} parent=71 // pred_check
          %p452 = pneg %p156
        $region78: #{tpu_custom_call.1} parent=71 // pred_check_branch
          %454 = sbr.rel (%p452) target = $region80
        $region79: #{tpu_custom_call.1} parent=71 // pred_region
          %455 = dma.done [#allocation6], 4096
        $region80: #{tpu_custom_call.1} parent=71 // pred_fallthru
          _
        // Predicated region
        $region81: #{tpu_custom_call.1} parent=71 // pred_check
          %p456 = pneg %p198
        $region82: #{tpu_custom_call.1} parent=71 // pred_check_branch
          %458 = sbr.rel (%p456) target = $region84
        $region83: #{tpu_custom_call.1} parent=71 // pred_region
          %459 = dma.done [#allocation6], 4096
        $region84: #{tpu_custom_call.1} parent=71 // pred_fallthru
          _
        // Predicated region
        $region85: #{tpu_custom_call.1} parent=71 // pred_check
          %p460 = pneg %p240
        $region86: #{tpu_custom_call.1} parent=71 // pred_check_branch
          %462 = sbr.rel (%p460) target = $region88
        $region87: #{tpu_custom_call.1} parent=71 // pred_region
          %463 = dma.done [#allocation9], 4096
        $region88: #{tpu_custom_call.1} parent=71 // pred_fallthru
          _
        %s464 = smul.u32 20, %s30
        %s465 = ssub.s32 38, %s464
        %p466 = scmp.lt.s32.totalorder %s465, 20
        %s467 = scalar_select %p466, %s465, 20
        %s468 = smul.u32 128, %s467
        %p469 = scmp.lt.s32.totalorder %s464, 37
        %s470 = scalar_select %p469, %s464, 37
        %s471 = smul.addr %s470, 8
        %s472 = scalar_lea.vmem %s0, %s471
        %p473 = pneg %p51
        %p474 = pneg %p48
        %p475 = pneg %p72
        %p476 = pneg %p69
        %p477 = pneg %p93
        %p478 = pneg %p90
        %p479 = pneg %p114
        %p480 = pneg %p111
        %p481 = pneg %p135
        %p482 = pneg %p132
        %p483 = pneg %p156
        %p484 = pneg %p153
        %p485 = pneg %p177
        %p486 = pneg %p174
        %p487 = pneg %p198
        %p488 = pneg %p195
        %p489 = pneg %p219
        %p490 = pneg %p216
        %p491 = pneg %p240
        %p492 = pneg %p237
        %p493 = pneg %p261
        %p494 = pneg %p258
        %p495 = pneg %p282
        %p496 = pneg %p279
        %p497 = pneg %p303
        %p498 = pneg %p300
        %p499 = pneg %p329
        %p500 = pneg %p326
        %s501 = sand.u32 %s316, 1
        %s502 = scalar_lea.sflag [#allocation4], %s501
        %s503 = sand.u32 %s316, 1
        %s504 = smul.addr %s503, 160
        %s505 = scalar_lea.vmem [#allocation10], %s504
        %s506 = smul.u32 20, %s30
        %s507 = ssub.s32 38, %s506
        %p508 = scmp.lt.s32.totalorder %s507, 20
        %s509 = scalar_select %p508, %s507, 20
        %s510 = smul.u32 128, %s509
        %p511 = scmp.lt.s32.totalorder %s506, 37
        %s512 = scalar_select %p511, %s506, 37
        %s513 = smul.addr %s512, 8
        %s514 = scalar_lea.vmem %s0, %s513
        %s515 = smul.u32 20, %s30
        %s516 = ssub.s32 38, %s515
        %p517 = scmp.lt.s32.totalorder %s516, 20
        %s518 = scalar_select %p517, %s516, 20
        %s519 = smul.u32 128, %s518
        %s520 = smul.u32 20, %s30
        %s521 = ssub.s32 38, %s520
        %p522 = scmp.lt.s32.totalorder %s521, 20
        %s523 = scalar_select %p522, %s521, 20
        %s524 = smul.u32 128, %s523
        %v526 = vld [vmem:[%s514] sm:$0xff]
        %v527 = vld [vmem:[%s514 + $0x8] sm:$0xff]
        %v528 = vld [vmem:[%s514 + $0x10] sm:$0xff]
        %v529 = vld [vmem:[%s514 + $0x18] sm:$0xff]
        %v530 = vld [vmem:[%s514 + $0x20] sm:$0xff]
        %v531 = vld [vmem:[%s514 + $0x28] sm:$0xff]
        %v532 = vld [vmem:[%s514 + $0x30] sm:$0xff]
        %v533 = vld [vmem:[%s514 + $0x38] sm:$0xff]
        %v534 = vld [vmem:[%s514 + $0x40] sm:$0xff]
        %v535 = vld [vmem:[%s514 + $0x48] sm:$0xff]
        %v536 = vld [vmem:[%s514 + $0x50] sm:$0xff]
        %v537 = vld [vmem:[%s514 + $0x58] sm:$0xff]
        %v538 = vld [vmem:[%s514 + $0x60] sm:$0xff]
        %v539 = vld [vmem:[%s514 + $0x68] sm:$0xff]
        %v540 = vld [vmem:[%s514 + $0x70] sm:$0xff]
        %v541 = vld [vmem:[%s514 + $0x78] sm:$0xff]
        %v542 = vld [vmem:[%s514 + $0x80] sm:$0xff]
        %v543 = vld [vmem:[%s514 + $0x88] sm:$0xff]
        %v544 = vld [vmem:[%s514 + $0x90] sm:$0xff]
        %v545 = vld [vmem:[%s514 + $0x98] sm:$0xff]
        %v546 = vpack.c.bf16 %v527, %v526
        %v547 = vpack.c.bf16 %v529, %v528
        %v548 = vpack.c.bf16 %v531, %v530
        %v549 = vpack.c.bf16 %v533, %v532
        %v550 = vpack.c.bf16 %v535, %v534
        %v551 = vpack.c.bf16 %v537, %v536
        %v552 = vpack.c.bf16 %v539, %v538
        %v553 = vpack.c.bf16 %v541, %v540
        %v554 = vpack.c.bf16 %v543, %v542
        %v555 = vpack.c.bf16 %v545, %v544
        %v556 = vld [vmem:[#allocation2] sm:$0xff]
        %v557 = vld [vmem:[#allocation2 + $0x8] sm:$0xff]
        %v558 = vld [vmem:[#allocation2 + $0x10] sm:$0xff]
        %v559 = vld [vmem:[#allocation2 + $0x18] sm:$0xff]
        %v560 = vld [vmem:[%s2] sm:$0x3]
        %v562 = vlaneseq
        %v563 = vshrl.u32 %v562, 7
        %v564 = vsub.s32 0, %v563
        %v565 = vrot.slane %v560, %v564
        %v566 = vlaneseq
        %v567 = vshrl.u32 %v566, 7
        %v568 = vsub.s32 1, %v567
        %v569 = vrot.slane %v560, %v568
        %v576 = vunpack.c.l.b16 %v556
        %v577 = vunpack.c.h.b16 %v556
        %v578 = vunpack.c.l.b16 %v557
        %v579 = vunpack.c.h.b16 %v557
        %v580 = vunpack.c.l.b16 %v558
        %v581 = vunpack.c.h.b16 %v558
        %v582 = vunpack.c.l.b16 %v559
        %v583 = vunpack.c.h.b16 %v559
        %v584 = vpack.c.b16 %v578, %v576
        %v585 = vpack.c.b16 %v579, %v577
        %v586 = vpack.c.b16 %v582, %v580
        %v587 = vpack.c.b16 %v583, %v581
        %vm592 = vcmask 261120
        %v594 = vsel %vm592, %v546, 0
        %v597 = vsel %vm592, %v547, 0
        %v600 = vsel %vm592, %v548, 0
        %v603 = vsel %vm592, %v549, 0
        %v606 = vsel %vm592, %v550, 0
        %v609 = vsel %vm592, %v551, 0
        %v612 = vsel %vm592, %v552, 0
        %v615 = vsel %vm592, %v553, 0
        %v618 = vsel %vm592, %v554, 0
        %v621 = vsel %vm592, %v555, 0
        %623 = vmatprep.subr.bf16.mxu0 0
        %624 = vmatpush1.bf16.msra.mxu0 0
        %625 = vmatprep.subr.bf16.mxu0 0
        %626 = vmatpush1.bf16.msra.mxu0 0
        %627 = vmatprep.subr.bf16.mxu0 0
        %628 = vmatpush1.bf16.msra.mxu0 0
        %629 = vmatprep.subr.bf16.mxu0 0
        %630 = vmatpush1.bf16.msra.mxu0 0
        %631 = vmatprep.subr.bf16.mxu0 0
        %632 = vmatpush1.bf16.msra.mxu0 0
        %633 = vmatprep.subr.bf16.mxu0 0
        %634 = vmatpush1.bf16.msra.mxu0 0
        %635 = vmatprep.subr.bf16.mxu0 %v587
        %636 = vmatpush1.bf16.msra.mxu0 %v586
        %637 = vmatprep.subr.bf16.mxu0 %v585
        %638 = vmatpush1.bf16.msra.mxu0 %v584
        %639 = vmatprep.subr.bf16.mxu0 0
        %640 = vmatpush2.bf16.msra.mxu0 0
        %641 = vmatprep.subr.bf16.mxu0 0
        %642 = vmatpush2.bf16.msra.mxu0 0
        %643 = vmatprep.subr.bf16.mxu0 0
        %644 = vmatpush2.bf16.msra.mxu0 0
        %645 = vmatprep.subr.bf16.mxu0 0
        %646 = vmatpush2.bf16.msra.mxu0 0
        %647 = vmatprep.subr.bf16.mxu0 0
        %648 = vmatpush2.bf16.msra.mxu0 0
        %649 = vmatprep.subr.bf16.mxu0 0
        %650 = vmatpush2.bf16.msra.mxu0 0
        %651 = vmatprep.subr.bf16.mxu0 0
        %652 = vmatpush2.bf16.msra.mxu0 0
        %653 = vmatprep.subr.bf16.mxu0 0
        %654 = vmatpush2.bf16.msra.mxu0 0
        %655 = vmatprep.mubr.bf16.mxu0 0
        %656 = vmatmul.mubr.bf16.gmra.mxu0 %v594
        %v657 = vpop.f32.mrf.mxu0
        %v658 = vadd.f32 %v565, %v657
        %v659 = vpop.f32.mrf.mxu0
        %v660 = vadd.f32 %v569, %v659
        %v661 = vpop.f32.mrf.mxu0
        %v662 = vadd.f32 %v565, %v661
        %v663 = vpop.f32.mrf.mxu0
        %v664 = vadd.f32 %v569, %v663
        %665 = vmatprep.mubr.bf16.mxu0 0
        %666 = vmatmul.mubr.bf16.gmra.mxu0 %v597
        %v667 = vpop.f32.mrf.mxu0
        %v668 = vadd.f32 %v565, %v667
        %v669 = vpop.f32.mrf.mxu0
        %v670 = vadd.f32 %v569, %v669
        %v671 = vpop.f32.mrf.mxu0
        %v672 = vadd.f32 %v565, %v671
        %v673 = vpop.f32.mrf.mxu0
        %v674 = vadd.f32 %v569, %v673
        %675 = vmatprep.mubr.bf16.mxu0 0
        %676 = vmatmul.mubr.bf16.gmra.mxu0 %v600
        %v677 = vpop.f32.mrf.mxu0
        %v678 = vadd.f32 %v565, %v677
        %v679 = vpop.f32.mrf.mxu0
        %v680 = vadd.f32 %v569, %v679
        %v681 = vpop.f32.mrf.mxu0
        %v682 = vadd.f32 %v565, %v681
        %v683 = vpop.f32.mrf.mxu0
        %v684 = vadd.f32 %v569, %v683
        %685 = vmatprep.mubr.bf16.mxu0 0
        %686 = vmatmul.mubr.bf16.gmra.mxu0 %v603
        %v687 = vpop.f32.mrf.mxu0
        %v688 = vadd.f32 %v565, %v687
        %v689 = vpop.f32.mrf.mxu0
        %v690 = vadd.f32 %v569, %v689
        %v691 = vpop.f32.mrf.mxu0
        %v692 = vadd.f32 %v565, %v691
        %v693 = vpop.f32.mrf.mxu0
        %v694 = vadd.f32 %v569, %v693
        %695 = vmatprep.mubr.bf16.mxu0 0
        %696 = vmatmul.mubr.bf16.gmra.mxu0 %v606
        %v697 = vpop.f32.mrf.mxu0
        %v698 = vadd.f32 %v565, %v697
        %v699 = vpop.f32.mrf.mxu0
        %v700 = vadd.f32 %v569, %v699
        %v701 = vpop.f32.mrf.mxu0
        %v702 = vadd.f32 %v565, %v701
        %v703 = vpop.f32.mrf.mxu0
        %v704 = vadd.f32 %v569, %v703
        %705 = vmatprep.mubr.bf16.mxu0 0
        %706 = vmatmul.mubr.bf16.gmra.mxu0 %v609
        %v707 = vpop.f32.mrf.mxu0
        %v708 = vadd.f32 %v565, %v707
        %v709 = vpop.f32.mrf.mxu0
        %v710 = vadd.f32 %v569, %v709
        %v711 = vpop.f32.mrf.mxu0
        %v712 = vadd.f32 %v565, %v711
        %v713 = vpop.f32.mrf.mxu0
        %v714 = vadd.f32 %v569, %v713
        %715 = vmatprep.mubr.bf16.mxu0 0
        %716 = vmatmul.mubr.bf16.gmra.mxu0 %v612
        %v717 = vpop.f32.mrf.mxu0
        %v718 = vadd.f32 %v565, %v717
        %v719 = vpop.f32.mrf.mxu0
        %v720 = vadd.f32 %v569, %v719
        %v721 = vpop.f32.mrf.mxu0
        %v722 = vadd.f32 %v565, %v721
        %v723 = vpop.f32.mrf.mxu0
        %v724 = vadd.f32 %v569, %v723
        %725 = vmatprep.mubr.bf16.mxu0 0
        %726 = vmatmul.mubr.bf16.gmra.mxu0 %v615
        %v727 = vpop.f32.mrf.mxu0
        %v728 = vadd.f32 %v565, %v727
        %v729 = vpop.f32.mrf.mxu0
        %v730 = vadd.f32 %v569, %v729
        %v731 = vpop.f32.mrf.mxu0
        %v732 = vadd.f32 %v565, %v731
        %v733 = vpop.f32.mrf.mxu0
        %v734 = vadd.f32 %v569, %v733
        %735 = vmatprep.mubr.bf16.mxu0 0
        %736 = vmatmul.mubr.bf16.gmra.mxu0 %v618
        %v737 = vpop.f32.mrf.mxu0
        %v738 = vadd.f32 %v565, %v737
        %v739 = vpop.f32.mrf.mxu0
        %v740 = vadd.f32 %v569, %v739
        %v741 = vpop.f32.mrf.mxu0
        %v742 = vadd.f32 %v565, %v741
        %v743 = vpop.f32.mrf.mxu0
        %v744 = vadd.f32 %v569, %v743
        %745 = vmatprep.mubr.bf16.mxu0 0
        %746 = vmatmul.mubr.bf16.gmra.mxu0 %v621
        %v747 = vpop.f32.mrf.mxu0
        %v748 = vadd.f32 %v565, %v747
        %v749 = vpop.f32.mrf.mxu0
        %v750 = vadd.f32 %v569, %v749
        %v751 = vpop.f32.mrf.mxu0
        %v752 = vadd.f32 %v565, %v751
        %v753 = vpop.f32.mrf.mxu0
        %v754 = vadd.f32 %v569, %v753
        %755 = vdwg.mxu0
        %v756 = vmax.f32 %v658, 0.0
        %v757 = vmax.f32 %v660, 0.0
        %v758 = vmax.f32 %v662, 0.0
        %v759 = vmax.f32 %v664, 0.0
        %v760 = vmax.f32 %v668, 0.0
        %v761 = vmax.f32 %v670, 0.0
        %v762 = vmax.f32 %v672, 0.0
        %v763 = vmax.f32 %v674, 0.0
        %v764 = vmax.f32 %v678, 0.0
        %v765 = vmax.f32 %v680, 0.0
        %v766 = vmax.f32 %v682, 0.0
        %v767 = vmax.f32 %v684, 0.0
        %v768 = vmax.f32 %v688, 0.0
        %v769 = vmax.f32 %v690, 0.0
        %v770 = vmax.f32 %v692, 0.0
        %v771 = vmax.f32 %v694, 0.0
        %v772 = vmax.f32 %v698, 0.0
        %v773 = vmax.f32 %v700, 0.0
        %v774 = vmax.f32 %v702, 0.0
        %v775 = vmax.f32 %v704, 0.0
        %v776 = vmax.f32 %v708, 0.0
        %v777 = vmax.f32 %v710, 0.0
        %v778 = vmax.f32 %v712, 0.0
        %v779 = vmax.f32 %v714, 0.0
        %v780 = vmax.f32 %v718, 0.0
        %v781 = vmax.f32 %v720, 0.0
        %v782 = vmax.f32 %v722, 0.0
        %v783 = vmax.f32 %v724, 0.0
        %v784 = vmax.f32 %v728, 0.0
        %v785 = vmax.f32 %v730, 0.0
        %v786 = vmax.f32 %v732, 0.0
        %v787 = vmax.f32 %v734, 0.0
        %v788 = vmax.f32 %v738, 0.0
        %v789 = vmax.f32 %v740, 0.0
        %v790 = vmax.f32 %v742, 0.0
        %v791 = vmax.f32 %v744, 0.0
        %v792 = vmax.f32 %v748, 0.0
        %v793 = vmax.f32 %v750, 0.0
        %v794 = vmax.f32 %v752, 0.0
        %v795 = vmax.f32 %v754, 0.0
        %v796 = vpack.c.bf16 %v758, %v756
        %v797 = vpack.c.bf16 %v759, %v757
        %v798 = vpack.c.bf16 %v762, %v760
        %v799 = vpack.c.bf16 %v763, %v761
        %v800 = vpack.c.bf16 %v766, %v764
        %v801 = vpack.c.bf16 %v767, %v765
        %v802 = vpack.c.bf16 %v770, %v768
        %v803 = vpack.c.bf16 %v771, %v769
        %v804 = vpack.c.bf16 %v774, %v772
        %v805 = vpack.c.bf16 %v775, %v773
        %v806 = vpack.c.bf16 %v778, %v776
        %v807 = vpack.c.bf16 %v779, %v777
        %v808 = vpack.c.bf16 %v782, %v780
        %v809 = vpack.c.bf16 %v783, %v781
        %v810 = vpack.c.bf16 %v786, %v784
        %v811 = vpack.c.bf16 %v787, %v785
        %v812 = vpack.c.bf16 %v790, %v788
        %v813 = vpack.c.bf16 %v791, %v789
        %v814 = vpack.c.bf16 %v794, %v792
        %v815 = vpack.c.bf16 %v795, %v793
        %v816 = vld [vmem:[%s3] sm:$0xff]
        %v817 = vld [vmem:[%s3 + $0x8] sm:$0xff]
        %v818 = vld [vmem:[%s3 + $0x10] sm:$0xff]
        %v819 = vld [vmem:[%s3 + $0x18] sm:$0xff]
        %v820 = vld [vmem:[%s3 + $0x20] sm:$0xff]
        %v821 = vld [vmem:[%s3 + $0x28] sm:$0xff]
        %v822 = vld [vmem:[%s3 + $0x30] sm:$0xff]
        %v823 = vld [vmem:[%s3 + $0x38] sm:$0xff]
        %v824 = vld [vmem:[%s3 + $0x40] sm:$0xff]
        %v825 = vld [vmem:[%s3 + $0x48] sm:$0xff]
        %v826 = vld [vmem:[%s3 + $0x50] sm:$0xff]
        %v827 = vld [vmem:[%s3 + $0x58] sm:$0xff]
        %v828 = vld [vmem:[%s3 + $0x60] sm:$0xff]
        %v829 = vld [vmem:[%s3 + $0x68] sm:$0xff]
        %v830 = vld [vmem:[%s3 + $0x70] sm:$0xff]
        %v831 = vld [vmem:[%s3 + $0x78] sm:$0xff]
        %v832 = vld [vmem:[%s3 + $0x80] sm:$0xff]
        %v833 = vld [vmem:[%s3 + $0x88] sm:$0xff]
        %v834 = vld [vmem:[%s3 + $0x90] sm:$0xff]
        %v835 = vld [vmem:[%s3 + $0x98] sm:$0xff]
        %v836 = vld [vmem:[%s3 + $0xa0] sm:$0xff]
        %v837 = vld [vmem:[%s3 + $0xa8] sm:$0xff]
        %v838 = vld [vmem:[%s3 + $0xb0] sm:$0xff]
        %v839 = vld [vmem:[%s3 + $0xb8] sm:$0xff]
        %v840 = vld [vmem:[%s3 + $0xc0] sm:$0xff]
        %v841 = vld [vmem:[%s3 + $0xc8] sm:$0xff]
        %v842 = vld [vmem:[%s3 + $0xd0] sm:$0xff]
        %v843 = vld [vmem:[%s3 + $0xd8] sm:$0xff]
        %v844 = vld [vmem:[%s3 + $0xe0] sm:$0xff]
        %v845 = vld [vmem:[%s3 + $0xe8] sm:$0xff]
        %v846 = vld [vmem:[%s3 + $0xf0] sm:$0xff]
        %v847 = vld [vmem:[%s3 + $0xf8] sm:$0xff]
        %v848 = vld [vmem:[%s4] sm:$0x3]
        %v850 = vlaneseq
        %v851 = vshrl.u32 %v850, 7
        %v852 = vsub.s32 0, %v851
        %v853 = vrot.slane %v848, %v852
        %v854 = vlaneseq
        %v855 = vshrl.u32 %v854, 7
        %v856 = vsub.s32 1, %v855
        %v857 = vrot.slane %v848, %v856
        %v892 = vunpack.c.l.b16 %v816
        %v893 = vunpack.c.h.b16 %v816
        %v894 = vunpack.c.l.b16 %v817
        %v895 = vunpack.c.h.b16 %v817
        %v896 = vunpack.c.l.b16 %v818
        %v897 = vunpack.c.h.b16 %v818
        %v898 = vunpack.c.l.b16 %v819
        %v899 = vunpack.c.h.b16 %v819
        %v900 = vunpack.c.l.b16 %v820
        %v901 = vunpack.c.h.b16 %v820
        %v902 = vunpack.c.l.b16 %v821
        %v903 = vunpack.c.h.b16 %v821
        %v904 = vunpack.c.l.b16 %v822
        %v905 = vunpack.c.h.b16 %v822
        %v906 = vunpack.c.l.b16 %v823
        %v907 = vunpack.c.h.b16 %v823
        %v908 = vunpack.c.l.b16 %v824
        %v909 = vunpack.c.h.b16 %v824
        %v910 = vunpack.c.l.b16 %v825
        %v911 = vunpack.c.h.b16 %v825
        %v912 = vunpack.c.l.b16 %v826
        %v913 = vunpack.c.h.b16 %v826
        %v914 = vunpack.c.l.b16 %v827
        %v915 = vunpack.c.h.b16 %v827
        %v916 = vunpack.c.l.b16 %v828
        %v917 = vunpack.c.h.b16 %v828
        %v918 = vunpack.c.l.b16 %v829
        %v919 = vunpack.c.h.b16 %v829
        %v920 = vunpack.c.l.b16 %v830
        %v921 = vunpack.c.h.b16 %v830
        %v922 = vunpack.c.l.b16 %v831
        %v923 = vunpack.c.h.b16 %v831
        %v924 = vunpack.c.l.b16 %v832
        %v925 = vunpack.c.h.b16 %v832
        %v926 = vunpack.c.l.b16 %v833
        %v927 = vunpack.c.h.b16 %v833
        %v928 = vunpack.c.l.b16 %v834
        %v929 = vunpack.c.h.b16 %v834
        %v930 = vunpack.c.l.b16 %v835
        %v931 = vunpack.c.h.b16 %v835
        %v932 = vunpack.c.l.b16 %v836
        %v933 = vunpack.c.h.b16 %v836
        %v934 = vunpack.c.l.b16 %v837
        %v935 = vunpack.c.h.b16 %v837
        %v936 = vunpack.c.l.b16 %v838
        %v937 = vunpack.c.h.b16 %v838
        %v938 = vunpack.c.l.b16 %v839
        %v939 = vunpack.c.h.b16 %v839
        %v940 = vunpack.c.l.b16 %v840
        %v941 = vunpack.c.h.b16 %v840
        %v942 = vunpack.c.l.b16 %v841
        %v943 = vunpack.c.h.b16 %v841
        %v944 = vunpack.c.l.b16 %v842
        %v945 = vunpack.c.h.b16 %v842
        %v946 = vunpack.c.l.b16 %v843
        %v947 = vunpack.c.h.b16 %v843
        %v948 = vunpack.c.l.b16 %v844
        %v949 = vunpack.c.h.b16 %v844
        %v950 = vunpack.c.l.b16 %v845
        %v951 = vunpack.c.h.b16 %v845
        %v952 = vunpack.c.l.b16 %v846
        %v953 = vunpack.c.h.b16 %v846
        %v954 = vunpack.c.l.b16 %v847
        %v955 = vunpack.c.h.b16 %v847
        %v956 = vpack.c.b16 %v894, %v892
        %v957 = vpack.c.b16 %v895, %v893
        %v958 = vpack.c.b16 %v898, %v896
        %v959 = vpack.c.b16 %v899, %v897
        %v960 = vpack.c.b16 %v902, %v900
        %v961 = vpack.c.b16 %v903, %v901
        %v962 = vpack.c.b16 %v906, %v904
        %v963 = vpack.c.b16 %v907, %v905
        %v964 = vpack.c.b16 %v910, %v908
        %v965 = vpack.c.b16 %v911, %v909
        %v966 = vpack.c.b16 %v914, %v912
        %v967 = vpack.c.b16 %v915, %v913
        %v968 = vpack.c.b16 %v918, %v916
        %v969 = vpack.c.b16 %v919, %v917
        %v970 = vpack.c.b16 %v922, %v920
        %v971 = vpack.c.b16 %v923, %v921
        %v972 = vpack.c.b16 %v926, %v924
        %v973 = vpack.c.b16 %v927, %v925
        %v974 = vpack.c.b16 %v930, %v928
        %v975 = vpack.c.b16 %v931, %v929
        %v976 = vpack.c.b16 %v934, %v932
        %v977 = vpack.c.b16 %v935, %v933
        %v978 = vpack.c.b16 %v938, %v936
        %v979 = vpack.c.b16 %v939, %v937
        %v980 = vpack.c.b16 %v942, %v940
        %v981 = vpack.c.b16 %v943, %v941
        %v982 = vpack.c.b16 %v946, %v944
        %v983 = vpack.c.b16 %v947, %v945
        %v984 = vpack.c.b16 %v950, %v948
        %v985 = vpack.c.b16 %v951, %v949
        %v986 = vpack.c.b16 %v954, %v952
        %v987 = vpack.c.b16 %v955, %v953
        %1020 = vmatprep.subr.bf16.mxu0 %v971
        %1021 = vmatpush1.bf16.msra.mxu0 %v970
        %1022 = vmatprep.subr.bf16.mxu0 %v969
        %1023 = vmatpush1.bf16.msra.mxu0 %v968
        %1024 = vmatprep.subr.bf16.mxu0 %v967
        %1025 = vmatpush1.bf16.msra.mxu0 %v966
        %1026 = vmatprep.subr.bf16.mxu0 %v965
        %1027 = vmatpush1.bf16.msra.mxu0 %v964
        %1028 = vmatprep.subr.bf16.mxu0 %v963
        %1029 = vmatpush1.bf16.msra.mxu0 %v962
        %1030 = vmatprep.subr.bf16.mxu0 %v961
        %1031 = vmatpush1.bf16.msra.mxu0 %v960
        %1032 = vmatprep.subr.bf16.mxu0 %v959
        %1033 = vmatpush1.bf16.msra.mxu0 %v958
        %1034 = vmatprep.subr.bf16.mxu0 %v957
        %1035 = vmatpush1.bf16.msra.mxu0 %v956
        %1036 = vmatprep.subr.bf16.mxu0 %v987
        %1037 = vmatpush2.bf16.msra.mxu0 %v986
        %1038 = vmatprep.subr.bf16.mxu0 %v985
        %1039 = vmatpush2.bf16.msra.mxu0 %v984
        %1040 = vmatprep.subr.bf16.mxu0 %v983
        %1041 = vmatpush2.bf16.msra.mxu0 %v982
        %1042 = vmatprep.subr.bf16.mxu0 %v981
        %1043 = vmatpush2.bf16.msra.mxu0 %v980
        %1044 = vmatprep.subr.bf16.mxu0 %v979
        %1045 = vmatpush2.bf16.msra.mxu0 %v978
        %1046 = vmatprep.subr.bf16.mxu0 %v977
        %1047 = vmatpush2.bf16.msra.mxu0 %v976
        %1048 = vmatprep.subr.bf16.mxu0 %v975
        %1049 = vmatpush2.bf16.msra.mxu0 %v974
        %1050 = vmatprep.subr.bf16.mxu0 %v973
        %1051 = vmatpush2.bf16.msra.mxu0 %v972
        %1052 = vmatprep.mubr.bf16.mxu0 %v797
        %1053 = vmatmul.mubr.bf16.gmra.mxu0 %v796
        %v1054 = vpop.f32.mrf.mxu0
        %v1055 = vadd.f32 %v853, %v1054
        %v1056 = vpop.f32.mrf.mxu0
        %v1057 = vadd.f32 %v857, %v1056
        %v1058 = vpop.f32.mrf.mxu0
        %v1059 = vadd.f32 %v853, %v1058
        %v1060 = vpop.f32.mrf.mxu0
        %v1061 = vadd.f32 %v857, %v1060
        %1062 = vmatprep.mubr.bf16.mxu0 %v799
        %1063 = vmatmul.mubr.bf16.gmra.mxu0 %v798
        %v1064 = vpop.f32.mrf.mxu0
        %v1065 = vadd.f32 %v853, %v1064
        %v1066 = vpop.f32.mrf.mxu0
        %v1067 = vadd.f32 %v857, %v1066
        %v1068 = vpop.f32.mrf.mxu0
        %v1069 = vadd.f32 %v853, %v1068
        %v1070 = vpop.f32.mrf.mxu0
        %v1071 = vadd.f32 %v857, %v1070
        %1072 = vmatprep.mubr.bf16.mxu0 %v801
        %1073 = vmatmul.mubr.bf16.gmra.mxu0 %v800
        %v1074 = vpop.f32.mrf.mxu0
        %v1075 = vadd.f32 %v853, %v1074
        %v1076 = vpop.f32.mrf.mxu0
        %v1077 = vadd.f32 %v857, %v1076
        %v1078 = vpop.f32.mrf.mxu0
        %v1079 = vadd.f32 %v853, %v1078
        %v1080 = vpop.f32.mrf.mxu0
        %v1081 = vadd.f32 %v857, %v1080
        %1082 = vmatprep.mubr.bf16.mxu0 %v803
        %1083 = vmatmul.mubr.bf16.gmra.mxu0 %v802
        %v1084 = vpop.f32.mrf.mxu0
        %v1085 = vadd.f32 %v853, %v1084
        %v1086 = vpop.f32.mrf.mxu0
        %v1087 = vadd.f32 %v857, %v1086
        %v1088 = vpop.f32.mrf.mxu0
        %v1089 = vadd.f32 %v853, %v1088
        %v1090 = vpop.f32.mrf.mxu0
        %v1091 = vadd.f32 %v857, %v1090
        %1092 = vmatprep.mubr.bf16.mxu0 %v805
        %1093 = vmatmul.mubr.bf16.gmra.mxu0 %v804
        %v1094 = vpop.f32.mrf.mxu0
        %v1095 = vadd.f32 %v853, %v1094
        %v1096 = vpop.f32.mrf.mxu0
        %v1097 = vadd.f32 %v857, %v1096
        %v1098 = vpop.f32.mrf.mxu0
        %v1099 = vadd.f32 %v853, %v1098
        %v1100 = vpop.f32.mrf.mxu0
        %v1101 = vadd.f32 %v857, %v1100
        %1102 = vmatprep.mubr.bf16.mxu0 %v807
        %1103 = vmatmul.mubr.bf16.gmra.mxu0 %v806
        %v1104 = vpop.f32.mrf.mxu0
        %v1105 = vadd.f32 %v853, %v1104
        %v1106 = vpop.f32.mrf.mxu0
        %v1107 = vadd.f32 %v857, %v1106
        %v1108 = vpop.f32.mrf.mxu0
        %v1109 = vadd.f32 %v853, %v1108
        %v1110 = vpop.f32.mrf.mxu0
        %v1111 = vadd.f32 %v857, %v1110
        %1112 = vmatprep.mubr.bf16.mxu0 %v809
        %1113 = vmatmul.mubr.bf16.gmra.mxu0 %v808
        %v1114 = vpop.f32.mrf.mxu0
        %v1115 = vadd.f32 %v853, %v1114
        %v1116 = vpop.f32.mrf.mxu0
        %v1117 = vadd.f32 %v857, %v1116
        %v1118 = vpop.f32.mrf.mxu0
        %v1119 = vadd.f32 %v853, %v1118
        %v1120 = vpop.f32.mrf.mxu0
        %v1121 = vadd.f32 %v857, %v1120
        %1122 = vmatprep.mubr.bf16.mxu0 %v811
        %1123 = vmatmul.mubr.bf16.gmra.mxu0 %v810
        %v1124 = vpop.f32.mrf.mxu0
        %v1125 = vadd.f32 %v853, %v1124
        %v1126 = vpop.f32.mrf.mxu0
        %v1127 = vadd.f32 %v857, %v1126
        %v1128 = vpop.f32.mrf.mxu0
        %v1129 = vadd.f32 %v853, %v1128
        %v1130 = vpop.f32.mrf.mxu0
        %v1131 = vadd.f32 %v857, %v1130
        %1132 = vmatprep.mubr.bf16.mxu0 %v813
        %1133 = vmatmul.mubr.bf16.gmra.mxu0 %v812
        %v1134 = vpop.f32.mrf.mxu0
        %v1135 = vadd.f32 %v853, %v1134
        %v1136 = vpop.f32.mrf.mxu0
        %v1137 = vadd.f32 %v857, %v1136
        %v1138 = vpop.f32.mrf.mxu0
        %v1139 = vadd.f32 %v853, %v1138
        %v1140 = vpop.f32.mrf.mxu0
        %v1141 = vadd.f32 %v857, %v1140
        %1142 = vmatprep.mubr.bf16.mxu0 %v815
        %1143 = vmatmul.mubr.bf16.gmra.mxu0 %v814
        %v1144 = vpop.f32.mrf.mxu0
        %v1145 = vadd.f32 %v853, %v1144
        %v1146 = vpop.f32.mrf.mxu0
        %v1147 = vadd.f32 %v857, %v1146
        %v1148 = vpop.f32.mrf.mxu0
        %v1149 = vadd.f32 %v853, %v1148
        %v1150 = vpop.f32.mrf.mxu0
        %v1151 = vadd.f32 %v857, %v1150
        %1152 = vdwg.mxu0
        %v1153 = vmax.f32 %v1055, 0.0
        %v1154 = vmax.f32 %v1057, 0.0
        %v1155 = vmax.f32 %v1059, 0.0
        %v1156 = vmax.f32 %v1061, 0.0
        %v1157 = vmax.f32 %v1065, 0.0
        %v1158 = vmax.f32 %v1067, 0.0
        %v1159 = vmax.f32 %v1069, 0.0
        %v1160 = vmax.f32 %v1071, 0.0
        %v1161 = vmax.f32 %v1075, 0.0
        %v1162 = vmax.f32 %v1077, 0.0
        %v1163 = vmax.f32 %v1079, 0.0
        %v1164 = vmax.f32 %v1081, 0.0
        %v1165 = vmax.f32 %v1085, 0.0
        %v1166 = vmax.f32 %v1087, 0.0
        %v1167 = vmax.f32 %v1089, 0.0
        %v1168 = vmax.f32 %v1091, 0.0
        %v1169 = vmax.f32 %v1095, 0.0
        %v1170 = vmax.f32 %v1097, 0.0
        %v1171 = vmax.f32 %v1099, 0.0
        %v1172 = vmax.f32 %v1101, 0.0
        %v1173 = vmax.f32 %v1105, 0.0
        %v1174 = vmax.f32 %v1107, 0.0
        %v1175 = vmax.f32 %v1109, 0.0
        %v1176 = vmax.f32 %v1111, 0.0
        %v1177 = vmax.f32 %v1115, 0.0
        %v1178 = vmax.f32 %v1117, 0.0
        %v1179 = vmax.f32 %v1119, 0.0
        %v1180 = vmax.f32 %v1121, 0.0
        %v1181 = vmax.f32 %v1125, 0.0
        %v1182 = vmax.f32 %v1127, 0.0
        %v1183 = vmax.f32 %v1129, 0.0
        %v1184 = vmax.f32 %v1131, 0.0
        %v1185 = vmax.f32 %v1135, 0.0
        %v1186 = vmax.f32 %v1137, 0.0
        %v1187 = vmax.f32 %v1139, 0.0
        %v1188 = vmax.f32 %v1141, 0.0
        %v1189 = vmax.f32 %v1145, 0.0
        %v1190 = vmax.f32 %v1147, 0.0
        %v1191 = vmax.f32 %v1149, 0.0
        %v1192 = vmax.f32 %v1151, 0.0
        %v1193 = vpack.c.bf16 %v1155, %v1153
        %v1194 = vpack.c.bf16 %v1156, %v1154
        %v1195 = vpack.c.bf16 %v1159, %v1157
        %v1196 = vpack.c.bf16 %v1160, %v1158
        %v1197 = vpack.c.bf16 %v1163, %v1161
        %v1198 = vpack.c.bf16 %v1164, %v1162
        %v1199 = vpack.c.bf16 %v1167, %v1165
        %v1200 = vpack.c.bf16 %v1168, %v1166
        %v1201 = vpack.c.bf16 %v1171, %v1169
        %v1202 = vpack.c.bf16 %v1172, %v1170
        %v1203 = vpack.c.bf16 %v1175, %v1173
        %v1204 = vpack.c.bf16 %v1176, %v1174
        %v1205 = vpack.c.bf16 %v1179, %v1177
        %v1206 = vpack.c.bf16 %v1180, %v1178
        %v1207 = vpack.c.bf16 %v1183, %v1181
        %v1208 = vpack.c.bf16 %v1184, %v1182
        %v1209 = vpack.c.bf16 %v1187, %v1185
        %v1210 = vpack.c.bf16 %v1188, %v1186
        %v1211 = vpack.c.bf16 %v1191, %v1189
        %v1212 = vpack.c.bf16 %v1192, %v1190
        %v1213 = vld [vmem:[#allocation5] sm:$0xff]
        %v1214 = vld [vmem:[#allocation5 + $0x8] sm:$0xff]
        %v1215 = vld [vmem:[#allocation5 + $0x10] sm:$0xff]
        %v1216 = vld [vmem:[#allocation5 + $0x18] sm:$0xff]
        %v1217 = vld [vmem:[#allocation5 + $0x20] sm:$0xff]
        %v1218 = vld [vmem:[#allocation5 + $0x28] sm:$0xff]
        %v1219 = vld [vmem:[#allocation5 + $0x30] sm:$0xff]
        %v1220 = vld [vmem:[#allocation5 + $0x38] sm:$0xff]
        %v1221 = vld [vmem:[#allocation5 + $0x40] sm:$0xff]
        %v1222 = vld [vmem:[#allocation5 + $0x48] sm:$0xff]
        %v1223 = vld [vmem:[#allocation5 + $0x50] sm:$0xff]
        %v1224 = vld [vmem:[#allocation5 + $0x58] sm:$0xff]
        %v1225 = vld [vmem:[#allocation5 + $0x60] sm:$0xff]
        %v1226 = vld [vmem:[#allocation5 + $0x68] sm:$0xff]
        %v1227 = vld [vmem:[#allocation5 + $0x70] sm:$0xff]
        %v1228 = vld [vmem:[#allocation5 + $0x78] sm:$0xff]
        %v1229 = vld [vmem:[#allocation5 + $0x80] sm:$0xff]
        %v1230 = vld [vmem:[#allocation5 + $0x88] sm:$0xff]
        %v1231 = vld [vmem:[#allocation5 + $0x90] sm:$0xff]
        %v1232 = vld [vmem:[#allocation5 + $0x98] sm:$0xff]
        %v1233 = vld [vmem:[#allocation5 + $0xa0] sm:$0xff]
        %v1234 = vld [vmem:[#allocation5 + $0xa8] sm:$0xff]
        %v1235 = vld [vmem:[#allocation5 + $0xb0] sm:$0xff]
        %v1236 = vld [vmem:[#allocation5 + $0xb8] sm:$0xff]
        %v1237 = vld [vmem:[#allocation5 + $0xc0] sm:$0xff]
        %v1238 = vld [vmem:[#allocation5 + $0xc8] sm:$0xff]
        %v1239 = vld [vmem:[#allocation5 + $0xd0] sm:$0xff]
        %v1240 = vld [vmem:[#allocation5 + $0xd8] sm:$0xff]
        %v1241 = vld [vmem:[#allocation5 + $0xe0] sm:$0xff]
        %v1242 = vld [vmem:[#allocation5 + $0xe8] sm:$0xff]
        %v1243 = vld [vmem:[#allocation5 + $0xf0] sm:$0xff]
        %v1244 = vld [vmem:[#allocation5 + $0xf8] sm:$0xff]
        %v1245 = vld [vmem:[%s6] sm:$0x3]
        %v1247 = vlaneseq
        %v1248 = vshrl.u32 %v1247, 7
        %v1249 = vsub.s32 0, %v1248
        %v1250 = vrot.slane %v1245, %v1249
        %v1251 = vlaneseq
        %v1252 = vshrl.u32 %v1251, 7
        %v1253 = vsub.s32 1, %v1252
        %v1254 = vrot.slane %v1245, %v1253
        %v1289 = vunpack.c.l.b16 %v1213
        %v1290 = vunpack.c.h.b16 %v1213
        %v1291 = vunpack.c.l.b16 %v1214
        %v1292 = vunpack.c.h.b16 %v1214
        %v1293 = vunpack.c.l.b16 %v1215
        %v1294 = vunpack.c.h.b16 %v1215
        %v1295 = vunpack.c.l.b16 %v1216
        %v1296 = vunpack.c.h.b16 %v1216
        %v1297 = vunpack.c.l.b16 %v1217
        %v1298 = vunpack.c.h.b16 %v1217
        %v1299 = vunpack.c.l.b16 %v1218
        %v1300 = vunpack.c.h.b16 %v1218
        %v1301 = vunpack.c.l.b16 %v1219
        %v1302 = vunpack.c.h.b16 %v1219
        %v1303 = vunpack.c.l.b16 %v1220
        %v1304 = vunpack.c.h.b16 %v1220
        %v1305 = vunpack.c.l.b16 %v1221
        %v1306 = vunpack.c.h.b16 %v1221
        %v1307 = vunpack.c.l.b16 %v1222
        %v1308 = vunpack.c.h.b16 %v1222
        %v1309 = vunpack.c.l.b16 %v1223
        %v1310 = vunpack.c.h.b16 %v1223
        %v1311 = vunpack.c.l.b16 %v1224
        %v1312 = vunpack.c.h.b16 %v1224
        %v1313 = vunpack.c.l.b16 %v1225
        %v1314 = vunpack.c.h.b16 %v1225
        %v1315 = vunpack.c.l.b16 %v1226
        %v1316 = vunpack.c.h.b16 %v1226
        %v1317 = vunpack.c.l.b16 %v1227
        %v1318 = vunpack.c.h.b16 %v1227
        %v1319 = vunpack.c.l.b16 %v1228
        %v1320 = vunpack.c.h.b16 %v1228
        %v1321 = vunpack.c.l.b16 %v1229
        %v1322 = vunpack.c.h.b16 %v1229
        %v1323 = vunpack.c.l.b16 %v1230
        %v1324 = vunpack.c.h.b16 %v1230
        %v1325 = vunpack.c.l.b16 %v1231
        %v1326 = vunpack.c.h.b16 %v1231
        %v1327 = vunpack.c.l.b16 %v1232
        %v1328 = vunpack.c.h.b16 %v1232
        %v1329 = vunpack.c.l.b16 %v1233
        %v1330 = vunpack.c.h.b16 %v1233
        %v1331 = vunpack.c.l.b16 %v1234
        %v1332 = vunpack.c.h.b16 %v1234
        %v1333 = vunpack.c.l.b16 %v1235
        %v1334 = vunpack.c.h.b16 %v1235
        %v1335 = vunpack.c.l.b16 %v1236
        %v1336 = vunpack.c.h.b16 %v1236
        %v1337 = vunpack.c.l.b16 %v1237
        %v1338 = vunpack.c.h.b16 %v1237
        %v1339 = vunpack.c.l.b16 %v1238
        %v1340 = vunpack.c.h.b16 %v1238
        %v1341 = vunpack.c.l.b16 %v1239
        %v1342 = vunpack.c.h.b16 %v1239
        %v1343 = vunpack.c.l.b16 %v1240
        %v1344 = vunpack.c.h.b16 %v1240
        %v1345 = vunpack.c.l.b16 %v1241
        %v1346 = vunpack.c.h.b16 %v1241
        %v1347 = vunpack.c.l.b16 %v1242
        %v1348 = vunpack.c.h.b16 %v1242
        %v1349 = vunpack.c.l.b16 %v1243
        %v1350 = vunpack.c.h.b16 %v1243
        %v1351 = vunpack.c.l.b16 %v1244
        %v1352 = vunpack.c.h.b16 %v1244
        %v1353 = vpack.c.b16 %v1291, %v1289
        %v1354 = vpack.c.b16 %v1292, %v1290
        %v1355 = vpack.c.b16 %v1295, %v1293
        %v1356 = vpack.c.b16 %v1296, %v1294
        %v1357 = vpack.c.b16 %v1299, %v1297
        %v1358 = vpack.c.b16 %v1300, %v1298
        %v1359 = vpack.c.b16 %v1303, %v1301
        %v1360 = vpack.c.b16 %v1304, %v1302
        %v1361 = vpack.c.b16 %v1307, %v1305
        %v1362 = vpack.c.b16 %v1308, %v1306
        %v1363 = vpack.c.b16 %v1311, %v1309
        %v1364 = vpack.c.b16 %v1312, %v1310
        %v1365 = vpack.c.b16 %v1315, %v1313
        %v1366 = vpack.c.b16 %v1316, %v1314
        %v1367 = vpack.c.b16 %v1319, %v1317
        %v1368 = vpack.c.b16 %v1320, %v1318
        %v1369 = vpack.c.b16 %v1323, %v1321
        %v1370 = vpack.c.b16 %v1324, %v1322
        %v1371 = vpack.c.b16 %v1327, %v1325
        %v1372 = vpack.c.b16 %v1328, %v1326
        %v1373 = vpack.c.b16 %v1331, %v1329
        %v1374 = vpack.c.b16 %v1332, %v1330
        %v1375 = vpack.c.b16 %v1335, %v1333
        %v1376 = vpack.c.b16 %v1336, %v1334
        %v1377 = vpack.c.b16 %v1339, %v1337
        %v1378 = vpack.c.b16 %v1340, %v1338
        %v1379 = vpack.c.b16 %v1343, %v1341
        %v1380 = vpack.c.b16 %v1344, %v1342
        %v1381 = vpack.c.b16 %v1347, %v1345
        %v1382 = vpack.c.b16 %v1348, %v1346
        %v1383 = vpack.c.b16 %v1351, %v1349
        %v1384 = vpack.c.b16 %v1352, %v1350
        %1417 = vmatprep.subr.bf16.mxu0 %v1368
        %1418 = vmatpush1.bf16.msra.mxu0 %v1367
        %1419 = vmatprep.subr.bf16.mxu0 %v1366
        %1420 = vmatpush1.bf16.msra.mxu0 %v1365
        %1421 = vmatprep.subr.bf16.mxu0 %v1364
        %1422 = vmatpush1.bf16.msra.mxu0 %v1363
        %1423 = vmatprep.subr.bf16.mxu0 %v1362
        %1424 = vmatpush1.bf16.msra.mxu0 %v1361
        %1425 = vmatprep.subr.bf16.mxu0 %v1360
        %1426 = vmatpush1.bf16.msra.mxu0 %v1359
        %1427 = vmatprep.subr.bf16.mxu0 %v1358
        %1428 = vmatpush1.bf16.msra.mxu0 %v1357
        %1429 = vmatprep.subr.bf16.mxu0 %v1356
        %1430 = vmatpush1.bf16.msra.mxu0 %v1355
        %1431 = vmatprep.subr.bf16.mxu0 %v1354
        %1432 = vmatpush1.bf16.msra.mxu0 %v1353
        %1433 = vmatprep.subr.bf16.mxu0 %v1384
        %1434 = vmatpush2.bf16.msra.mxu0 %v1383
        %1435 = vmatprep.subr.bf16.mxu0 %v1382
        %1436 = vmatpush2.bf16.msra.mxu0 %v1381
        %1437 = vmatprep.subr.bf16.mxu0 %v1380
        %1438 = vmatpush2.bf16.msra.mxu0 %v1379
        %1439 = vmatprep.subr.bf16.mxu0 %v1378
        %1440 = vmatpush2.bf16.msra.mxu0 %v1377
        %1441 = vmatprep.subr.bf16.mxu0 %v1376
        %1442 = vmatpush2.bf16.msra.mxu0 %v1375
        %1443 = vmatprep.subr.bf16.mxu0 %v1374
        %1444 = vmatpush2.bf16.msra.mxu0 %v1373
        %1445 = vmatprep.subr.bf16.mxu0 %v1372
        %1446 = vmatpush2.bf16.msra.mxu0 %v1371
        %1447 = vmatprep.subr.bf16.mxu0 %v1370
        %1448 = vmatpush2.bf16.msra.mxu0 %v1369
        %1449 = vmatprep.mubr.bf16.mxu0 %v1194
        %1450 = vmatmul.mubr.bf16.gmra.mxu0 %v1193
        %v1451 = vpop.f32.mrf.mxu0
        %v1452 = vadd.f32 %v1250, %v1451
        %v1453 = vpop.f32.mrf.mxu0
        %v1454 = vadd.f32 %v1254, %v1453
        %v1455 = vpop.f32.mrf.mxu0
        %v1456 = vadd.f32 %v1250, %v1455
        %v1457 = vpop.f32.mrf.mxu0
        %v1458 = vadd.f32 %v1254, %v1457
        %1459 = vmatprep.mubr.bf16.mxu0 %v1196
        %1460 = vmatmul.mubr.bf16.gmra.mxu0 %v1195
        %v1461 = vpop.f32.mrf.mxu0
        %v1462 = vadd.f32 %v1250, %v1461
        %v1463 = vpop.f32.mrf.mxu0
        %v1464 = vadd.f32 %v1254, %v1463
        %v1465 = vpop.f32.mrf.mxu0
        %v1466 = vadd.f32 %v1250, %v1465
        %v1467 = vpop.f32.mrf.mxu0
        %v1468 = vadd.f32 %v1254, %v1467
        %1469 = vmatprep.mubr.bf16.mxu0 %v1198
        %1470 = vmatmul.mubr.bf16.gmra.mxu0 %v1197
        %v1471 = vpop.f32.mrf.mxu0
        %v1472 = vadd.f32 %v1250, %v1471
        %v1473 = vpop.f32.mrf.mxu0
        %v1474 = vadd.f32 %v1254, %v1473
        %v1475 = vpop.f32.mrf.mxu0
        %v1476 = vadd.f32 %v1250, %v1475
        %v1477 = vpop.f32.mrf.mxu0
        %v1478 = vadd.f32 %v1254, %v1477
        %1479 = vmatprep.mubr.bf16.mxu0 %v1200
        %1480 = vmatmul.mubr.bf16.gmra.mxu0 %v1199
        %v1481 = vpop.f32.mrf.mxu0
        %v1482 = vadd.f32 %v1250, %v1481
        %v1483 = vpop.f32.mrf.mxu0
        %v1484 = vadd.f32 %v1254, %v1483
        %v1485 = vpop.f32.mrf.mxu0
        %v1486 = vadd.f32 %v1250, %v1485
        %v1487 = vpop.f32.mrf.mxu0
        %v1488 = vadd.f32 %v1254, %v1487
        %1489 = vmatprep.mubr.bf16.mxu0 %v1202
        %1490 = vmatmul.mubr.bf16.gmra.mxu0 %v1201
        %v1491 = vpop.f32.mrf.mxu0
        %v1492 = vadd.f32 %v1250, %v1491
        %v1493 = vpop.f32.mrf.mxu0
        %v1494 = vadd.f32 %v1254, %v1493
        %v1495 = vpop.f32.mrf.mxu0
        %v1496 = vadd.f32 %v1250, %v1495
        %v1497 = vpop.f32.mrf.mxu0
        %v1498 = vadd.f32 %v1254, %v1497
        %1499 = vmatprep.mubr.bf16.mxu0 %v1204
        %1500 = vmatmul.mubr.bf16.gmra.mxu0 %v1203
        %v1501 = vpop.f32.mrf.mxu0
        %v1502 = vadd.f32 %v1250, %v1501
        %v1503 = vpop.f32.mrf.mxu0
        %v1504 = vadd.f32 %v1254, %v1503
        %v1505 = vpop.f32.mrf.mxu0
        %v1506 = vadd.f32 %v1250, %v1505
        %v1507 = vpop.f32.mrf.mxu0
        %v1508 = vadd.f32 %v1254, %v1507
        %1509 = vmatprep.mubr.bf16.mxu0 %v1206
        %1510 = vmatmul.mubr.bf16.gmra.mxu0 %v1205
        %v1511 = vpop.f32.mrf.mxu0
        %v1512 = vadd.f32 %v1250, %v1511
        %v1513 = vpop.f32.mrf.mxu0
        %v1514 = vadd.f32 %v1254, %v1513
        %v1515 = vpop.f32.mrf.mxu0
        %v1516 = vadd.f32 %v1250, %v1515
        %v1517 = vpop.f32.mrf.mxu0
        %v1518 = vadd.f32 %v1254, %v1517
        %1519 = vmatprep.mubr.bf16.mxu0 %v1208
        %1520 = vmatmul.mubr.bf16.gmra.mxu0 %v1207
        %v1521 = vpop.f32.mrf.mxu0
        %v1522 = vadd.f32 %v1250, %v1521
        %v1523 = vpop.f32.mrf.mxu0
        %v1524 = vadd.f32 %v1254, %v1523
        %v1525 = vpop.f32.mrf.mxu0
        %v1526 = vadd.f32 %v1250, %v1525
        %v1527 = vpop.f32.mrf.mxu0
        %v1528 = vadd.f32 %v1254, %v1527
        %1529 = vmatprep.mubr.bf16.mxu0 %v1210
        %1530 = vmatmul.mubr.bf16.gmra.mxu0 %v1209
        %v1531 = vpop.f32.mrf.mxu0
        %v1532 = vadd.f32 %v1250, %v1531
        %v1533 = vpop.f32.mrf.mxu0
        %v1534 = vadd.f32 %v1254, %v1533
        %v1535 = vpop.f32.mrf.mxu0
        %v1536 = vadd.f32 %v1250, %v1535
        %v1537 = vpop.f32.mrf.mxu0
        %v1538 = vadd.f32 %v1254, %v1537
        %1539 = vmatprep.mubr.bf16.mxu0 %v1212
        %1540 = vmatmul.mubr.bf16.gmra.mxu0 %v1211
        %v1541 = vpop.f32.mrf.mxu0
        %v1542 = vadd.f32 %v1250, %v1541
        %v1543 = vpop.f32.mrf.mxu0
        %v1544 = vadd.f32 %v1254, %v1543
        %v1545 = vpop.f32.mrf.mxu0
        %v1546 = vadd.f32 %v1250, %v1545
        %v1547 = vpop.f32.mrf.mxu0
        %v1548 = vadd.f32 %v1254, %v1547
        %1549 = vdwg.mxu0
        %v1550 = vmax.f32 %v1452, 0.0
        %v1551 = vmax.f32 %v1454, 0.0
        %v1552 = vmax.f32 %v1456, 0.0
        %v1553 = vmax.f32 %v1458, 0.0
        %v1554 = vmax.f32 %v1462, 0.0
        %v1555 = vmax.f32 %v1464, 0.0
        %v1556 = vmax.f32 %v1466, 0.0
        %v1557 = vmax.f32 %v1468, 0.0
        %v1558 = vmax.f32 %v1472, 0.0
        %v1559 = vmax.f32 %v1474, 0.0
        %v1560 = vmax.f32 %v1476, 0.0
        %v1561 = vmax.f32 %v1478, 0.0
        %v1562 = vmax.f32 %v1482, 0.0
        %v1563 = vmax.f32 %v1484, 0.0
        %v1564 = vmax.f32 %v1486, 0.0
        %v1565 = vmax.f32 %v1488, 0.0
        %v1566 = vmax.f32 %v1492, 0.0
        %v1567 = vmax.f32 %v1494, 0.0
        %v1568 = vmax.f32 %v1496, 0.0
        %v1569 = vmax.f32 %v1498, 0.0
        %v1570 = vmax.f32 %v1502, 0.0
        %v1571 = vmax.f32 %v1504, 0.0
        %v1572 = vmax.f32 %v1506, 0.0
        %v1573 = vmax.f32 %v1508, 0.0
        %v1574 = vmax.f32 %v1512, 0.0
        %v1575 = vmax.f32 %v1514, 0.0
        %v1576 = vmax.f32 %v1516, 0.0
        %v1577 = vmax.f32 %v1518, 0.0
        %v1578 = vmax.f32 %v1522, 0.0
        %v1579 = vmax.f32 %v1524, 0.0
        %v1580 = vmax.f32 %v1526, 0.0
        %v1581 = vmax.f32 %v1528, 0.0
        %v1582 = vmax.f32 %v1532, 0.0
        %v1583 = vmax.f32 %v1534, 0.0
        %v1584 = vmax.f32 %v1536, 0.0
        %v1585 = vmax.f32 %v1538, 0.0
        %v1586 = vmax.f32 %v1542, 0.0
        %v1587 = vmax.f32 %v1544, 0.0
        %v1588 = vmax.f32 %v1546, 0.0
        %v1589 = vmax.f32 %v1548, 0.0
        %v1590 = vpack.c.bf16 %v1552, %v1550
        %v1591 = vpack.c.bf16 %v1553, %v1551
        %v1592 = vpack.c.bf16 %v1556, %v1554
        %v1593 = vpack.c.bf16 %v1557, %v1555
        %v1594 = vpack.c.bf16 %v1560, %v1558
        %v1595 = vpack.c.bf16 %v1561, %v1559
        %v1596 = vpack.c.bf16 %v1564, %v1562
        %v1597 = vpack.c.bf16 %v1565, %v1563
        %v1598 = vpack.c.bf16 %v1568, %v1566
        %v1599 = vpack.c.bf16 %v1569, %v1567
        %v1600 = vpack.c.bf16 %v1572, %v1570
        %v1601 = vpack.c.bf16 %v1573, %v1571
        %v1602 = vpack.c.bf16 %v1576, %v1574
        %v1603 = vpack.c.bf16 %v1577, %v1575
        %v1604 = vpack.c.bf16 %v1580, %v1578
        %v1605 = vpack.c.bf16 %v1581, %v1579
        %v1606 = vpack.c.bf16 %v1584, %v1582
        %v1607 = vpack.c.bf16 %v1585, %v1583
        %v1608 = vpack.c.bf16 %v1588, %v1586
        %v1609 = vpack.c.bf16 %v1589, %v1587
        %v1610 = vld [vmem:[#allocation7] sm:$0xff]
        %v1611 = vld [vmem:[#allocation7 + $0x8] sm:$0xff]
        %v1612 = vld [vmem:[#allocation7 + $0x10] sm:$0xff]
        %v1613 = vld [vmem:[#allocation7 + $0x18] sm:$0xff]
        %v1614 = vld [vmem:[#allocation7 + $0x20] sm:$0xff]
        %v1615 = vld [vmem:[#allocation7 + $0x28] sm:$0xff]
        %v1616 = vld [vmem:[#allocation7 + $0x30] sm:$0xff]
        %v1617 = vld [vmem:[#allocation7 + $0x38] sm:$0xff]
        %v1618 = vld [vmem:[#allocation7 + $0x40] sm:$0xff]
        %v1619 = vld [vmem:[#allocation7 + $0x48] sm:$0xff]
        %v1620 = vld [vmem:[#allocation7 + $0x50] sm:$0xff]
        %v1621 = vld [vmem:[#allocation7 + $0x58] sm:$0xff]
        %v1622 = vld [vmem:[#allocation7 + $0x60] sm:$0xff]
        %v1623 = vld [vmem:[#allocation7 + $0x68] sm:$0xff]
        %v1624 = vld [vmem:[#allocation7 + $0x70] sm:$0xff]
        %v1625 = vld [vmem:[#allocation7 + $0x78] sm:$0xff]
        %v1626 = vld [vmem:[#allocation7 + $0x80] sm:$0xff]
        %v1627 = vld [vmem:[#allocation7 + $0x88] sm:$0xff]
        %v1628 = vld [vmem:[#allocation7 + $0x90] sm:$0xff]
        %v1629 = vld [vmem:[#allocation7 + $0x98] sm:$0xff]
        %v1630 = vld [vmem:[#allocation7 + $0xa0] sm:$0xff]
        %v1631 = vld [vmem:[#allocation7 + $0xa8] sm:$0xff]
        %v1632 = vld [vmem:[#allocation7 + $0xb0] sm:$0xff]
        %v1633 = vld [vmem:[#allocation7 + $0xb8] sm:$0xff]
        %v1634 = vld [vmem:[#allocation7 + $0xc0] sm:$0xff]
        %v1635 = vld [vmem:[#allocation7 + $0xc8] sm:$0xff]
        %v1636 = vld [vmem:[#allocation7 + $0xd0] sm:$0xff]
        %v1637 = vld [vmem:[#allocation7 + $0xd8] sm:$0xff]
        %v1638 = vld [vmem:[#allocation7 + $0xe0] sm:$0xff]
        %v1639 = vld [vmem:[#allocation7 + $0xe8] sm:$0xff]
        %v1640 = vld [vmem:[#allocation7 + $0xf0] sm:$0xff]
        %v1641 = vld [vmem:[#allocation7 + $0xf8] sm:$0xff]
        %v1642 = vld [vmem:[%s8] sm:$0x3]
        %v1644 = vlaneseq
        %v1645 = vshrl.u32 %v1644, 7
        %v1646 = vsub.s32 0, %v1645
        %v1647 = vrot.slane %v1642, %v1646
        %v1648 = vlaneseq
        %v1649 = vshrl.u32 %v1648, 7
        %v1650 = vsub.s32 1, %v1649
        %v1651 = vrot.slane %v1642, %v1650
        %v1686 = vunpack.c.l.b16 %v1610
        %v1687 = vunpack.c.h.b16 %v1610
        %v1688 = vunpack.c.l.b16 %v1611
        %v1689 = vunpack.c.h.b16 %v1611
        %v1690 = vunpack.c.l.b16 %v1612
        %v1691 = vunpack.c.h.b16 %v1612
        %v1692 = vunpack.c.l.b16 %v1613
        %v1693 = vunpack.c.h.b16 %v1613
        %v1694 = vunpack.c.l.b16 %v1614
        %v1695 = vunpack.c.h.b16 %v1614
        %v1696 = vunpack.c.l.b16 %v1615
        %v1697 = vunpack.c.h.b16 %v1615
        %v1698 = vunpack.c.l.b16 %v1616
        %v1699 = vunpack.c.h.b16 %v1616
        %v1700 = vunpack.c.l.b16 %v1617
        %v1701 = vunpack.c.h.b16 %v1617
        %v1702 = vunpack.c.l.b16 %v1618
        %v1703 = vunpack.c.h.b16 %v1618
        %v1704 = vunpack.c.l.b16 %v1619
        %v1705 = vunpack.c.h.b16 %v1619
        %v1706 = vunpack.c.l.b16 %v1620
        %v1707 = vunpack.c.h.b16 %v1620
        %v1708 = vunpack.c.l.b16 %v1621
        %v1709 = vunpack.c.h.b16 %v1621
        %v1710 = vunpack.c.l.b16 %v1622
        %v1711 = vunpack.c.h.b16 %v1622
        %v1712 = vunpack.c.l.b16 %v1623
        %v1713 = vunpack.c.h.b16 %v1623
        %v1714 = vunpack.c.l.b16 %v1624
        %v1715 = vunpack.c.h.b16 %v1624
        %v1716 = vunpack.c.l.b16 %v1625
        %v1717 = vunpack.c.h.b16 %v1625
        %v1718 = vunpack.c.l.b16 %v1626
        %v1719 = vunpack.c.h.b16 %v1626
        %v1720 = vunpack.c.l.b16 %v1627
        %v1721 = vunpack.c.h.b16 %v1627
        %v1722 = vunpack.c.l.b16 %v1628
        %v1723 = vunpack.c.h.b16 %v1628
        %v1724 = vunpack.c.l.b16 %v1629
        %v1725 = vunpack.c.h.b16 %v1629
        %v1726 = vunpack.c.l.b16 %v1630
        %v1727 = vunpack.c.h.b16 %v1630
        %v1728 = vunpack.c.l.b16 %v1631
        %v1729 = vunpack.c.h.b16 %v1631
        %v1730 = vunpack.c.l.b16 %v1632
        %v1731 = vunpack.c.h.b16 %v1632
        %v1732 = vunpack.c.l.b16 %v1633
        %v1733 = vunpack.c.h.b16 %v1633
        %v1734 = vunpack.c.l.b16 %v1634
        %v1735 = vunpack.c.h.b16 %v1634
        %v1736 = vunpack.c.l.b16 %v1635
        %v1737 = vunpack.c.h.b16 %v1635
        %v1738 = vunpack.c.l.b16 %v1636
        %v1739 = vunpack.c.h.b16 %v1636
        %v1740 = vunpack.c.l.b16 %v1637
        %v1741 = vunpack.c.h.b16 %v1637
        %v1742 = vunpack.c.l.b16 %v1638
        %v1743 = vunpack.c.h.b16 %v1638
        %v1744 = vunpack.c.l.b16 %v1639
        %v1745 = vunpack.c.h.b16 %v1639
        %v1746 = vunpack.c.l.b16 %v1640
        %v1747 = vunpack.c.h.b16 %v1640
        %v1748 = vunpack.c.l.b16 %v1641
        %v1749 = vunpack.c.h.b16 %v1641
        %v1750 = vpack.c.b16 %v1688, %v1686
        %v1751 = vpack.c.b16 %v1689, %v1687
        %v1752 = vpack.c.b16 %v1692, %v1690
        %v1753 = vpack.c.b16 %v1693, %v1691
        %v1754 = vpack.c.b16 %v1696, %v1694
        %v1755 = vpack.c.b16 %v1697, %v1695
        %v1756 = vpack.c.b16 %v1700, %v1698
        %v1757 = vpack.c.b16 %v1701, %v1699
        %v1758 = vpack.c.b16 %v1704, %v1702
        %v1759 = vpack.c.b16 %v1705, %v1703
        %v1760 = vpack.c.b16 %v1708, %v1706
        %v1761 = vpack.c.b16 %v1709, %v1707
        %v1762 = vpack.c.b16 %v1712, %v1710
        %v1763 = vpack.c.b16 %v1713, %v1711
        %v1764 = vpack.c.b16 %v1716, %v1714
        %v1765 = vpack.c.b16 %v1717, %v1715
        %v1766 = vpack.c.b16 %v1720, %v1718
        %v1767 = vpack.c.b16 %v1721, %v1719
        %v1768 = vpack.c.b16 %v1724, %v1722
        %v1769 = vpack.c.b16 %v1725, %v1723
        %v1770 = vpack.c.b16 %v1728, %v1726
        %v1771 = vpack.c.b16 %v1729, %v1727
        %v1772 = vpack.c.b16 %v1732, %v1730
        %v1773 = vpack.c.b16 %v1733, %v1731
        %v1774 = vpack.c.b16 %v1736, %v1734
        %v1775 = vpack.c.b16 %v1737, %v1735
        %v1776 = vpack.c.b16 %v1740, %v1738
        %v1777 = vpack.c.b16 %v1741, %v1739
        %v1778 = vpack.c.b16 %v1744, %v1742
        %v1779 = vpack.c.b16 %v1745, %v1743
        %v1780 = vpack.c.b16 %v1748, %v1746
        %v1781 = vpack.c.b16 %v1749, %v1747
        %1814 = vmatprep.subr.bf16.mxu0 %v1765
        %1815 = vmatpush1.bf16.msra.mxu0 %v1764
        %1816 = vmatprep.subr.bf16.mxu0 %v1763
        %1817 = vmatpush1.bf16.msra.mxu0 %v1762
        %1818 = vmatprep.subr.bf16.mxu0 %v1761
        %1819 = vmatpush1.bf16.msra.mxu0 %v1760
        %1820 = vmatprep.subr.bf16.mxu0 %v1759
        %1821 = vmatpush1.bf16.msra.mxu0 %v1758
        %1822 = vmatprep.subr.bf16.mxu0 %v1757
        %1823 = vmatpush1.bf16.msra.mxu0 %v1756
        %1824 = vmatprep.subr.bf16.mxu0 %v1755
        %1825 = vmatpush1.bf16.msra.mxu0 %v1754
        %1826 = vmatprep.subr.bf16.mxu0 %v1753
        %1827 = vmatpush1.bf16.msra.mxu0 %v1752
        %1828 = vmatprep.subr.bf16.mxu0 %v1751
        %1829 = vmatpush1.bf16.msra.mxu0 %v1750
        %1830 = vmatprep.subr.bf16.mxu0 %v1781
        %1831 = vmatpush2.bf16.msra.mxu0 %v1780
        %1832 = vmatprep.subr.bf16.mxu0 %v1779
        %1833 = vmatpush2.bf16.msra.mxu0 %v1778
        %1834 = vmatprep.subr.bf16.mxu0 %v1777
        %1835 = vmatpush2.bf16.msra.mxu0 %v1776
        %1836 = vmatprep.subr.bf16.mxu0 %v1775
        %1837 = vmatpush2.bf16.msra.mxu0 %v1774
        %1838 = vmatprep.subr.bf16.mxu0 %v1773
        %1839 = vmatpush2.bf16.msra.mxu0 %v1772
        %1840 = vmatprep.subr.bf16.mxu0 %v1771
        %1841 = vmatpush2.bf16.msra.mxu0 %v1770
        %1842 = vmatprep.subr.bf16.mxu0 %v1769
        %1843 = vmatpush2.bf16.msra.mxu0 %v1768
        %1844 = vmatprep.subr.bf16.mxu0 %v1767
        %1845 = vmatpush2.bf16.msra.mxu0 %v1766
        %1846 = vmatprep.mubr.bf16.mxu0 %v1591
        %1847 = vmatmul.mubr.bf16.gmra.mxu0 %v1590
        %v1848 = vpop.f32.mrf.mxu0
        %v1849 = vadd.f32 %v1647, %v1848
        %v1850 = vpop.f32.mrf.mxu0
        %v1851 = vadd.f32 %v1651, %v1850
        %v1852 = vpop.f32.mrf.mxu0
        %v1853 = vadd.f32 %v1647, %v1852
        %v1854 = vpop.f32.mrf.mxu0
        %v1855 = vadd.f32 %v1651, %v1854
        %1856 = vmatprep.mubr.bf16.mxu0 %v1593
        %1857 = vmatmul.mubr.bf16.gmra.mxu0 %v1592
        %v1858 = vpop.f32.mrf.mxu0
        %v1859 = vadd.f32 %v1647, %v1858
        %v1860 = vpop.f32.mrf.mxu0
        %v1861 = vadd.f32 %v1651, %v1860
        %v1862 = vpop.f32.mrf.mxu0
        %v1863 = vadd.f32 %v1647, %v1862
        %v1864 = vpop.f32.mrf.mxu0
        %v1865 = vadd.f32 %v1651, %v1864
        %1866 = vmatprep.mubr.bf16.mxu0 %v1595
        %1867 = vmatmul.mubr.bf16.gmra.mxu0 %v1594
        %v1868 = vpop.f32.mrf.mxu0
        %v1869 = vadd.f32 %v1647, %v1868
        %v1870 = vpop.f32.mrf.mxu0
        %v1871 = vadd.f32 %v1651, %v1870
        %v1872 = vpop.f32.mrf.mxu0
        %v1873 = vadd.f32 %v1647, %v1872
        %v1874 = vpop.f32.mrf.mxu0
        %v1875 = vadd.f32 %v1651, %v1874
        %1876 = vmatprep.mubr.bf16.mxu0 %v1597
        %1877 = vmatmul.mubr.bf16.gmra.mxu0 %v1596
        %v1878 = vpop.f32.mrf.mxu0
        %v1879 = vadd.f32 %v1647, %v1878
        %v1880 = vpop.f32.mrf.mxu0
        %v1881 = vadd.f32 %v1651, %v1880
        %v1882 = vpop.f32.mrf.mxu0
        %v1883 = vadd.f32 %v1647, %v1882
        %v1884 = vpop.f32.mrf.mxu0
        %v1885 = vadd.f32 %v1651, %v1884
        %1886 = vmatprep.mubr.bf16.mxu0 %v1599
        %1887 = vmatmul.mubr.bf16.gmra.mxu0 %v1598
        %v1888 = vpop.f32.mrf.mxu0
        %v1889 = vadd.f32 %v1647, %v1888
        %v1890 = vpop.f32.mrf.mxu0
        %v1891 = vadd.f32 %v1651, %v1890
        %v1892 = vpop.f32.mrf.mxu0
        %v1893 = vadd.f32 %v1647, %v1892
        %v1894 = vpop.f32.mrf.mxu0
        %v1895 = vadd.f32 %v1651, %v1894
        %1896 = vmatprep.mubr.bf16.mxu0 %v1601
        %1897 = vmatmul.mubr.bf16.gmra.mxu0 %v1600
        %v1898 = vpop.f32.mrf.mxu0
        %v1899 = vadd.f32 %v1647, %v1898
        %v1900 = vpop.f32.mrf.mxu0
        %v1901 = vadd.f32 %v1651, %v1900
        %v1902 = vpop.f32.mrf.mxu0
        %v1903 = vadd.f32 %v1647, %v1902
        %v1904 = vpop.f32.mrf.mxu0
        %v1905 = vadd.f32 %v1651, %v1904
        %1906 = vmatprep.mubr.bf16.mxu0 %v1603
        %1907 = vmatmul.mubr.bf16.gmra.mxu0 %v1602
        %v1908 = vpop.f32.mrf.mxu0
        %v1909 = vadd.f32 %v1647, %v1908
        %v1910 = vpop.f32.mrf.mxu0
        %v1911 = vadd.f32 %v1651, %v1910
        %v1912 = vpop.f32.mrf.mxu0
        %v1913 = vadd.f32 %v1647, %v1912
        %v1914 = vpop.f32.mrf.mxu0
        %v1915 = vadd.f32 %v1651, %v1914
        %1916 = vmatprep.mubr.bf16.mxu0 %v1605
        %1917 = vmatmul.mubr.bf16.gmra.mxu0 %v1604
        %v1918 = vpop.f32.mrf.mxu0
        %v1919 = vadd.f32 %v1647, %v1918
        %v1920 = vpop.f32.mrf.mxu0
        %v1921 = vadd.f32 %v1651, %v1920
        %v1922 = vpop.f32.mrf.mxu0
        %v1923 = vadd.f32 %v1647, %v1922
        %v1924 = vpop.f32.mrf.mxu0
        %v1925 = vadd.f32 %v1651, %v1924
        %1926 = vmatprep.mubr.bf16.mxu0 %v1607
        %1927 = vmatmul.mubr.bf16.gmra.mxu0 %v1606
        %v1928 = vpop.f32.mrf.mxu0
        %v1929 = vadd.f32 %v1647, %v1928
        %v1930 = vpop.f32.mrf.mxu0
        %v1931 = vadd.f32 %v1651, %v1930
        %v1932 = vpop.f32.mrf.mxu0
        %v1933 = vadd.f32 %v1647, %v1932
        %v1934 = vpop.f32.mrf.mxu0
        %v1935 = vadd.f32 %v1651, %v1934
        %1936 = vmatprep.mubr.bf16.mxu0 %v1609
        %1937 = vmatmul.mubr.bf16.gmra.mxu0 %v1608
        %v1938 = vpop.f32.mrf.mxu0
        %v1939 = vadd.f32 %v1647, %v1938
        %v1940 = vpop.f32.mrf.mxu0
        %v1941 = vadd.f32 %v1651, %v1940
        %v1942 = vpop.f32.mrf.mxu0
        %v1943 = vadd.f32 %v1647, %v1942
        %v1944 = vpop.f32.mrf.mxu0
        %v1945 = vadd.f32 %v1651, %v1944
        %1946 = vdwg.mxu0
        %v1947 = vmax.f32 %v1849, 0.0
        %v1948 = vmax.f32 %v1851, 0.0
        %v1949 = vmax.f32 %v1853, 0.0
        %v1950 = vmax.f32 %v1855, 0.0
        %v1951 = vmax.f32 %v1859, 0.0
        %v1952 = vmax.f32 %v1861, 0.0
        %v1953 = vmax.f32 %v1863, 0.0
        %v1954 = vmax.f32 %v1865, 0.0
        %v1955 = vmax.f32 %v1869, 0.0
        %v1956 = vmax.f32 %v1871, 0.0
        %v1957 = vmax.f32 %v1873, 0.0
        %v1958 = vmax.f32 %v1875, 0.0
        %v1959 = vmax.f32 %v1879, 0.0
        %v1960 = vmax.f32 %v1881, 0.0
        %v1961 = vmax.f32 %v1883, 0.0
        %v1962 = vmax.f32 %v1885, 0.0
        %v1963 = vmax.f32 %v1889, 0.0
        %v1964 = vmax.f32 %v1891, 0.0
        %v1965 = vmax.f32 %v1893, 0.0
        %v1966 = vmax.f32 %v1895, 0.0
        %v1967 = vmax.f32 %v1899, 0.0
        %v1968 = vmax.f32 %v1901, 0.0
        %v1969 = vmax.f32 %v1903, 0.0
        %v1970 = vmax.f32 %v1905, 0.0
        %v1971 = vmax.f32 %v1909, 0.0
        %v1972 = vmax.f32 %v1911, 0.0
        %v1973 = vmax.f32 %v1913, 0.0
        %v1974 = vmax.f32 %v1915, 0.0
        %v1975 = vmax.f32 %v1919, 0.0
        %v1976 = vmax.f32 %v1921, 0.0
        %v1977 = vmax.f32 %v1923, 0.0
        %v1978 = vmax.f32 %v1925, 0.0
        %v1979 = vmax.f32 %v1929, 0.0
        %v1980 = vmax.f32 %v1931, 0.0
        %v1981 = vmax.f32 %v1933, 0.0
        %v1982 = vmax.f32 %v1935, 0.0
        %v1983 = vmax.f32 %v1939, 0.0
        %v1984 = vmax.f32 %v1941, 0.0
        %v1985 = vmax.f32 %v1943, 0.0
        %v1986 = vmax.f32 %v1945, 0.0
        %v1987 = vpack.c.bf16 %v1949, %v1947
        %v1988 = vpack.c.bf16 %v1950, %v1948
        %v1989 = vpack.c.bf16 %v1953, %v1951
        %v1990 = vpack.c.bf16 %v1954, %v1952
        %v1991 = vpack.c.bf16 %v1957, %v1955
        %v1992 = vpack.c.bf16 %v1958, %v1956
        %v1993 = vpack.c.bf16 %v1961, %v1959
        %v1994 = vpack.c.bf16 %v1962, %v1960
        %v1995 = vpack.c.bf16 %v1965, %v1963
        %v1996 = vpack.c.bf16 %v1966, %v1964
        %v1997 = vpack.c.bf16 %v1969, %v1967
        %v1998 = vpack.c.bf16 %v1970, %v1968
        %v1999 = vpack.c.bf16 %v1973, %v1971
        %v2000 = vpack.c.bf16 %v1974, %v1972
        %v2001 = vpack.c.bf16 %v1977, %v1975
        %v2002 = vpack.c.bf16 %v1978, %v1976
        %v2003 = vpack.c.bf16 %v1981, %v1979
        %v2004 = vpack.c.bf16 %v1982, %v1980
        %v2005 = vpack.c.bf16 %v1985, %v1983
        %v2006 = vpack.c.bf16 %v1986, %v1984
        %v2007 = vld [vmem:[#allocation8] sm:$0xff]
        %v2008 = vld [vmem:[#allocation8 + $0x8] sm:$0xff]
        %v2009 = vld [vmem:[#allocation8 + $0x10] sm:$0xff]
        %v2010 = vld [vmem:[#allocation8 + $0x18] sm:$0xff]
        %v2011 = vld [vmem:[#allocation8 + $0x20] sm:$0xff]
        %v2012 = vld [vmem:[#allocation8 + $0x28] sm:$0xff]
        %v2013 = vld [vmem:[#allocation8 + $0x30] sm:$0xff]
        %v2014 = vld [vmem:[#allocation8 + $0x38] sm:$0xff]
        %v2015 = vld [vmem:[#allocation8 + $0x40] sm:$0xff]
        %v2016 = vld [vmem:[#allocation8 + $0x48] sm:$0xff]
        %v2017 = vld [vmem:[#allocation8 + $0x50] sm:$0xff]
        %v2018 = vld [vmem:[#allocation8 + $0x58] sm:$0xff]
        %v2019 = vld [vmem:[#allocation8 + $0x60] sm:$0xff]
        %v2020 = vld [vmem:[#allocation8 + $0x68] sm:$0xff]
        %v2021 = vld [vmem:[#allocation8 + $0x70] sm:$0xff]
        %v2022 = vld [vmem:[#allocation8 + $0x78] sm:$0xff]
        %v2023 = vld [vmem:[#allocation8 + $0x80] sm:$0xff]
        %v2024 = vld [vmem:[#allocation8 + $0x88] sm:$0xff]
        %v2025 = vld [vmem:[#allocation8 + $0x90] sm:$0xff]
        %v2026 = vld [vmem:[#allocation8 + $0x98] sm:$0xff]
        %v2027 = vld [vmem:[#allocation8 + $0xa0] sm:$0xff]
        %v2028 = vld [vmem:[#allocation8 + $0xa8] sm:$0xff]
        %v2029 = vld [vmem:[#allocation8 + $0xb0] sm:$0xff]
        %v2030 = vld [vmem:[#allocation8 + $0xb8] sm:$0xff]
        %v2031 = vld [vmem:[#allocation8 + $0xc0] sm:$0xff]
        %v2032 = vld [vmem:[#allocation8 + $0xc8] sm:$0xff]
        %v2033 = vld [vmem:[#allocation8 + $0xd0] sm:$0xff]
        %v2034 = vld [vmem:[#allocation8 + $0xd8] sm:$0xff]
        %v2035 = vld [vmem:[#allocation8 + $0xe0] sm:$0xff]
        %v2036 = vld [vmem:[#allocation8 + $0xe8] sm:$0xff]
        %v2037 = vld [vmem:[#allocation8 + $0xf0] sm:$0xff]
        %v2038 = vld [vmem:[#allocation8 + $0xf8] sm:$0xff]
        %v2039 = vld [vmem:[%s10] sm:$0x3]
        %v2041 = vlaneseq
        %v2042 = vshrl.u32 %v2041, 7
        %v2043 = vsub.s32 0, %v2042
        %v2044 = vrot.slane %v2039, %v2043
        %v2045 = vlaneseq
        %v2046 = vshrl.u32 %v2045, 7
        %v2047 = vsub.s32 1, %v2046
        %v2048 = vrot.slane %v2039, %v2047
        %v2083 = vunpack.c.l.b16 %v2007
        %v2084 = vunpack.c.h.b16 %v2007
        %v2085 = vunpack.c.l.b16 %v2008
        %v2086 = vunpack.c.h.b16 %v2008
        %v2087 = vunpack.c.l.b16 %v2009
        %v2088 = vunpack.c.h.b16 %v2009
        %v2089 = vunpack.c.l.b16 %v2010
        %v2090 = vunpack.c.h.b16 %v2010
        %v2091 = vunpack.c.l.b16 %v2011
        %v2092 = vunpack.c.h.b16 %v2011
        %v2093 = vunpack.c.l.b16 %v2012
        %v2094 = vunpack.c.h.b16 %v2012
        %v2095 = vunpack.c.l.b16 %v2013
        %v2096 = vunpack.c.h.b16 %v2013
        %v2097 = vunpack.c.l.b16 %v2014
        %v2098 = vunpack.c.h.b16 %v2014
        %v2099 = vunpack.c.l.b16 %v2015
        %v2100 = vunpack.c.h.b16 %v2015
        %v2101 = vunpack.c.l.b16 %v2016
        %v2102 = vunpack.c.h.b16 %v2016
        %v2103 = vunpack.c.l.b16 %v2017
        %v2104 = vunpack.c.h.b16 %v2017
        %v2105 = vunpack.c.l.b16 %v2018
        %v2106 = vunpack.c.h.b16 %v2018
        %v2107 = vunpack.c.l.b16 %v2019
        %v2108 = vunpack.c.h.b16 %v2019
        %v2109 = vunpack.c.l.b16 %v2020
        %v2110 = vunpack.c.h.b16 %v2020
        %v2111 = vunpack.c.l.b16 %v2021
        %v2112 = vunpack.c.h.b16 %v2021
        %v2113 = vunpack.c.l.b16 %v2022
        %v2114 = vunpack.c.h.b16 %v2022
        %v2115 = vunpack.c.l.b16 %v2023
        %v2116 = vunpack.c.h.b16 %v2023
        %v2117 = vunpack.c.l.b16 %v2024
        %v2118 = vunpack.c.h.b16 %v2024
        %v2119 = vunpack.c.l.b16 %v2025
        %v2120 = vunpack.c.h.b16 %v2025
        %v2121 = vunpack.c.l.b16 %v2026
        %v2122 = vunpack.c.h.b16 %v2026
        %v2123 = vunpack.c.l.b16 %v2027
        %v2124 = vunpack.c.h.b16 %v2027
        %v2125 = vunpack.c.l.b16 %v2028
        %v2126 = vunpack.c.h.b16 %v2028
        %v2127 = vunpack.c.l.b16 %v2029
        %v2128 = vunpack.c.h.b16 %v2029
        %v2129 = vunpack.c.l.b16 %v2030
        %v2130 = vunpack.c.h.b16 %v2030
        %v2131 = vunpack.c.l.b16 %v2031
        %v2132 = vunpack.c.h.b16 %v2031
        %v2133 = vunpack.c.l.b16 %v2032
        %v2134 = vunpack.c.h.b16 %v2032
        %v2135 = vunpack.c.l.b16 %v2033
        %v2136 = vunpack.c.h.b16 %v2033
        %v2137 = vunpack.c.l.b16 %v2034
        %v2138 = vunpack.c.h.b16 %v2034
        %v2139 = vunpack.c.l.b16 %v2035
        %v2140 = vunpack.c.h.b16 %v2035
        %v2141 = vunpack.c.l.b16 %v2036
        %v2142 = vunpack.c.h.b16 %v2036
        %v2143 = vunpack.c.l.b16 %v2037
        %v2144 = vunpack.c.h.b16 %v2037
        %v2145 = vunpack.c.l.b16 %v2038
        %v2146 = vunpack.c.h.b16 %v2038
        %v2147 = vpack.c.b16 %v2085, %v2083
        %v2148 = vpack.c.b16 %v2086, %v2084
        %v2149 = vpack.c.b16 %v2089, %v2087
        %v2150 = vpack.c.b16 %v2090, %v2088
        %v2151 = vpack.c.b16 %v2093, %v2091
        %v2152 = vpack.c.b16 %v2094, %v2092
        %v2153 = vpack.c.b16 %v2097, %v2095
        %v2154 = vpack.c.b16 %v2098, %v2096
        %v2155 = vpack.c.b16 %v2101, %v2099
        %v2156 = vpack.c.b16 %v2102, %v2100
        %v2157 = vpack.c.b16 %v2105, %v2103
        %v2158 = vpack.c.b16 %v2106, %v2104
        %v2159 = vpack.c.b16 %v2109, %v2107
        %v2160 = vpack.c.b16 %v2110, %v2108
        %v2161 = vpack.c.b16 %v2113, %v2111
        %v2162 = vpack.c.b16 %v2114, %v2112
        %v2163 = vpack.c.b16 %v2117, %v2115
        %v2164 = vpack.c.b16 %v2118, %v2116
        %v2165 = vpack.c.b16 %v2121, %v2119
        %v2166 = vpack.c.b16 %v2122, %v2120
        %v2167 = vpack.c.b16 %v2125, %v2123
        %v2168 = vpack.c.b16 %v2126, %v2124
        %v2169 = vpack.c.b16 %v2129, %v2127
        %v2170 = vpack.c.b16 %v2130, %v2128
        %v2171 = vpack.c.b16 %v2133, %v2131
        %v2172 = vpack.c.b16 %v2134, %v2132
        %v2173 = vpack.c.b16 %v2137, %v2135
        %v2174 = vpack.c.b16 %v2138, %v2136
        %v2175 = vpack.c.b16 %v2141, %v2139
        %v2176 = vpack.c.b16 %v2142, %v2140
        %v2177 = vpack.c.b16 %v2145, %v2143
        %v2178 = vpack.c.b16 %v2146, %v2144
        %2211 = vmatprep.subr.bf16.mxu0 %v2162
        %2212 = vmatpush1.bf16.msra.mxu0 %v2161
        %2213 = vmatprep.subr.bf16.mxu0 %v2160
        %2214 = vmatpush1.bf16.msra.mxu0 %v2159
        %2215 = vmatprep.subr.bf16.mxu0 %v2158
        %2216 = vmatpush1.bf16.msra.mxu0 %v2157
        %2217 = vmatprep.subr.bf16.mxu0 %v2156
        %2218 = vmatpush1.bf16.msra.mxu0 %v2155
        %2219 = vmatprep.subr.bf16.mxu0 %v2154
        %2220 = vmatpush1.bf16.msra.mxu0 %v2153
        %2221 = vmatprep.subr.bf16.mxu0 %v2152
        %2222 = vmatpush1.bf16.msra.mxu0 %v2151
        %2223 = vmatprep.subr.bf16.mxu0 %v2150
        %2224 = vmatpush1.bf16.msra.mxu0 %v2149
        %2225 = vmatprep.subr.bf16.mxu0 %v2148
        %2226 = vmatpush1.bf16.msra.mxu0 %v2147
        %2227 = vmatprep.subr.bf16.mxu0 %v2178
        %2228 = vmatpush2.bf16.msra.mxu0 %v2177
        %2229 = vmatprep.subr.bf16.mxu0 %v2176
        %2230 = vmatpush2.bf16.msra.mxu0 %v2175
        %2231 = vmatprep.subr.bf16.mxu0 %v2174
        %2232 = vmatpush2.bf16.msra.mxu0 %v2173
        %2233 = vmatprep.subr.bf16.mxu0 %v2172
        %2234 = vmatpush2.bf16.msra.mxu0 %v2171
        %2235 = vmatprep.subr.bf16.mxu0 %v2170
        %2236 = vmatpush2.bf16.msra.mxu0 %v2169
        %2237 = vmatprep.subr.bf16.mxu0 %v2168
        %2238 = vmatpush2.bf16.msra.mxu0 %v2167
        %2239 = vmatprep.subr.bf16.mxu0 %v2166
        %2240 = vmatpush2.bf16.msra.mxu0 %v2165
        %2241 = vmatprep.subr.bf16.mxu0 %v2164
        %2242 = vmatpush2.bf16.msra.mxu0 %v2163
        %2243 = vmatprep.mubr.bf16.mxu0 %v1988
        %2244 = vmatmul.mubr.bf16.gmra.mxu0 %v1987
        %v2245 = vpop.f32.mrf.mxu0
        %v2246 = vadd.f32 %v2044, %v2245
        %v2247 = vpop.f32.mrf.mxu0
        %v2248 = vadd.f32 %v2048, %v2247
        %v2249 = vpop.f32.mrf.mxu0
        %v2250 = vadd.f32 %v2044, %v2249
        %v2251 = vpop.f32.mrf.mxu0
        %v2252 = vadd.f32 %v2048, %v2251
        %2253 = vmatprep.mubr.bf16.mxu0 %v1990
        %2254 = vmatmul.mubr.bf16.gmra.mxu0 %v1989
        %v2255 = vpop.f32.mrf.mxu0
        %v2256 = vadd.f32 %v2044, %v2255
        %v2257 = vpop.f32.mrf.mxu0
        %v2258 = vadd.f32 %v2048, %v2257
        %v2259 = vpop.f32.mrf.mxu0
        %v2260 = vadd.f32 %v2044, %v2259
        %v2261 = vpop.f32.mrf.mxu0
        %v2262 = vadd.f32 %v2048, %v2261
        %2263 = vmatprep.mubr.bf16.mxu0 %v1992
        %2264 = vmatmul.mubr.bf16.gmra.mxu0 %v1991
        %v2265 = vpop.f32.mrf.mxu0
        %v2266 = vadd.f32 %v2044, %v2265
        %v2267 = vpop.f32.mrf.mxu0
        %v2268 = vadd.f32 %v2048, %v2267
        %v2269 = vpop.f32.mrf.mxu0
        %v2270 = vadd.f32 %v2044, %v2269
        %v2271 = vpop.f32.mrf.mxu0
        %v2272 = vadd.f32 %v2048, %v2271
        %2273 = vmatprep.mubr.bf16.mxu0 %v1994
        %2274 = vmatmul.mubr.bf16.gmra.mxu0 %v1993
        %v2275 = vpop.f32.mrf.mxu0
        %v2276 = vadd.f32 %v2044, %v2275
        %v2277 = vpop.f32.mrf.mxu0
        %v2278 = vadd.f32 %v2048, %v2277
        %v2279 = vpop.f32.mrf.mxu0
        %v2280 = vadd.f32 %v2044, %v2279
        %v2281 = vpop.f32.mrf.mxu0
        %v2282 = vadd.f32 %v2048, %v2281
        %2283 = vmatprep.mubr.bf16.mxu0 %v1996
        %2284 = vmatmul.mubr.bf16.gmra.mxu0 %v1995
        %v2285 = vpop.f32.mrf.mxu0
        %v2286 = vadd.f32 %v2044, %v2285
        %v2287 = vpop.f32.mrf.mxu0
        %v2288 = vadd.f32 %v2048, %v2287
        %v2289 = vpop.f32.mrf.mxu0
        %v2290 = vadd.f32 %v2044, %v2289
        %v2291 = vpop.f32.mrf.mxu0
        %v2292 = vadd.f32 %v2048, %v2291
        %2293 = vmatprep.mubr.bf16.mxu0 %v1998
        %2294 = vmatmul.mubr.bf16.gmra.mxu0 %v1997
        %v2295 = vpop.f32.mrf.mxu0
        %v2296 = vadd.f32 %v2044, %v2295
        %v2297 = vpop.f32.mrf.mxu0
        %v2298 = vadd.f32 %v2048, %v2297
        %v2299 = vpop.f32.mrf.mxu0
        %v2300 = vadd.f32 %v2044, %v2299
        %v2301 = vpop.f32.mrf.mxu0
        %v2302 = vadd.f32 %v2048, %v2301
        %2303 = vmatprep.mubr.bf16.mxu0 %v2000
        %2304 = vmatmul.mubr.bf16.gmra.mxu0 %v1999
        %v2305 = vpop.f32.mrf.mxu0
        %v2306 = vadd.f32 %v2044, %v2305
        %v2307 = vpop.f32.mrf.mxu0
        %v2308 = vadd.f32 %v2048, %v2307
        %v2309 = vpop.f32.mrf.mxu0
        %v2310 = vadd.f32 %v2044, %v2309
        %v2311 = vpop.f32.mrf.mxu0
        %v2312 = vadd.f32 %v2048, %v2311
        %2313 = vmatprep.mubr.bf16.mxu0 %v2002
        %2314 = vmatmul.mubr.bf16.gmra.mxu0 %v2001
        %v2315 = vpop.f32.mrf.mxu0
        %v2316 = vadd.f32 %v2044, %v2315
        %v2317 = vpop.f32.mrf.mxu0
        %v2318 = vadd.f32 %v2048, %v2317
        %v2319 = vpop.f32.mrf.mxu0
        %v2320 = vadd.f32 %v2044, %v2319
        %v2321 = vpop.f32.mrf.mxu0
        %v2322 = vadd.f32 %v2048, %v2321
        %2323 = vmatprep.mubr.bf16.mxu0 %v2004
        %2324 = vmatmul.mubr.bf16.gmra.mxu0 %v2003
        %v2325 = vpop.f32.mrf.mxu0
        %v2326 = vadd.f32 %v2044, %v2325
        %v2327 = vpop.f32.mrf.mxu0
        %v2328 = vadd.f32 %v2048, %v2327
        %v2329 = vpop.f32.mrf.mxu0
        %v2330 = vadd.f32 %v2044, %v2329
        %v2331 = vpop.f32.mrf.mxu0
        %v2332 = vadd.f32 %v2048, %v2331
        %2333 = vmatprep.mubr.bf16.mxu0 %v2006
        %2334 = vmatmul.mubr.bf16.gmra.mxu0 %v2005
        %v2335 = vpop.f32.mrf.mxu0
        %v2336 = vadd.f32 %v2044, %v2335
        %v2337 = vpop.f32.mrf.mxu0
        %v2338 = vadd.f32 %v2048, %v2337
        %v2339 = vpop.f32.mrf.mxu0
        %v2340 = vadd.f32 %v2044, %v2339
        %v2341 = vpop.f32.mrf.mxu0
        %v2342 = vadd.f32 %v2048, %v2341
        %2343 = vdwg.mxu0
        %v2344 = vmax.f32 %v2246, 0.0
        %v2345 = vmax.f32 %v2248, 0.0
        %v2346 = vmax.f32 %v2250, 0.0
        %v2347 = vmax.f32 %v2252, 0.0
        %v2348 = vmax.f32 %v2256, 0.0
        %v2349 = vmax.f32 %v2258, 0.0
        %v2350 = vmax.f32 %v2260, 0.0
        %v2351 = vmax.f32 %v2262, 0.0
        %v2352 = vmax.f32 %v2266, 0.0
        %v2353 = vmax.f32 %v2268, 0.0
        %v2354 = vmax.f32 %v2270, 0.0
        %v2355 = vmax.f32 %v2272, 0.0
        %v2356 = vmax.f32 %v2276, 0.0
        %v2357 = vmax.f32 %v2278, 0.0
        %v2358 = vmax.f32 %v2280, 0.0
        %v2359 = vmax.f32 %v2282, 0.0
        %v2360 = vmax.f32 %v2286, 0.0
        %v2361 = vmax.f32 %v2288, 0.0
        %v2362 = vmax.f32 %v2290, 0.0
        %v2363 = vmax.f32 %v2292, 0.0
        %v2364 = vmax.f32 %v2296, 0.0
        %v2365 = vmax.f32 %v2298, 0.0
        %v2366 = vmax.f32 %v2300, 0.0
        %v2367 = vmax.f32 %v2302, 0.0
        %v2368 = vmax.f32 %v2306, 0.0
        %v2369 = vmax.f32 %v2308, 0.0
        %v2370 = vmax.f32 %v2310, 0.0
        %v2371 = vmax.f32 %v2312, 0.0
        %v2372 = vmax.f32 %v2316, 0.0
        %v2373 = vmax.f32 %v2318, 0.0
        %v2374 = vmax.f32 %v2320, 0.0
        %v2375 = vmax.f32 %v2322, 0.0
        %v2376 = vmax.f32 %v2326, 0.0
        %v2377 = vmax.f32 %v2328, 0.0
        %v2378 = vmax.f32 %v2330, 0.0
        %v2379 = vmax.f32 %v2332, 0.0
        %v2380 = vmax.f32 %v2336, 0.0
        %v2381 = vmax.f32 %v2338, 0.0
        %v2382 = vmax.f32 %v2340, 0.0
        %v2383 = vmax.f32 %v2342, 0.0
        %v2384 = vpack.c.bf16 %v2346, %v2344
        %v2385 = vpack.c.bf16 %v2347, %v2345
        %v2386 = vpack.c.bf16 %v2350, %v2348
        %v2387 = vpack.c.bf16 %v2351, %v2349
        %v2388 = vpack.c.bf16 %v2354, %v2352
        %v2389 = vpack.c.bf16 %v2355, %v2353
        %v2390 = vpack.c.bf16 %v2358, %v2356
        %v2391 = vpack.c.bf16 %v2359, %v2357
        %v2392 = vpack.c.bf16 %v2362, %v2360
        %v2393 = vpack.c.bf16 %v2363, %v2361
        %v2394 = vpack.c.bf16 %v2366, %v2364
        %v2395 = vpack.c.bf16 %v2367, %v2365
        %v2396 = vpack.c.bf16 %v2370, %v2368
        %v2397 = vpack.c.bf16 %v2371, %v2369
        %v2398 = vpack.c.bf16 %v2374, %v2372
        %v2399 = vpack.c.bf16 %v2375, %v2373
        %v2400 = vpack.c.bf16 %v2378, %v2376
        %v2401 = vpack.c.bf16 %v2379, %v2377
        %v2402 = vpack.c.bf16 %v2382, %v2380
        %v2403 = vpack.c.bf16 %v2383, %v2381
        %v2404 = vld [vmem:[%s11] sm:$0xf]
        %v2405 = vld [vmem:[%s11 + $0x4] sm:$0xf]
        %v2406 = vld [vmem:[%s11 + $0x8] sm:$0xf]
        %v2407 = vld [vmem:[%s11 + $0xc] sm:$0xf]
        %v2408 = vld [vmem:[%s11 + $0x10] sm:$0xf]
        %v2409 = vld [vmem:[%s11 + $0x14] sm:$0xf]
        %v2410 = vld [vmem:[%s11 + $0x18] sm:$0xf]
        %v2411 = vld [vmem:[%s11 + $0x1c] sm:$0xf]
        %v2412 = vld [vmem:[%s11 + $0x20] sm:$0xf]
        %v2413 = vld [vmem:[%s11 + $0x24] sm:$0xf]
        %v2414 = vld [vmem:[%s11 + $0x28] sm:$0xf]
        %v2415 = vld [vmem:[%s11 + $0x2c] sm:$0xf]
        %v2416 = vld [vmem:[%s11 + $0x30] sm:$0xf]
        %v2417 = vld [vmem:[%s11 + $0x34] sm:$0xf]
        %v2418 = vld [vmem:[%s11 + $0x38] sm:$0xf]
        %v2419 = vld [vmem:[%s11 + $0x3c] sm:$0xf]
        %v2420 = vld [vmem:[%s11 + $0x40] sm:$0xf]
        %v2421 = vld [vmem:[%s11 + $0x44] sm:$0xf]
        %v2422 = vld [vmem:[%s11 + $0x48] sm:$0xf]
        %v2423 = vld [vmem:[%s11 + $0x4c] sm:$0xf]
        %v2424 = vld [vmem:[%s11 + $0x50] sm:$0xf]
        %v2425 = vld [vmem:[%s11 + $0x54] sm:$0xf]
        %v2426 = vld [vmem:[%s11 + $0x58] sm:$0xf]
        %v2427 = vld [vmem:[%s11 + $0x5c] sm:$0xf]
        %v2428 = vld [vmem:[%s11 + $0x60] sm:$0xf]
        %v2429 = vld [vmem:[%s11 + $0x64] sm:$0xf]
        %v2430 = vld [vmem:[%s11 + $0x68] sm:$0xf]
        %v2431 = vld [vmem:[%s11 + $0x6c] sm:$0xf]
        %v2432 = vld [vmem:[%s11 + $0x70] sm:$0xf]
        %v2433 = vld [vmem:[%s11 + $0x74] sm:$0xf]
        %v2434 = vld [vmem:[%s11 + $0x78] sm:$0xf]
        %v2435 = vld [vmem:[%s11 + $0x7c] sm:$0xf]
        %v2436 = vld [vmem:[%s12] sm:$0x1]
        %v2438 = vlaneseq
        %v2439 = vshrl.u32 %v2438, 7
        %v2440 = vsub.s32 0, %v2439
        %v2441 = vrot.slane %v2436, %v2440
        %v2475 = vunpack.c.l.b16 %v2404
        %v2476 = vunpack.c.l.b16 %v2405
        %v2477 = vunpack.c.l.b16 %v2406
        %v2478 = vunpack.c.l.b16 %v2407
        %v2479 = vunpack.c.l.b16 %v2408
        %v2480 = vunpack.c.l.b16 %v2409
        %v2481 = vunpack.c.l.b16 %v2410
        %v2482 = vunpack.c.l.b16 %v2411
        %v2483 = vunpack.c.l.b16 %v2412
        %v2484 = vunpack.c.l.b16 %v2413
        %v2485 = vunpack.c.l.b16 %v2414
        %v2486 = vunpack.c.l.b16 %v2415
        %v2487 = vunpack.c.l.b16 %v2416
        %v2488 = vunpack.c.l.b16 %v2417
        %v2489 = vunpack.c.l.b16 %v2418
        %v2490 = vunpack.c.l.b16 %v2419
        %v2491 = vunpack.c.l.b16 %v2420
        %v2492 = vunpack.c.l.b16 %v2421
        %v2493 = vunpack.c.l.b16 %v2422
        %v2494 = vunpack.c.l.b16 %v2423
        %v2495 = vunpack.c.l.b16 %v2424
        %v2496 = vunpack.c.l.b16 %v2425
        %v2497 = vunpack.c.l.b16 %v2426
        %v2498 = vunpack.c.l.b16 %v2427
        %v2499 = vunpack.c.l.b16 %v2428
        %v2500 = vunpack.c.l.b16 %v2429
        %v2501 = vunpack.c.l.b16 %v2430
        %v2502 = vunpack.c.l.b16 %v2431
        %v2503 = vunpack.c.l.b16 %v2432
        %v2504 = vunpack.c.l.b16 %v2433
        %v2505 = vunpack.c.l.b16 %v2434
        %v2506 = vunpack.c.l.b16 %v2435
        %v2507 = vpack.c.b16 %v2476, %v2475
        %v2508 = vpack.c.b16 %v2478, %v2477
        %v2509 = vpack.c.b16 %v2480, %v2479
        %v2510 = vpack.c.b16 %v2482, %v2481
        %v2511 = vpack.c.b16 %v2484, %v2483
        %v2512 = vpack.c.b16 %v2486, %v2485
        %v2513 = vpack.c.b16 %v2488, %v2487
        %v2514 = vpack.c.b16 %v2490, %v2489
        %v2515 = vpack.c.b16 %v2492, %v2491
        %v2516 = vpack.c.b16 %v2494, %v2493
        %v2517 = vpack.c.b16 %v2496, %v2495
        %v2518 = vpack.c.b16 %v2498, %v2497
        %v2519 = vpack.c.b16 %v2500, %v2499
        %v2520 = vpack.c.b16 %v2502, %v2501
        %v2521 = vpack.c.b16 %v2504, %v2503
        %v2522 = vpack.c.b16 %v2506, %v2505
        %2539 = vmatprep.subr.bf16.mxu0 0
        %2540 = vmatpush1.bf16.msra.mxu0 %v2514
        %2541 = vmatprep.subr.bf16.mxu0 0
        %2542 = vmatpush1.bf16.msra.mxu0 %v2513
        %2543 = vmatprep.subr.bf16.mxu0 0
        %2544 = vmatpush1.bf16.msra.mxu0 %v2512
        %2545 = vmatprep.subr.bf16.mxu0 0
        %2546 = vmatpush1.bf16.msra.mxu0 %v2511
        %2547 = vmatprep.subr.bf16.mxu0 0
        %2548 = vmatpush1.bf16.msra.mxu0 %v2510
        %2549 = vmatprep.subr.bf16.mxu0 0
        %2550 = vmatpush1.bf16.msra.mxu0 %v2509
        %2551 = vmatprep.subr.bf16.mxu0 0
        %2552 = vmatpush1.bf16.msra.mxu0 %v2508
        %2553 = vmatprep.subr.bf16.mxu0 0
        %2554 = vmatpush1.bf16.msra.mxu0 %v2507
        %2555 = vmatprep.subr.bf16.mxu0 0
        %2556 = vmatpush2.bf16.msra.mxu0 %v2522
        %2557 = vmatprep.subr.bf16.mxu0 0
        %2558 = vmatpush2.bf16.msra.mxu0 %v2521
        %2559 = vmatprep.subr.bf16.mxu0 0
        %2560 = vmatpush2.bf16.msra.mxu0 %v2520
        %2561 = vmatprep.subr.bf16.mxu0 0
        %2562 = vmatpush2.bf16.msra.mxu0 %v2519
        %2563 = vmatprep.subr.bf16.mxu0 0
        %2564 = vmatpush2.bf16.msra.mxu0 %v2518
        %2565 = vmatprep.subr.bf16.mxu0 0
        %2566 = vmatpush2.bf16.msra.mxu0 %v2517
        %2567 = vmatprep.subr.bf16.mxu0 0
        %2568 = vmatpush2.bf16.msra.mxu0 %v2516
        %2569 = vmatprep.subr.bf16.mxu0 0
        %2570 = vmatpush2.bf16.msra.mxu0 %v2515
        %2571 = vmatprep.mubr.bf16.mxu0 %v2385
        %2572 = vmatmul.mubr.bf16.gmra.mxu0 %v2384
        %v2573 = vpop.f32.mrf.mxu0
        %v2574 = vadd.f32 %v2441, %v2573
        %v2575 = vpop.f32.mrf.mxu0
        %v2576 = vpop.f32.mrf.mxu0
        %v2577 = vadd.f32 %v2441, %v2576
        %v2578 = vpop.f32.mrf.mxu0
        %2579 = vmatprep.mubr.bf16.mxu0 %v2387
        %2580 = vmatmul.mubr.bf16.gmra.mxu0 %v2386
        %v2581 = vpop.f32.mrf.mxu0
        %v2582 = vadd.f32 %v2441, %v2581
        %v2583 = vpop.f32.mrf.mxu0
        %v2584 = vpop.f32.mrf.mxu0
        %v2585 = vadd.f32 %v2441, %v2584
        %v2586 = vpop.f32.mrf.mxu0
        %2587 = vmatprep.mubr.bf16.mxu0 %v2389
        %2588 = vmatmul.mubr.bf16.gmra.mxu0 %v2388
        %v2589 = vpop.f32.mrf.mxu0
        %v2590 = vadd.f32 %v2441, %v2589
        %v2591 = vpop.f32.mrf.mxu0
        %v2592 = vpop.f32.mrf.mxu0
        %v2593 = vadd.f32 %v2441, %v2592
        %v2594 = vpop.f32.mrf.mxu0
        %2595 = vmatprep.mubr.bf16.mxu0 %v2391
        %2596 = vmatmul.mubr.bf16.gmra.mxu0 %v2390
        %v2597 = vpop.f32.mrf.mxu0
        %v2598 = vadd.f32 %v2441, %v2597
        %v2599 = vpop.f32.mrf.mxu0
        %v2600 = vpop.f32.mrf.mxu0
        %v2601 = vadd.f32 %v2441, %v2600
        %v2602 = vpop.f32.mrf.mxu0
        %2603 = vmatprep.mubr.bf16.mxu0 %v2393
        %2604 = vmatmul.mubr.bf16.gmra.mxu0 %v2392
        %v2605 = vpop.f32.mrf.mxu0
        %v2606 = vadd.f32 %v2441, %v2605
        %v2607 = vpop.f32.mrf.mxu0
        %v2608 = vpop.f32.mrf.mxu0
        %v2609 = vadd.f32 %v2441, %v2608
        %v2610 = vpop.f32.mrf.mxu0
        %2611 = vmatprep.mubr.bf16.mxu0 %v2395
        %2612 = vmatmul.mubr.bf16.gmra.mxu0 %v2394
        %v2613 = vpop.f32.mrf.mxu0
        %v2614 = vadd.f32 %v2441, %v2613
        %v2615 = vpop.f32.mrf.mxu0
        %v2616 = vpop.f32.mrf.mxu0
        %v2617 = vadd.f32 %v2441, %v2616
        %v2618 = vpop.f32.mrf.mxu0
        %2619 = vmatprep.mubr.bf16.mxu0 %v2397
        %2620 = vmatmul.mubr.bf16.gmra.mxu0 %v2396
        %v2621 = vpop.f32.mrf.mxu0
        %v2622 = vadd.f32 %v2441, %v2621
        %v2623 = vpop.f32.mrf.mxu0
        %v2624 = vpop.f32.mrf.mxu0
        %v2625 = vadd.f32 %v2441, %v2624
        %v2626 = vpop.f32.mrf.mxu0
        %2627 = vmatprep.mubr.bf16.mxu0 %v2399
        %2628 = vmatmul.mubr.bf16.gmra.mxu0 %v2398
        %v2629 = vpop.f32.mrf.mxu0
        %v2630 = vadd.f32 %v2441, %v2629
        %v2631 = vpop.f32.mrf.mxu0
        %v2632 = vpop.f32.mrf.mxu0
        %v2633 = vadd.f32 %v2441, %v2632
        %v2634 = vpop.f32.mrf.mxu0
        %2635 = vmatprep.mubr.bf16.mxu0 %v2401
        %2636 = vmatmul.mubr.bf16.gmra.mxu0 %v2400
        %v2637 = vpop.f32.mrf.mxu0
        %v2638 = vadd.f32 %v2441, %v2637
        %v2639 = vpop.f32.mrf.mxu0
        %v2640 = vpop.f32.mrf.mxu0
        %v2641 = vadd.f32 %v2441, %v2640
        %v2642 = vpop.f32.mrf.mxu0
        %2643 = vmatprep.mubr.bf16.mxu0 %v2403
        %2644 = vmatmul.mubr.bf16.gmra.mxu0 %v2402
        %v2645 = vpop.f32.mrf.mxu0
        %v2646 = vadd.f32 %v2441, %v2645
        %v2647 = vpop.f32.mrf.mxu0
        %v2648 = vpop.f32.mrf.mxu0
        %v2649 = vadd.f32 %v2441, %v2648
        %v2650 = vpop.f32.mrf.mxu0
        %2651 = vdwg.mxu0
        %2652 = vst [vmem:[%s505] sm:$0xff] %v2574
        %2653 = vst [vmem:[%s505 + $0x8] sm:$0xff] %v2577
        %2654 = vst [vmem:[%s505 + $0x10] sm:$0xff] %v2582
        %2655 = vst [vmem:[%s505 + $0x18] sm:$0xff] %v2585
        %2656 = vst [vmem:[%s505 + $0x20] sm:$0xff] %v2590
        %2657 = vst [vmem:[%s505 + $0x28] sm:$0xff] %v2593
        %2658 = vst [vmem:[%s505 + $0x30] sm:$0xff] %v2598
        %2659 = vst [vmem:[%s505 + $0x38] sm:$0xff] %v2601
        %2660 = vst [vmem:[%s505 + $0x40] sm:$0xff] %v2606
        %2661 = vst [vmem:[%s505 + $0x48] sm:$0xff] %v2609
        %2662 = vst [vmem:[%s505 + $0x50] sm:$0xff] %v2614
        %2663 = vst [vmem:[%s505 + $0x58] sm:$0xff] %v2617
        %2664 = vst [vmem:[%s505 + $0x60] sm:$0xff] %v2622
        %2665 = vst [vmem:[%s505 + $0x68] sm:$0xff] %v2625
        %2666 = vst [vmem:[%s505 + $0x70] sm:$0xff] %v2630
        %2667 = vst [vmem:[%s505 + $0x78] sm:$0xff] %v2633
        %2668 = vst [vmem:[%s505 + $0x80] sm:$0xff] %v2638
        %2669 = vst [vmem:[%s505 + $0x88] sm:$0xff] %v2641
        %2670 = vst [vmem:[%s505 + $0x90] sm:$0xff] %v2646
        %2671 = vst [vmem:[%s505 + $0x98] sm:$0xff] %v2649
        %s2672 = sand.u32 %s316, 1
        %s2673 = scalar_lea.sflag [#allocation4], %s2672
        %s2674 = sand.u32 %s316, 1
        %s2675 = smul.addr %s2674, 160
        %s2676 = scalar_lea.vmem [#allocation10], %s2675
        // Predicated region
        $region89: #{tpu_custom_call.1} parent=71 // pred_check
          %p2677 = pneg %p326
        $region90: #{tpu_custom_call.1} parent=71 // pred_check_branch
          %2679 = sbr.rel (%p2677) target = $region92
        $region91: #{tpu_custom_call.1} parent=71 // pred_region
          %s2680 = smul.u32 20, %s30
          %s2681 = ssub.s32 38, %s2680
          %p2682 = scmp.lt.s32.totalorder %s2681, 20
          %s2683 = scalar_select %p2682, %s2681, 20
          %s2684 = smul.u32 128, %s2683
          %s2686 = ssub.s32 2560, %s2684
          %2687 = vsyncadd %s2673, %s2686
          %p2688 = scmp.ne.s32.totalorder 0, %s2684
          %s2689 = smul.addr %s2680, 128
          %s2690 = scalar_lea.hbm %s13, %s2689
          %s2691 = smul.u32 8, %s2683
          %s2692 = sshll.u32 %s2676, 4
          %s2693 = int_to_ptr.vmem [resolvable:$true] %s2692
          %s2694 = sshll.u32 %s2691, 4
          %2698 = dma.vmem_to_hbm [thread:$0]  (%p2688), %s2693, %s2694, %s2690, %s2673, 128, 128, 8
        $region92: #{tpu_custom_call.1} parent=71 // pred_fallthru
          _
      $region72: #{tpu_custom_call.1} parent=5 // pred_fallthru
        _
      %p2699 = scmp.le.s32.totalorder 2, %s25
      // Predicated region
      $region93: #{tpu_custom_call.1} parent=5 // pred_check
        %p2700 = pneg %p2699
      $region94: #{tpu_custom_call.1} parent=5 // pred_check_branch
        %2702 = sbr.rel (%p2700) target = $region96
      $region95: #{tpu_custom_call.1} parent=5 // pred_region
        %s2703 = ssub.s32 %s25, 2
        // Predicated region
        $region97: #{tpu_custom_call.1} parent=95 // pred_check
          %p2704 = pneg %p332
        $region98: #{tpu_custom_call.1} parent=95 // pred_check_branch
          %2706 = sbr.rel (%p2704) target = $region100
        $region99: #{tpu_custom_call.1} parent=95 // pred_region
          %s2707 = sand.u32 %s317, 1
          %s2708 = scalar_lea.sflag [#allocation4], %s2707
          %s2709 = sand.u32 %s317, 1
          %s2710 = smul.addr %s2709, 160
          %s2711 = scalar_lea.vmem [#allocation10], %s2710
          %2712 = dma.done %s2708, 2560
        $region100: #{tpu_custom_call.1} parent=95 // pred_fallthru
          _
      $region96: #{tpu_custom_call.1} parent=5 // pred_fallthru
        _
    $region6: #{tpu_custom_call.1} parent=1 // loop_footer
      %s29 = sadd.s32 1, %s25
    $region7: #{tpu_custom_call.1} parent=1 // loop_footer_branch
      %24 = sbr.rel target = $region3
    $region8: #{tpu_custom_call.1} parent=1 // loop_exit
      _
    %2713 = vsyncpa [#allocation3], 1
    %s2714 = scalar_lea.sflag [#allocation3], 1
    %2715 = vsyncpa %s2714, 1
    %2716 = vsyncpa [#allocation6], 1
    %2717 = vsyncpa [#allocation9], 1
    %2718 = vsyncpa [#allocation4], 1
    %s2719 = scalar_lea.sflag [#allocation4], 1
    %2720 = vsyncpa %s2719, 1

// kernel: tpu_custom_call.1
$region0: #{tpu_custom_call.1}
  #allocation0 [shape = 'u32[]', space=smem, size = 0x4, offset = 0x4, fixed_abs, tag = 'smem constant byte address 0x4 - core index']
  #allocation1 [shape = 'u32[144,128]{1,0:T(1,128)}', space=vmem, size = 0x12000, scoped, tag = 'internal scratch']
  %s0 = inlined_call_operand.vmem [shape: f32[300,32], index: 0, kind: input, shape index: {}]
  %s1 = inlined_call_operand.hbm [shape: bf16[32,256], index: 1, kind: input, shape index: {}]
  %s2 = inlined_call_operand.vmem [shape: f32[1,256], index: 2, kind: input, shape index: {}]
  %s3 = inlined_call_operand.vmem [shape: bf16[256,256], index: 3, kind: input, shape index: {}]
  %s4 = inlined_call_operand.vmem [shape: f32[1,256], index: 4, kind: input, shape index: {}]
  %s5 = inlined_call_operand.hbm [shape: bf16[256,256], index: 5, kind: input, shape index: {}]
  %s6 = inlined_call_operand.vmem [shape: f32[1,256], index: 6, kind: input, shape index: {}]
  %s7 = inlined_call_operand.hbm [shape: bf16[256,256], index: 7, kind: input, shape index: {}]
  %s8 = inlined_call_operand.vmem [shape: f32[1,256], index: 8, kind: input, shape index: {}]
  %s9 = inlined_call_operand.hbm [shape: bf16[256,256], index: 9, kind: input, shape index: {}]
  %s10 = inlined_call_operand.vmem [shape: f32[1,256], index: 10, kind: input, shape index: {}]
  %s11 = inlined_call_operand.vmem [shape: bf16[256,128], index: 11, kind: input, shape index: {}]
  %s12 = inlined_call_operand.vmem [shape: f32[1,128], index: 12, kind: input, shape index: {}]
  %s13 = inlined_call_operand.hbm [shape: f32[300,128], index: 13, kind: output, shape index: {}]
  %s14 = sld [smem:[#allocation0]]
  $region101: #{tpu_custom_call.1} parent=0
    _
  %s16 = ssub.s32 1, %s14
  %s17 = scalar_select 0, %s16, %s14
  $region1: #{tpu_custom_call.1} parent=0
    #allocation2 [shape = 'u8[16384]{0}', space=vmem, size = 0x4000, scoped, tag = 'input window, operand 1, single buffered']
    #allocation3 [shape = 's32[2]{0}', space=sflag, size = 0x8, scoped, tag = 'scoped memory for tpu_custom_call.1']
    #allocation4 [shape = 's32[2]{0}', space=sflag, size = 0x8, scoped, tag = 'scoped memory for tpu_custom_call.1']
    #allocation5 [shape = 'u8[131072]{0}', space=vmem, size = 0x20000, scoped, tag = 'input window, operand 5, single buffered']
    #allocation6 [shape = 's32[1]{0}', space=sflag, size = 0x4, scoped, tag = 'scoped memory for tpu_custom_call.1']
    #allocation7 [shape = 'u8[131072]{0}', space=vmem, size = 0x20000, scoped, tag = 'input window, operand 7, single buffered']
    #allocation8 [shape = 'u8[131072]{0}', space=vmem, size = 0x20000, scoped, tag = 'input window, operand 9, single buffered']
    #allocation9 [shape = 's32[1]{0}', space=sflag, size = 0x4, scoped, tag = 'scoped memory for tpu_custom_call.1']
    #allocation10 [shape = 'u8[163840]{0}', space=vmem, size = 0x28000, scoped, tag = 'output window, operand 0']
    %18 = vsyncpa [#allocation3], 0
    %19 = vsyncpa [#allocation6], 0
    %20 = vsyncpa [#allocation9], 0
    %21 = vsyncpa [#allocation4], 0
    %s22 = scalar_lea.sflag [#allocation4], 1
    %23 = vsyncpa %s22, 0
    loop: start=0, step=1, limit=4
    $region2: #{tpu_custom_call.1} parent=1 // loop_pre_header
      _
    $region3: #{tpu_custom_call.1} parent=1 // loop_header
      %s25 = sphi 0, %s29
      %p26 = scmp.ge.s32.totalorder %s25, 4
      %s35 = sphi 0, %s37
      %s38 = sphi 0, %s35
      %s39 = sphi 0, %s38
      %s55 = sphi 0, %s39
      %s59 = sphi 0, %s59
      %s61 = sphi 0, %s59
      %s62 = sphi 0, %s61
      %s76 = sphi 0, %s62
      %s80 = sphi 0, %s80
      %s82 = sphi 0, %s80
      %s83 = sphi 0, %s82
      %s97 = sphi 0, %s83
      %s101 = sphi 0, %s101
      %s103 = sphi 0, %s101
      %s104 = sphi 0, %s103
      %s118 = sphi 0, %s104
      %s122 = sphi 0, %s122
      %s124 = sphi 0, %s122
      %s125 = sphi 0, %s124
      %s139 = sphi 0, %s125
      %s143 = sphi 0, %s143
      %s145 = sphi 0, %s143
      %s146 = sphi 0, %s145
      %s160 = sphi 0, %s146
      %s164 = sphi 0, %s164
      %s166 = sphi 0, %s164
      %s167 = sphi 0, %s166
      %s181 = sphi 0, %s167
      %s185 = sphi 0, %s185
      %s187 = sphi 0, %s185
      %s188 = sphi 0, %s187
      %s202 = sphi 0, %s188
      %s206 = sphi 0, %s206
      %s208 = sphi 0, %s206
      %s209 = sphi 0, %s208
      %s223 = sphi 0, %s209
      %s227 = sphi 0, %s227
      %s229 = sphi 0, %s227
      %s230 = sphi 0, %s229
      %s244 = sphi 0, %s230
      %s248 = sphi 0, %s248
      %s250 = sphi 0, %s248
      %s251 = sphi 0, %s250
      %s265 = sphi 0, %s251
      %s269 = sphi 0, %s269
      %s271 = sphi 0, %s269
      %s272 = sphi 0, %s271
      %s286 = sphi 0, %s272
      %s290 = sphi 0, %s290
      %s292 = sphi 0, %s290
      %s293 = sphi 0, %s292
      %s307 = sphi 0, %s293
      %s313 = sphi 0, %s315
      %s316 = sphi 0, %s313
      %s317 = sphi 0, %s316
      %s333 = sphi 0, %s317
    $region4: #{tpu_custom_call.1} parent=1 // loop_header_branch
      %28 = sbr.rel (%p26) target = $region8
    $region5: #{tpu_custom_call.1} parent=1 // loop_body
      %s30 = ssub.s32 %s25, 1
      %s31 = ssub.s32 %s25, 2
      %s32 = sadd.s32 %s25, 1
      %s33 = ssub.s32 %s25, %s32
      %p34 = scmp.eq.s32.totalorder %s33, 0
      %s36 = sadd.s32 %s35, 1
      %s37 = scalar_select %p34, %s35, %s36
      %p40 = pneg %p34
      %p41 = scmp.eq.s32.totalorder %s25, 1
      %p42 = por %p40, %p41
      %p43 = scmp.ne.s32.totalorder %s35, %s38
      %p44 = scmp.eq.s32.totalorder %s25, 0
      %p45 = por %p43, %p44
      %p46 = scmp.ne.s32.totalorder %s35, %s38
      %p47 = scmp.eq.s32.totalorder %s30, 1
      %p48 = por %p46, %p47
      %p49 = scmp.ne.s32.totalorder %s38, %s39
      %p50 = scmp.eq.s32.totalorder %s30, 0
      %p51 = por %p49, %p50
      %p52 = scmp.ne.s32.totalorder %s38, %s39
      %p53 = scmp.eq.s32.totalorder %s31, 1
      %p54 = por %p52, %p53
      %p56 = scmp.ne.s32.totalorder %s39, %s55
      %p57 = scmp.eq.s32.totalorder %s31, 0
      %p58 = por %p56, %p57
      %s60 = sadd.s32 %s59, 1
      %p63 = scmp.eq.s32.totalorder %s25, 1
      %p64 = scmp.ne.s32.totalorder %s59, %s61
      %p65 = scmp.eq.s32.totalorder %s25, 0
      %p66 = por %p64, %p65
      %p67 = scmp.ne.s32.totalorder %s59, %s61
      %p68 = scmp.eq.s32.totalorder %s30, 1
      %p69 = por %p67, %p68
      %p70 = scmp.ne.s32.totalorder %s61, %s62
      %p71 = scmp.eq.s32.totalorder %s30, 0
      %p72 = por %p70, %p71
      %p73 = scmp.ne.s32.totalorder %s61, %s62
      %p74 = scmp.eq.s32.totalorder %s31, 1
      %p75 = por %p73, %p74
      %p77 = scmp.ne.s32.totalorder %s62, %s76
      %p78 = scmp.eq.s32.totalorder %s31, 0
      %p79 = por %p77, %p78
      %s81 = sadd.s32 %s80, 1
      %p84 = scmp.eq.s32.totalorder %s25, 1
      %p85 = scmp.ne.s32.totalorder %s80, %s82
      %p86 = scmp.eq.s32.totalorder %s25, 0
      %p87 = por %p85, %p86
      %p88 = scmp.ne.s32.totalorder %s80, %s82
      %p89 = scmp.eq.s32.totalorder %s30, 1
      %p90 = por %p88, %p89
      %p91 = scmp.ne.s32.totalorder %s82, %s83
      %p92 = scmp.eq.s32.totalorder %s30, 0
      %p93 = por %p91, %p92
      %p94 = scmp.ne.s32.totalorder %s82, %s83
      %p95 = scmp.eq.s32.totalorder %s31, 1
      %p96 = por %p94, %p95
      %p98 = scmp.ne.s32.totalorder %s83, %s97
      %p99 = scmp.eq.s32.totalorder %s31, 0
      %p100 = por %p98, %p99
      %s102 = sadd.s32 %s101, 1
      %p105 = scmp.eq.s32.totalorder %s25, 1
      %p106 = scmp.ne.s32.totalorder %s101, %s103
      %p107 = scmp.eq.s32.totalorder %s25, 0
      %p108 = por %p106, %p107
      %p109 = scmp.ne.s32.totalorder %s101, %s103
      %p110 = scmp.eq.s32.totalorder %s30, 1
      %p111 = por %p109, %p110
      %p112 = scmp.ne.s32.totalorder %s103, %s104
      %p113 = scmp.eq.s32.totalorder %s30, 0
      %p114 = por %p112, %p113
      %p115 = scmp.ne.s32.totalorder %s103, %s104
      %p116 = scmp.eq.s32.totalorder %s31, 1
      %p117 = por %p115, %p116
      %p119 = scmp.ne.s32.totalorder %s104, %s118
      %p120 = scmp.eq.s32.totalorder %s31, 0
      %p121 = por %p119, %p120
      %s123 = sadd.s32 %s122, 1
      %p126 = scmp.eq.s32.totalorder %s25, 1
      %p127 = scmp.ne.s32.totalorder %s122, %s124
      %p128 = scmp.eq.s32.totalorder %s25, 0
      %p129 = por %p127, %p128
      %p130 = scmp.ne.s32.totalorder %s122, %s124
      %p131 = scmp.eq.s32.totalorder %s30, 1
      %p132 = por %p130, %p131
      %p133 = scmp.ne.s32.totalorder %s124, %s125
      %p134 = scmp.eq.s32.totalorder %s30, 0
      %p135 = por %p133, %p134
      %p136 = scmp.ne.s32.totalorder %s124, %s125
      %p137 = scmp.eq.s32.totalorder %s31, 1
      %p138 = por %p136, %p137
      %p140 = scmp.ne.s32.totalorder %s125, %s139
      %p141 = scmp.eq.s32.totalorder %s31, 0
      %p142 = por %p140, %p141
      %s144 = sadd.s32 %s143, 1
      %p147 = scmp.eq.s32.totalorder %s25, 1
      %p148 = scmp.ne.s32.totalorder %s143, %s145
      %p149 = scmp.eq.s32.totalorder %s25, 0
      %p150 = por %p148, %p149
      %p151 = scmp.ne.s32.totalorder %s143, %s145
      %p152 = scmp.eq.s32.totalorder %s30, 1
      %p153 = por %p151, %p152
      %p154 = scmp.ne.s32.totalorder %s145, %s146
      %p155 = scmp.eq.s32.totalorder %s30, 0
      %p156 = por %p154, %p155
      %p157 = scmp.ne.s32.totalorder %s145, %s146
      %p158 = scmp.eq.s32.totalorder %s31, 1
      %p159 = por %p157, %p158
      %p161 = scmp.ne.s32.totalorder %s146, %s160
      %p162 = scmp.eq.s32.totalorder %s31, 0
      %p163 = por %p161, %p162
      %s165 = sadd.s32 %s164, 1
      %p168 = scmp.eq.s32.totalorder %s25, 1
      %p169 = scmp.ne.s32.totalorder %s164, %s166
      %p170 = scmp.eq.s32.totalorder %s25, 0
      %p171 = por %p169, %p170
      %p172 = scmp.ne.s32.totalorder %s164, %s166
      %p173 = scmp.eq.s32.totalorder %s30, 1
      %p174 = por %p172, %p173
      %p175 = scmp.ne.s32.totalorder %s166, %s167
      %p176 = scmp.eq.s32.totalorder %s30, 0
      %p177 = por %p175, %p176
      %p178 = scmp.ne.s32.totalorder %s166, %s167
      %p179 = scmp.eq.s32.totalorder %s31, 1
      %p180 = por %p178, %p179
      %p182 = scmp.ne.s32.totalorder %s167, %s181
      %p183 = scmp.eq.s32.totalorder %s31, 0
      %p184 = por %p182, %p183
      %s186 = sadd.s32 %s185, 1
      %p189 = scmp.eq.s32.totalorder %s25, 1
      %p190 = scmp.ne.s32.totalorder %s185, %s187
      %p191 = scmp.eq.s32.totalorder %s25, 0
      %p192 = por %p190, %p191
      %p193 = scmp.ne.s32.totalorder %s185, %s187
      %p194 = scmp.eq.s32.totalorder %s30, 1
      %p195 = por %p193, %p194
      %p196 = scmp.ne.s32.totalorder %s187, %s188
      %p197 = scmp.eq.s32.totalorder %s30, 0
      %p198 = por %p196, %p197
      %p199 = scmp.ne.s32.totalorder %s187, %s188
      %p200 = scmp.eq.s32.totalorder %s31, 1
      %p201 = por %p199, %p200
      %p203 = scmp.ne.s32.totalorder %s188, %s202
      %p204 = scmp.eq.s32.totalorder %s31, 0
      %p205 = por %p203, %p204
      %s207 = sadd.s32 %s206, 1
      %p210 = scmp.eq.s32.totalorder %s25, 1
      %p211 = scmp.ne.s32.totalorder %s206, %s208
      %p212 = scmp.eq.s32.totalorder %s25, 0
      %p213 = por %p211, %p212
      %p214 = scmp.ne.s32.totalorder %s206, %s208
      %p215 = scmp.eq.s32.totalorder %s30, 1
      %p216 = por %p214, %p215
      %p217 = scmp.ne.s32.totalorder %s208, %s209
      %p218 = scmp.eq.s32.totalorder %s30, 0
      %p219 = por %p217, %p218
      %p220 = scmp.ne.s32.totalorder %s208, %s209
      %p221 = scmp.eq.s32.totalorder %s31, 1
      %p222 = por %p220, %p221
      %p224 = scmp.ne.s32.totalorder %s209, %s223
      %p225 = scmp.eq.s32.totalorder %s31, 0
      %p226 = por %p224, %p225
      %s228 = sadd.s32 %s227, 1
      %p231 = scmp.eq.s32.totalorder %s25, 1
      %p232 = scmp.ne.s32.totalorder %s227, %s229
      %p233 = scmp.eq.s32.totalorder %s25, 0
      %p234 = por %p232, %p233
      %p235 = scmp.ne.s32.totalorder %s227, %s229
      %p236 = scmp.eq.s32.totalorder %s30, 1
      %p237 = por %p235, %p236
      %p238 = scmp.ne.s32.totalorder %s229, %s230
      %p239 = scmp.eq.s32.totalorder %s30, 0
      %p240 = por %p238, %p239
      %p241 = scmp.ne.s32.totalorder %s229, %s230
      %p242 = scmp.eq.s32.totalorder %s31, 1
      %p243 = por %p241, %p242
      %p245 = scmp.ne.s32.totalorder %s230, %s244
      %p246 = scmp.eq.s32.totalorder %s31, 0
      %p247 = por %p245, %p246
      %s249 = sadd.s32 %s248, 1
      %p252 = scmp.eq.s32.totalorder %s25, 1
      %p253 = scmp.ne.s32.totalorder %s248, %s250
      %p254 = scmp.eq.s32.totalorder %s25, 0
      %p255 = por %p253, %p254
      %p256 = scmp.ne.s32.totalorder %s248, %s250
      %p257 = scmp.eq.s32.totalorder %s30, 1
      %p258 = por %p256, %p257
      %p259 = scmp.ne.s32.totalorder %s250, %s251
      %p260 = scmp.eq.s32.totalorder %s30, 0
      %p261 = por %p259, %p260
      %p262 = scmp.ne.s32.totalorder %s250, %s251
      %p263 = scmp.eq.s32.totalorder %s31, 1
      %p264 = por %p262, %p263
      %p266 = scmp.ne.s32.totalorder %s251, %s265
      %p267 = scmp.eq.s32.totalorder %s31, 0
      %p268 = por %p266, %p267
      %s270 = sadd.s32 %s269, 1
      %p273 = scmp.eq.s32.totalorder %s25, 1
      %p274 = scmp.ne.s32.totalorder %s269, %s271
      %p275 = scmp.eq.s32.totalorder %s25, 0
      %p276 = por %p274, %p275
      %p277 = scmp.ne.s32.totalorder %s269, %s271
      %p278 = scmp.eq.s32.totalorder %s30, 1
      %p279 = por %p277, %p278
      %p280 = scmp.ne.s32.totalorder %s271, %s272
      %p281 = scmp.eq.s32.totalorder %s30, 0
      %p282 = por %p280, %p281
      %p283 = scmp.ne.s32.totalorder %s271, %s272
      %p284 = scmp.eq.s32.totalorder %s31, 1
      %p285 = por %p283, %p284
      %p287 = scmp.ne.s32.totalorder %s272, %s286
      %p288 = scmp.eq.s32.totalorder %s31, 0
      %p289 = por %p287, %p288
      %s291 = sadd.s32 %s290, 1
      %p294 = scmp.eq.s32.totalorder %s25, 1
      %p295 = scmp.ne.s32.totalorder %s290, %s292
      %p296 = scmp.eq.s32.totalorder %s25, 0
      %p297 = por %p295, %p296
      %p298 = scmp.ne.s32.totalorder %s290, %s292
      %p299 = scmp.eq.s32.totalorder %s30, 1
      %p300 = por %p298, %p299
      %p301 = scmp.ne.s32.totalorder %s292, %s293
      %p302 = scmp.eq.s32.totalorder %s30, 0
      %p303 = por %p301, %p302
      %p304 = scmp.ne.s32.totalorder %s292, %s293
      %p305 = scmp.eq.s32.totalorder %s31, 1
      %p306 = por %p304, %p305
      %p308 = scmp.ne.s32.totalorder %s293, %s307
      %p309 = scmp.eq.s32.totalorder %s31, 0
      %p310 = por %p308, %p309
      %s311 = ssub.s32 %s25, %s32
      %p312 = scmp.eq.s32.totalorder %s311, 0
      %s314 = sadd.s32 %s313, 1
      %s315 = scalar_select %p312, %s313, %s314
      %p318 = pneg %p312
      %p319 = scmp.eq.s32.totalorder %s25, 1
      %p320 = por %p318, %p319
      %p321 = scmp.ne.s32.totalorder %s313, %s316
      %p322 = scmp.eq.s32.totalorder %s25, 0
      %p323 = por %p321, %p322
      %p324 = scmp.ne.s32.totalorder %s313, %s316
      %p325 = scmp.eq.s32.totalorder %s30, 1
      %p326 = por %p324, %p325
      %p327 = scmp.ne.s32.totalorder %s316, %s317
      %p328 = scmp.eq.s32.totalorder %s30, 0
      %p329 = por %p327, %p328
      %p330 = scmp.ne.s32.totalorder %s316, %s317
      %p331 = scmp.eq.s32.totalorder %s31, 1
      %p332 = por %p330, %p331
      %p334 = scmp.ne.s32.totalorder %s317, %s333
      %p335 = scmp.eq.s32.totalorder %s31, 0
      %p336 = por %p334, %p335
      %p337 = scmp.le.s32.totalorder 1, %s25
      %p338 = scmp.lt.s32.totalorder %s25, 3
      %p339 = pnand %p337, %p338
      %p340 = pneg %p339
      // Predicated region
      $region9: #{tpu_custom_call.1} parent=5 // pred_check
        _
      $region10: #{tpu_custom_call.1} parent=5 // pred_check_branch
        %342 = sbr.rel (%p339) target = $region12
      $region11: #{tpu_custom_call.1} parent=5 // pred_region
        %s343 = ssub.s32 %s25, 1
        // Predicated region
        $region13: #{tpu_custom_call.1} parent=11 // pred_check
          %p344 = pneg %p72
        $region14: #{tpu_custom_call.1} parent=11 // pred_check_branch
          %346 = sbr.rel (%p344) target = $region16
        $region15: #{tpu_custom_call.1} parent=11 // pred_region
          %s348 = ssub.s32 512, 512
          %349 = vsyncadd [#allocation3], %s348
          %s350 = sshll.u32 [#allocation2], 4
          %s351 = int_to_ptr.vmem [resolvable:$true] %s350
          %356 = dma.hbm_to_vmem [thread:$0]  %s1, 512, %s351, [#allocation3], 128, 128, 8
        $region16: #{tpu_custom_call.1} parent=11 // pred_fallthru
          _
        // Predicated region
        $region17: #{tpu_custom_call.1} parent=11 // pred_check
          %p357 = pneg %p93
        $region18: #{tpu_custom_call.1} parent=11 // pred_check_branch
          %359 = sbr.rel (%p357) target = $region20
        $region19: #{tpu_custom_call.1} parent=11 // pred_region
          _
        $region20: #{tpu_custom_call.1} parent=11 // pred_fallthru
          _
        // Predicated region
        $region21: #{tpu_custom_call.1} parent=11 // pred_check
          %p360 = pneg %p114
        $region22: #{tpu_custom_call.1} parent=11 // pred_check_branch
          %362 = sbr.rel (%p360) target = $region24
        $region23: #{tpu_custom_call.1} parent=11 // pred_region
          _
        $region24: #{tpu_custom_call.1} parent=11 // pred_fallthru
          _
        // Predicated region
        $region25: #{tpu_custom_call.1} parent=11 // pred_check
          %p363 = pneg %p135
        $region26: #{tpu_custom_call.1} parent=11 // pred_check_branch
          %365 = sbr.rel (%p363) target = $region28
        $region27: #{tpu_custom_call.1} parent=11 // pred_region
          _
        $region28: #{tpu_custom_call.1} parent=11 // pred_fallthru
          _
        // Predicated region
        $region29: #{tpu_custom_call.1} parent=11 // pred_check
          %p366 = pneg %p156
        $region30: #{tpu_custom_call.1} parent=11 // pred_check_branch
          %368 = sbr.rel (%p366) target = $region32
        $region31: #{tpu_custom_call.1} parent=11 // pred_region
          %s370 = ssub.s32 4096, 4096
          %371 = vsyncadd [#allocation6], %s370
          %s372 = sshll.u32 [#allocation5], 4
          %s373 = int_to_ptr.vmem [resolvable:$true] %s372
          %378 = dma.hbm_to_vmem [thread:$0]  %s5, 4096, %s373, [#allocation6], 128, 128, 8
        $region32: #{tpu_custom_call.1} parent=11 // pred_fallthru
          _
        // Predicated region
        $region33: #{tpu_custom_call.1} parent=11 // pred_check
          %p379 = pneg %p177
        $region34: #{tpu_custom_call.1} parent=11 // pred_check_branch
          %381 = sbr.rel (%p379) target = $region36
        $region35: #{tpu_custom_call.1} parent=11 // pred_region
          _
        $region36: #{tpu_custom_call.1} parent=11 // pred_fallthru
          _
        // Predicated region
        $region37: #{tpu_custom_call.1} parent=11 // pred_check
          %p382 = pneg %p198
        $region38: #{tpu_custom_call.1} parent=11 // pred_check_branch
          %384 = sbr.rel (%p382) target = $region40
        $region39: #{tpu_custom_call.1} parent=11 // pred_region
          %s386 = ssub.s32 4096, 4096
          %387 = vsyncadd [#allocation6], %s386
          %s388 = sshll.u32 [#allocation7], 4
          %s389 = int_to_ptr.vmem [resolvable:$true] %s388
          %394 = dma.hbm_to_vmem [thread:$0]  %s7, 4096, %s389, [#allocation6], 128, 128, 8
        $region40: #{tpu_custom_call.1} parent=11 // pred_fallthru
          _
        // Predicated region
        $region41: #{tpu_custom_call.1} parent=11 // pred_check
          %p395 = pneg %p219
        $region42: #{tpu_custom_call.1} parent=11 // pred_check_branch
          %397 = sbr.rel (%p395) target = $region44
        $region43: #{tpu_custom_call.1} parent=11 // pred_region
          _
        $region44: #{tpu_custom_call.1} parent=11 // pred_fallthru
          _
        // Predicated region
        $region45: #{tpu_custom_call.1} parent=11 // pred_check
          %p398 = pneg %p240
        $region46: #{tpu_custom_call.1} parent=11 // pred_check_branch
          %400 = sbr.rel (%p398) target = $region48
        $region47: #{tpu_custom_call.1} parent=11 // pred_region
          %s402 = ssub.s32 4096, 4096
          %403 = vsyncadd [#allocation9], %s402
          %s404 = sshll.u32 [#allocation8], 4
          %s405 = int_to_ptr.vmem [resolvable:$true] %s404
          %410 = dma.hbm_to_vmem [thread:$0]  %s9, 4096, %s405, [#allocation9], 128, 128, 8
        $region48: #{tpu_custom_call.1} parent=11 // pred_fallthru
          _
        // Predicated region
        $region49: #{tpu_custom_call.1} parent=11 // pred_check
          %p411 = pneg %p261
        $region50: #{tpu_custom_call.1} parent=11 // pred_check_branch
          %413 = sbr.rel (%p411) target = $region52
        $region51: #{tpu_custom_call.1} parent=11 // pred_region
          _
        $region52: #{tpu_custom_call.1} parent=11 // pred_fallthru
          _
        // Predicated region
        $region53: #{tpu_custom_call.1} parent=11 // pred_check
          %p414 = pneg %p282
        $region54: #{tpu_custom_call.1} parent=11 // pred_check_branch
          %416 = sbr.rel (%p414) target = $region56
        $region55: #{tpu_custom_call.1} parent=11 // pred_region
          _
        $region56: #{tpu_custom_call.1} parent=11 // pred_fallthru
          _
        // Predicated region
        $region57: #{tpu_custom_call.1} parent=11 // pred_check
          %p417 = pneg %p303
        $region58: #{tpu_custom_call.1} parent=11 // pred_check_branch
          %419 = sbr.rel (%p417) target = $region60
        $region59: #{tpu_custom_call.1} parent=11 // pred_region
          _
        $region60: #{tpu_custom_call.1} parent=11 // pred_fallthru
          _
      $region12: #{tpu_custom_call.1} parent=5 // pred_fallthru
        _
      %p420 = scmp.lt.s32.totalorder %s25, 2
      // Predicated region
      $region61: #{tpu_custom_call.1} parent=5 // pred_check
        %p421 = pneg %p420
      $region62: #{tpu_custom_call.1} parent=5 // pred_check_branch
        %423 = sbr.rel (%p421) target = $region64
      $region63: #{tpu_custom_call.1} parent=5 // pred_region
        // Predicated region
        $region65: #{tpu_custom_call.1} parent=63 // pred_check
          %p424 = pneg %p45
        $region66: #{tpu_custom_call.1} parent=63 // pred_check_branch
          %426 = sbr.rel (%p424) target = $region68
        $region67: #{tpu_custom_call.1} parent=63 // pred_region
          %s427 = smul.u32 20, %s25
          %s428 = ssub.s32 38, %s427
          %p429 = scmp.lt.s32.totalorder %s428, 20
          %s430 = scalar_select %p429, %s428, 20
          %s431 = smul.u32 128, %s430
          %p432 = scmp.lt.s32.totalorder %s427, 37
          %s433 = scalar_select %p432, %s427, 37
          %s434 = smul.addr %s433, 8
          %s435 = scalar_lea.vmem %s0, %s434
          %s436 = smul.u32 20, %s25
          %s437 = ssub.s32 38, %s436
          %p438 = scmp.lt.s32.totalorder %s437, 20
          %s439 = scalar_select %p438, %s437, 20
          %s440 = smul.u32 128, %s439
        $region68: #{tpu_custom_call.1} parent=63 // pred_fallthru
          _
      $region64: #{tpu_custom_call.1} parent=5 // pred_fallthru
        _
      %p441 = scmp.le.s32.totalorder 1, %s25
      %p442 = scmp.lt.s32.totalorder %s25, 3
      %p443 = pnand %p441, %p442
      %p444 = pneg %p443
      // Predicated region
      $region69: #{tpu_custom_call.1} parent=5 // pred_check
        _
      $region70: #{tpu_custom_call.1} parent=5 // pred_check_branch
        %446 = sbr.rel (%p443) target = $region72
      $region71: #{tpu_custom_call.1} parent=5 // pred_region
        %s447 = ssub.s32 %s25, 1
        // Predicated region
        $region73: #{tpu_custom_call.1} parent=71 // pred_check
          %p448 = pneg %p72
        $region74: #{tpu_custom_call.1} parent=71 // pred_check_branch
          %450 = sbr.rel (%p448) target = $region76
        $region75: #{tpu_custom_call.1} parent=71 // pred_region
          %451 = dma.done [#allocation3], 512
        $region76: #{tpu_custom_call.1} parent=71 // pred_fallthru
          _
        // Predicated region
        $region77: #{tpu_custom_call.1} parent=71 // pred_check
          %p452 = pneg %p156
        $region78: #{tpu_custom_call.1} parent=71 // pred_check_branch
          %454 = sbr.rel (%p452) target = $region80
        $region79: #{tpu_custom_call.1} parent=71 // pred_region
          %455 = dma.done [#allocation6], 4096
        $region80: #{tpu_custom_call.1} parent=71 // pred_fallthru
          _
        // Predicated region
        $region81: #{tpu_custom_call.1} parent=71 // pred_check
          %p456 = pneg %p198
        $region82: #{tpu_custom_call.1} parent=71 // pred_check_branch
          %458 = sbr.rel (%p456) target = $region84
        $region83: #{tpu_custom_call.1} parent=71 // pred_region
          %459 = dma.done [#allocation6], 4096
        $region84: #{tpu_custom_call.1} parent=71 // pred_fallthru
          _
        // Predicated region
        $region85: #{tpu_custom_call.1} parent=71 // pred_check
          %p460 = pneg %p240
        $region86: #{tpu_custom_call.1} parent=71 // pred_check_branch
          %462 = sbr.rel (%p460) target = $region88
        $region87: #{tpu_custom_call.1} parent=71 // pred_region
          %463 = dma.done [#allocation9], 4096
        $region88: #{tpu_custom_call.1} parent=71 // pred_fallthru
          _
        %s464 = smul.u32 20, %s30
        %s465 = ssub.s32 38, %s464
        %p466 = scmp.lt.s32.totalorder %s465, 20
        %s467 = scalar_select %p466, %s465, 20
        %s468 = smul.u32 128, %s467
        %p469 = scmp.lt.s32.totalorder %s464, 37
        %s470 = scalar_select %p469, %s464, 37
        %s471 = smul.addr %s470, 8
        %s472 = scalar_lea.vmem %s0, %s471
        %p473 = pneg %p51
        %p474 = pneg %p48
        %p475 = pneg %p72
        %p476 = pneg %p69
        %p477 = pneg %p93
        %p478 = pneg %p90
        %p479 = pneg %p114
        %p480 = pneg %p111
        %p481 = pneg %p135
        %p482 = pneg %p132
        %p483 = pneg %p156
        %p484 = pneg %p153
        %p485 = pneg %p177
        %p486 = pneg %p174
        %p487 = pneg %p198
        %p488 = pneg %p195
        %p489 = pneg %p219
        %p490 = pneg %p216
        %p491 = pneg %p240
        %p492 = pneg %p237
        %p493 = pneg %p261
        %p494 = pneg %p258
        %p495 = pneg %p282
        %p496 = pneg %p279
        %p497 = pneg %p303
        %p498 = pneg %p300
        %p499 = pneg %p329
        %p500 = pneg %p326
        %s501 = sand.u32 %s316, 1
        %s502 = scalar_lea.sflag [#allocation4], %s501
        %s503 = sand.u32 %s316, 1
        %s504 = smul.addr %s503, 160
        %s505 = scalar_lea.vmem [#allocation10], %s504
        %s506 = smul.u32 20, %s30
        %s507 = ssub.s32 38, %s506
        %p508 = scmp.lt.s32.totalorder %s507, 20
        %s509 = scalar_select %p508, %s507, 20
        %s510 = smul.u32 128, %s509
        %p511 = scmp.lt.s32.totalorder %s506, 37
        %s512 = scalar_select %p511, %s506, 37
        %s513 = smul.addr %s512, 8
        %s514 = scalar_lea.vmem %s0, %s513
        %s515 = smul.u32 20, %s30
        %s516 = ssub.s32 38, %s515
        %p517 = scmp.lt.s32.totalorder %s516, 20
        %s518 = scalar_select %p517, %s516, 20
        %s519 = smul.u32 128, %s518
        %s520 = smul.u32 20, %s30
        %s521 = ssub.s32 38, %s520
        %p522 = scmp.lt.s32.totalorder %s521, 20
        %s523 = scalar_select %p522, %s521, 20
        %s524 = smul.u32 128, %s523
        %v526 = vld [vmem:[%s514] sm:$0xff]
        %v527 = vld [vmem:[%s514 + $0x8] sm:$0xff]
        %v528 = vld [vmem:[%s514 + $0x10] sm:$0xff]
        %v529 = vld [vmem:[%s514 + $0x18] sm:$0xff]
        %v530 = vld [vmem:[%s514 + $0x20] sm:$0xff]
        %v531 = vld [vmem:[%s514 + $0x28] sm:$0xff]
        %v532 = vld [vmem:[%s514 + $0x30] sm:$0xff]
        %v533 = vld [vmem:[%s514 + $0x38] sm:$0xff]
        %v534 = vld [vmem:[%s514 + $0x40] sm:$0xff]
        %v535 = vld [vmem:[%s514 + $0x48] sm:$0xff]
        %v536 = vld [vmem:[%s514 + $0x50] sm:$0xff]
        %v537 = vld [vmem:[%s514 + $0x58] sm:$0xff]
        %v538 = vld [vmem:[%s514 + $0x60] sm:$0xff]
        %v539 = vld [vmem:[%s514 + $0x68] sm:$0xff]
        %v540 = vld [vmem:[%s514 + $0x70] sm:$0xff]
        %v541 = vld [vmem:[%s514 + $0x78] sm:$0xff]
        %v542 = vld [vmem:[%s514 + $0x80] sm:$0xff]
        %v543 = vld [vmem:[%s514 + $0x88] sm:$0xff]
        %v544 = vld [vmem:[%s514 + $0x90] sm:$0xff]
        %v545 = vld [vmem:[%s514 + $0x98] sm:$0xff]
        %v546 = vpack.c.bf16 %v527, %v526
        %v547 = vpack.c.bf16 %v529, %v528
        %v548 = vpack.c.bf16 %v531, %v530
        %v549 = vpack.c.bf16 %v533, %v532
        %v550 = vpack.c.bf16 %v535, %v534
        %v551 = vpack.c.bf16 %v537, %v536
        %v552 = vpack.c.bf16 %v539, %v538
        %v553 = vpack.c.bf16 %v541, %v540
        %v554 = vpack.c.bf16 %v543, %v542
        %v555 = vpack.c.bf16 %v545, %v544
        %v556 = vld [vmem:[#allocation2] sm:$0xff]
        %v557 = vld [vmem:[#allocation2 + $0x8] sm:$0xff]
        %v558 = vld [vmem:[#allocation2 + $0x10] sm:$0xff]
        %v559 = vld [vmem:[#allocation2 + $0x18] sm:$0xff]
        %v560 = vld [vmem:[%s2] sm:$0x3]
        %v562 = vlaneseq
        %v563 = vshrl.u32 %v562, 7
        %v564 = vsub.s32 0, %v563
        %v565 = vrot.slane %v560, %v564
        %v566 = vlaneseq
        %v567 = vshrl.u32 %v566, 7
        %v568 = vsub.s32 1, %v567
        %v569 = vrot.slane %v560, %v568
        %v576 = vunpack.c.l.b16 %v556
        %v577 = vunpack.c.h.b16 %v556
        %v578 = vunpack.c.l.b16 %v557
        %v579 = vunpack.c.h.b16 %v557
        %v580 = vunpack.c.l.b16 %v558
        %v581 = vunpack.c.h.b16 %v558
        %v582 = vunpack.c.l.b16 %v559
        %v583 = vunpack.c.h.b16 %v559
        %v584 = vpack.c.b16 %v578, %v576
        %v585 = vpack.c.b16 %v579, %v577
        %v586 = vpack.c.b16 %v582, %v580
        %v587 = vpack.c.b16 %v583, %v581
        %vm592 = vcmask 261120
        %v594 = vsel %vm592, %v546, 0
        %v597 = vsel %vm592, %v547, 0
        %v600 = vsel %vm592, %v548, 0
        %v603 = vsel %vm592, %v549, 0
        %v606 = vsel %vm592, %v550, 0
        %v609 = vsel %vm592, %v551, 0
        %v612 = vsel %vm592, %v552, 0
        %v615 = vsel %vm592, %v553, 0
        %v618 = vsel %vm592, %v554, 0
        %v621 = vsel %vm592, %v555, 0
        %623 = vmatprep.subr.bf16.mxu0 0
        %624 = vmatpush1.bf16.msra.mxu0 0
        %625 = vmatprep.subr.bf16.mxu0 0
        %626 = vmatpush1.bf16.msra.mxu0 0
        %627 = vmatprep.subr.bf16.mxu0 0
        %628 = vmatpush1.bf16.msra.mxu0 0
        %629 = vmatprep.subr.bf16.mxu0 0
        %630 = vmatpush1.bf16.msra.mxu0 0
        %631 = vmatprep.subr.bf16.mxu0 0
        %632 = vmatpush1.bf16.msra.mxu0 0
        %633 = vmatprep.subr.bf16.mxu0 0
        %634 = vmatpush1.bf16.msra.mxu0 0
        %635 = vmatprep.subr.bf16.mxu0 %v587
        %636 = vmatpush1.bf16.msra.mxu0 %v586
        %637 = vmatprep.subr.bf16.mxu0 %v585
        %638 = vmatpush1.bf16.msra.mxu0 %v584
        %639 = vmatprep.subr.bf16.mxu0 0
        %640 = vmatpush2.bf16.msra.mxu0 0
        %641 = vmatprep.subr.bf16.mxu0 0
        %642 = vmatpush2.bf16.msra.mxu0 0
        %643 = vmatprep.subr.bf16.mxu0 0
        %644 = vmatpush2.bf16.msra.mxu0 0
        %645 = vmatprep.subr.bf16.mxu0 0
        %646 = vmatpush2.bf16.msra.mxu0 0
        %647 = vmatprep.subr.bf16.mxu0 0
        %648 = vmatpush2.bf16.msra.mxu0 0
        %649 = vmatprep.subr.bf16.mxu0 0
        %650 = vmatpush2.bf16.msra.mxu0 0
        %651 = vmatprep.subr.bf16.mxu0 0
        %652 = vmatpush2.bf16.msra.mxu0 0
        %653 = vmatprep.subr.bf16.mxu0 0
        %654 = vmatpush2.bf16.msra.mxu0 0
        %655 = vmatprep.mubr.bf16.mxu0 0
        %656 = vmatmul.mubr.bf16.gmra.mxu0 %v594
        %v657 = vpop.f32.mrf.mxu0
        %v658 = vadd.f32 %v565, %v657
        %v659 = vpop.f32.mrf.mxu0
        %v660 = vadd.f32 %v569, %v659
        %v661 = vpop.f32.mrf.mxu0
        %v662 = vadd.f32 %v565, %v661
        %v663 = vpop.f32.mrf.mxu0
        %v664 = vadd.f32 %v569, %v663
        %665 = vmatprep.mubr.bf16.mxu0 0
        %666 = vmatmul.mubr.bf16.gmra.mxu0 %v597
        %v667 = vpop.f32.mrf.mxu0
        %v668 = vadd.f32 %v565, %v667
        %v669 = vpop.f32.mrf.mxu0
        %v670 = vadd.f32 %v569, %v669
        %v671 = vpop.f32.mrf.mxu0
        %v672 = vadd.f32 %v565, %v671
        %v673 = vpop.f32.mrf.mxu0
        %v674 = vadd.f32 %v569, %v673
        %675 = vmatprep.mubr.bf16.mxu0 0
        %676 = vmatmul.mubr.bf16.gmra.mxu0 %v600
        %v677 = vpop.f32.mrf.mxu0
        %v678 = vadd.f32 %v565, %v677
        %v679 = vpop.f32.mrf.mxu0
        %v680 = vadd.f32 %v569, %v679
        %v681 = vpop.f32.mrf.mxu0
        %v682 = vadd.f32 %v565, %v681
        %v683 = vpop.f32.mrf.mxu0
        %v684 = vadd.f32 %v569, %v683
        %685 = vmatprep.mubr.bf16.mxu0 0
        %686 = vmatmul.mubr.bf16.gmra.mxu0 %v603
        %v687 = vpop.f32.mrf.mxu0
        %v688 = vadd.f32 %v565, %v687
        %v689 = vpop.f32.mrf.mxu0
        %v690 = vadd.f32 %v569, %v689
        %v691 = vpop.f32.mrf.mxu0
        %v692 = vadd.f32 %v565, %v691
        %v693 = vpop.f32.mrf.mxu0
        %v694 = vadd.f32 %v569, %v693
        %695 = vmatprep.mubr.bf16.mxu0 0
        %696 = vmatmul.mubr.bf16.gmra.mxu0 %v606
        %v697 = vpop.f32.mrf.mxu0
        %v698 = vadd.f32 %v565, %v697
        %v699 = vpop.f32.mrf.mxu0
        %v700 = vadd.f32 %v569, %v699
        %v701 = vpop.f32.mrf.mxu0
        %v702 = vadd.f32 %v565, %v701
        %v703 = vpop.f32.mrf.mxu0
        %v704 = vadd.f32 %v569, %v703
        %705 = vmatprep.mubr.bf16.mxu0 0
        %706 = vmatmul.mubr.bf16.gmra.mxu0 %v609
        %v707 = vpop.f32.mrf.mxu0
        %v708 = vadd.f32 %v565, %v707
        %v709 = vpop.f32.mrf.mxu0
        %v710 = vadd.f32 %v569, %v709
        %v711 = vpop.f32.mrf.mxu0
        %v712 = vadd.f32 %v565, %v711
        %v713 = vpop.f32.mrf.mxu0
        %v714 = vadd.f32 %v569, %v713
        %715 = vmatprep.mubr.bf16.mxu0 0
        %716 = vmatmul.mubr.bf16.gmra.mxu0 %v612
        %v717 = vpop.f32.mrf.mxu0
        %v718 = vadd.f32 %v565, %v717
        %v719 = vpop.f32.mrf.mxu0
        %v720 = vadd.f32 %v569, %v719
        %v721 = vpop.f32.mrf.mxu0
        %v722 = vadd.f32 %v565, %v721
        %v723 = vpop.f32.mrf.mxu0
        %v724 = vadd.f32 %v569, %v723
        %725 = vmatprep.mubr.bf16.mxu0 0
        %726 = vmatmul.mubr.bf16.gmra.mxu0 %v615
        %v727 = vpop.f32.mrf.mxu0
        %v728 = vadd.f32 %v565, %v727
        %v729 = vpop.f32.mrf.mxu0
        %v730 = vadd.f32 %v569, %v729
        %v731 = vpop.f32.mrf.mxu0
        %v732 = vadd.f32 %v565, %v731
        %v733 = vpop.f32.mrf.mxu0
        %v734 = vadd.f32 %v569, %v733
        %735 = vmatprep.mubr.bf16.mxu0 0
        %736 = vmatmul.mubr.bf16.gmra.mxu0 %v618
        %v737 = vpop.f32.mrf.mxu0
        %v738 = vadd.f32 %v565, %v737
        %v739 = vpop.f32.mrf.mxu0
        %v740 = vadd.f32 %v569, %v739
        %v741 = vpop.f32.mrf.mxu0
        %v742 = vadd.f32 %v565, %v741
        %v743 = vpop.f32.mrf.mxu0
        %v744 = vadd.f32 %v569, %v743
        %745 = vmatprep.mubr.bf16.mxu0 0
        %746 = vmatmul.mubr.bf16.gmra.mxu0 %v621
        %v747 = vpop.f32.mrf.mxu0
        %v748 = vadd.f32 %v565, %v747
        %v749 = vpop.f32.mrf.mxu0
        %v750 = vadd.f32 %v569, %v749
        %v751 = vpop.f32.mrf.mxu0
        %v752 = vadd.f32 %v565, %v751
        %v753 = vpop.f32.mrf.mxu0
        %v754 = vadd.f32 %v569, %v753
        %755 = vdwg.mxu0
        %v756 = vmax.f32 %v658, 0.0
        %v757 = vmax.f32 %v660, 0.0
        %v758 = vmax.f32 %v662, 0.0
        %v759 = vmax.f32 %v664, 0.0
        %v760 = vmax.f32 %v668, 0.0
        %v761 = vmax.f32 %v670, 0.0
        %v762 = vmax.f32 %v672, 0.0
        %v763 = vmax.f32 %v674, 0.0
        %v764 = vmax.f32 %v678, 0.0
        %v765 = vmax.f32 %v680, 0.0
        %v766 = vmax.f32 %v682, 0.0
        %v767 = vmax.f32 %v684, 0.0
        %v768 = vmax.f32 %v688, 0.0
        %v769 = vmax.f32 %v690, 0.0
        %v770 = vmax.f32 %v692, 0.0
        %v771 = vmax.f32 %v694, 0.0
        %v772 = vmax.f32 %v698, 0.0
        %v773 = vmax.f32 %v700, 0.0
        %v774 = vmax.f32 %v702, 0.0
        %v775 = vmax.f32 %v704, 0.0
        %v776 = vmax.f32 %v708, 0.0
        %v777 = vmax.f32 %v710, 0.0
        %v778 = vmax.f32 %v712, 0.0
        %v779 = vmax.f32 %v714, 0.0
        %v780 = vmax.f32 %v718, 0.0
        %v781 = vmax.f32 %v720, 0.0
        %v782 = vmax.f32 %v722, 0.0
        %v783 = vmax.f32 %v724, 0.0
        %v784 = vmax.f32 %v728, 0.0
        %v785 = vmax.f32 %v730, 0.0
        %v786 = vmax.f32 %v732, 0.0
        %v787 = vmax.f32 %v734, 0.0
        %v788 = vmax.f32 %v738, 0.0
        %v789 = vmax.f32 %v740, 0.0
        %v790 = vmax.f32 %v742, 0.0
        %v791 = vmax.f32 %v744, 0.0
        %v792 = vmax.f32 %v748, 0.0
        %v793 = vmax.f32 %v750, 0.0
        %v794 = vmax.f32 %v752, 0.0
        %v795 = vmax.f32 %v754, 0.0
        %v796 = vpack.c.bf16 %v758, %v756
        %v797 = vpack.c.bf16 %v759, %v757
        %v798 = vpack.c.bf16 %v762, %v760
        %v799 = vpack.c.bf16 %v763, %v761
        %v800 = vpack.c.bf16 %v766, %v764
        %v801 = vpack.c.bf16 %v767, %v765
        %v802 = vpack.c.bf16 %v770, %v768
        %v803 = vpack.c.bf16 %v771, %v769
        %v804 = vpack.c.bf16 %v774, %v772
        %v805 = vpack.c.bf16 %v775, %v773
        %v806 = vpack.c.bf16 %v778, %v776
        %v807 = vpack.c.bf16 %v779, %v777
        %v808 = vpack.c.bf16 %v782, %v780
        %v809 = vpack.c.bf16 %v783, %v781
        %v810 = vpack.c.bf16 %v786, %v784
        %v811 = vpack.c.bf16 %v787, %v785
        %v812 = vpack.c.bf16 %v790, %v788
        %v813 = vpack.c.bf16 %v791, %v789
        %v814 = vpack.c.bf16 %v794, %v792
        %v815 = vpack.c.bf16 %v795, %v793
        %v816 = vld [vmem:[%s3] sm:$0xff]
        %v817 = vld [vmem:[%s3 + $0x8] sm:$0xff]
        %v818 = vld [vmem:[%s3 + $0x10] sm:$0xff]
        %v819 = vld [vmem:[%s3 + $0x18] sm:$0xff]
        %v820 = vld [vmem:[%s3 + $0x20] sm:$0xff]
        %v821 = vld [vmem:[%s3 + $0x28] sm:$0xff]
        %v822 = vld [vmem:[%s3 + $0x30] sm:$0xff]
        %v823 = vld [vmem:[%s3 + $0x38] sm:$0xff]
        %v824 = vld [vmem:[%s3 + $0x40] sm:$0xff]
        %v825 = vld [vmem:[%s3 + $0x48] sm:$0xff]
        %v826 = vld [vmem:[%s3 + $0x50] sm:$0xff]
        %v827 = vld [vmem:[%s3 + $0x58] sm:$0xff]
        %v828 = vld [vmem:[%s3 + $0x60] sm:$0xff]
        %v829 = vld [vmem:[%s3 + $0x68] sm:$0xff]
        %v830 = vld [vmem:[%s3 + $0x70] sm:$0xff]
        %v831 = vld [vmem:[%s3 + $0x78] sm:$0xff]
        %v832 = vld [vmem:[%s3 + $0x80] sm:$0xff]
        %v833 = vld [vmem:[%s3 + $0x88] sm:$0xff]
        %v834 = vld [vmem:[%s3 + $0x90] sm:$0xff]
        %v835 = vld [vmem:[%s3 + $0x98] sm:$0xff]
        %v836 = vld [vmem:[%s3 + $0xa0] sm:$0xff]
        %v837 = vld [vmem:[%s3 + $0xa8] sm:$0xff]
        %v838 = vld [vmem:[%s3 + $0xb0] sm:$0xff]
        %v839 = vld [vmem:[%s3 + $0xb8] sm:$0xff]
        %v840 = vld [vmem:[%s3 + $0xc0] sm:$0xff]
        %v841 = vld [vmem:[%s3 + $0xc8] sm:$0xff]
        %v842 = vld [vmem:[%s3 + $0xd0] sm:$0xff]
        %v843 = vld [vmem:[%s3 + $0xd8] sm:$0xff]
        %v844 = vld [vmem:[%s3 + $0xe0] sm:$0xff]
        %v845 = vld [vmem:[%s3 + $0xe8] sm:$0xff]
        %v846 = vld [vmem:[%s3 + $0xf0] sm:$0xff]
        %v847 = vld [vmem:[%s3 + $0xf8] sm:$0xff]
        %v848 = vld [vmem:[%s4] sm:$0x3]
        %v850 = vlaneseq
        %v851 = vshrl.u32 %v850, 7
        %v852 = vsub.s32 0, %v851
        %v853 = vrot.slane %v848, %v852
        %v854 = vlaneseq
        %v855 = vshrl.u32 %v854, 7
        %v856 = vsub.s32 1, %v855
        %v857 = vrot.slane %v848, %v856
        %v892 = vunpack.c.l.b16 %v816
        %v893 = vunpack.c.h.b16 %v816
        %v894 = vunpack.c.l.b16 %v817
        %v895 = vunpack.c.h.b16 %v817
        %v896 = vunpack.c.l.b16 %v818
        %v897 = vunpack.c.h.b16 %v818
        %v898 = vunpack.c.l.b16 %v819
        %v899 = vunpack.c.h.b16 %v819
        %v900 = vunpack.c.l.b16 %v820
        %v901 = vunpack.c.h.b16 %v820
        %v902 = vunpack.c.l.b16 %v821
        %v903 = vunpack.c.h.b16 %v821
        %v904 = vunpack.c.l.b16 %v822
        %v905 = vunpack.c.h.b16 %v822
        %v906 = vunpack.c.l.b16 %v823
        %v907 = vunpack.c.h.b16 %v823
        %v908 = vunpack.c.l.b16 %v824
        %v909 = vunpack.c.h.b16 %v824
        %v910 = vunpack.c.l.b16 %v825
        %v911 = vunpack.c.h.b16 %v825
        %v912 = vunpack.c.l.b16 %v826
        %v913 = vunpack.c.h.b16 %v826
        %v914 = vunpack.c.l.b16 %v827
        %v915 = vunpack.c.h.b16 %v827
        %v916 = vunpack.c.l.b16 %v828
        %v917 = vunpack.c.h.b16 %v828
        %v918 = vunpack.c.l.b16 %v829
        %v919 = vunpack.c.h.b16 %v829
        %v920 = vunpack.c.l.b16 %v830
        %v921 = vunpack.c.h.b16 %v830
        %v922 = vunpack.c.l.b16 %v831
        %v923 = vunpack.c.h.b16 %v831
        %v924 = vunpack.c.l.b16 %v832
        %v925 = vunpack.c.h.b16 %v832
        %v926 = vunpack.c.l.b16 %v833
        %v927 = vunpack.c.h.b16 %v833
        %v928 = vunpack.c.l.b16 %v834
        %v929 = vunpack.c.h.b16 %v834
        %v930 = vunpack.c.l.b16 %v835
        %v931 = vunpack.c.h.b16 %v835
        %v932 = vunpack.c.l.b16 %v836
        %v933 = vunpack.c.h.b16 %v836
        %v934 = vunpack.c.l.b16 %v837
        %v935 = vunpack.c.h.b16 %v837
        %v936 = vunpack.c.l.b16 %v838
        %v937 = vunpack.c.h.b16 %v838
        %v938 = vunpack.c.l.b16 %v839
        %v939 = vunpack.c.h.b16 %v839
        %v940 = vunpack.c.l.b16 %v840
        %v941 = vunpack.c.h.b16 %v840
        %v942 = vunpack.c.l.b16 %v841
        %v943 = vunpack.c.h.b16 %v841
        %v944 = vunpack.c.l.b16 %v842
        %v945 = vunpack.c.h.b16 %v842
        %v946 = vunpack.c.l.b16 %v843
        %v947 = vunpack.c.h.b16 %v843
        %v948 = vunpack.c.l.b16 %v844
        %v949 = vunpack.c.h.b16 %v844
        %v950 = vunpack.c.l.b16 %v845
        %v951 = vunpack.c.h.b16 %v845
        %v952 = vunpack.c.l.b16 %v846
        %v953 = vunpack.c.h.b16 %v846
        %v954 = vunpack.c.l.b16 %v847
        %v955 = vunpack.c.h.b16 %v847
        %v956 = vpack.c.b16 %v894, %v892
        %v957 = vpack.c.b16 %v895, %v893
        %v958 = vpack.c.b16 %v898, %v896
        %v959 = vpack.c.b16 %v899, %v897
        %v960 = vpack.c.b16 %v902, %v900
        %v961 = vpack.c.b16 %v903, %v901
        %v962 = vpack.c.b16 %v906, %v904
        %v963 = vpack.c.b16 %v907, %v905
        %v964 = vpack.c.b16 %v910, %v908
        %v965 = vpack.c.b16 %v911, %v909
        %v966 = vpack.c.b16 %v914, %v912
        %v967 = vpack.c.b16 %v915, %v913
        %v968 = vpack.c.b16 %v918, %v916
        %v969 = vpack.c.b16 %v919, %v917
        %v970 = vpack.c.b16 %v922, %v920
        %v971 = vpack.c.b16 %v923, %v921
        %v972 = vpack.c.b16 %v926, %v924
        %v973 = vpack.c.b16 %v927, %v925
        %v974 = vpack.c.b16 %v930, %v928
        %v975 = vpack.c.b16 %v931, %v929
        %v976 = vpack.c.b16 %v934, %v932
        %v977 = vpack.c.b16 %v935, %v933
        %v978 = vpack.c.b16 %v938, %v936
        %v979 = vpack.c.b16 %v939, %v937
        %v980 = vpack.c.b16 %v942, %v940
        %v981 = vpack.c.b16 %v943, %v941
        %v982 = vpack.c.b16 %v946, %v944
        %v983 = vpack.c.b16 %v947, %v945
        %v984 = vpack.c.b16 %v950, %v948
        %v985 = vpack.c.b16 %v951, %v949
        %v986 = vpack.c.b16 %v954, %v952
        %v987 = vpack.c.b16 %v955, %v953
        %1020 = vmatprep.subr.bf16.mxu0 %v971
        %1021 = vmatpush1.bf16.msra.mxu0 %v970
        %1022 = vmatprep.subr.bf16.mxu0 %v969
        %1023 = vmatpush1.bf16.msra.mxu0 %v968
        %1024 = vmatprep.subr.bf16.mxu0 %v967
        %1025 = vmatpush1.bf16.msra.mxu0 %v966
        %1026 = vmatprep.subr.bf16.mxu0 %v965
        %1027 = vmatpush1.bf16.msra.mxu0 %v964
        %1028 = vmatprep.subr.bf16.mxu0 %v963
        %1029 = vmatpush1.bf16.msra.mxu0 %v962
        %1030 = vmatprep.subr.bf16.mxu0 %v961
        %1031 = vmatpush1.bf16.msra.mxu0 %v960
        %1032 = vmatprep.subr.bf16.mxu0 %v959
        %1033 = vmatpush1.bf16.msra.mxu0 %v958
        %1034 = vmatprep.subr.bf16.mxu0 %v957
        %1035 = vmatpush1.bf16.msra.mxu0 %v956
        %1036 = vmatprep.subr.bf16.mxu0 %v987
        %1037 = vmatpush2.bf16.msra.mxu0 %v986
        %1038 = vmatprep.subr.bf16.mxu0 %v985
        %1039 = vmatpush2.bf16.msra.mxu0 %v984
        %1040 = vmatprep.subr.bf16.mxu0 %v983
        %1041 = vmatpush2.bf16.msra.mxu0 %v982
        %1042 = vmatprep.subr.bf16.mxu0 %v981
        %1043 = vmatpush2.bf16.msra.mxu0 %v980
        %1044 = vmatprep.subr.bf16.mxu0 %v979
        %1045 = vmatpush2.bf16.msra.mxu0 %v978
        %1046 = vmatprep.subr.bf16.mxu0 %v977
        %1047 = vmatpush2.bf16.msra.mxu0 %v976
        %1048 = vmatprep.subr.bf16.mxu0 %v975
        %1049 = vmatpush2.bf16.msra.mxu0 %v974
        %1050 = vmatprep.subr.bf16.mxu0 %v973
        %1051 = vmatpush2.bf16.msra.mxu0 %v972
        %1052 = vmatprep.mubr.bf16.mxu0 %v797
        %1053 = vmatmul.mubr.bf16.gmra.mxu0 %v796
        %v1054 = vpop.f32.mrf.mxu0
        %v1055 = vadd.f32 %v853, %v1054
        %v1056 = vpop.f32.mrf.mxu0
        %v1057 = vadd.f32 %v857, %v1056
        %v1058 = vpop.f32.mrf.mxu0
        %v1059 = vadd.f32 %v853, %v1058
        %v1060 = vpop.f32.mrf.mxu0
        %v1061 = vadd.f32 %v857, %v1060
        %1062 = vmatprep.mubr.bf16.mxu0 %v799
        %1063 = vmatmul.mubr.bf16.gmra.mxu0 %v798
        %v1064 = vpop.f32.mrf.mxu0
        %v1065 = vadd.f32 %v853, %v1064
        %v1066 = vpop.f32.mrf.mxu0
        %v1067 = vadd.f32 %v857, %v1066
        %v1068 = vpop.f32.mrf.mxu0
        %v1069 = vadd.f32 %v853, %v1068
        %v1070 = vpop.f32.mrf.mxu0
        %v1071 = vadd.f32 %v857, %v1070
        %1072 = vmatprep.mubr.bf16.mxu0 %v801
        %1073 = vmatmul.mubr.bf16.gmra.mxu0 %v800
        %v1074 = vpop.f32.mrf.mxu0
        %v1075 = vadd.f32 %v853, %v1074
        %v1076 = vpop.f32.mrf.mxu0
        %v1077 = vadd.f32 %v857, %v1076
        %v1078 = vpop.f32.mrf.mxu0
        %v1079 = vadd.f32 %v853, %v1078
        %v1080 = vpop.f32.mrf.mxu0
        %v1081 = vadd.f32 %v857, %v1080
        %1082 = vmatprep.mubr.bf16.mxu0 %v803
        %1083 = vmatmul.mubr.bf16.gmra.mxu0 %v802
        %v1084 = vpop.f32.mrf.mxu0
        %v1085 = vadd.f32 %v853, %v1084
        %v1086 = vpop.f32.mrf.mxu0
        %v1087 = vadd.f32 %v857, %v1086
        %v1088 = vpop.f32.mrf.mxu0
        %v1089 = vadd.f32 %v853, %v1088
        %v1090 = vpop.f32.mrf.mxu0
        %v1091 = vadd.f32 %v857, %v1090
        %1092 = vmatprep.mubr.bf16.mxu0 %v805
        %1093 = vmatmul.mubr.bf16.gmra.mxu0 %v804
        %v1094 = vpop.f32.mrf.mxu0
        %v1095 = vadd.f32 %v853, %v1094
        %v1096 = vpop.f32.mrf.mxu0
        %v1097 = vadd.f32 %v857, %v1096
        %v1098 = vpop.f32.mrf.mxu0
        %v1099 = vadd.f32 %v853, %v1098
        %v1100 = vpop.f32.mrf.mxu0
        %v1101 = vadd.f32 %v857, %v1100
        %1102 = vmatprep.mubr.bf16.mxu0 %v807
        %1103 = vmatmul.mubr.bf16.gmra.mxu0 %v806
        %v1104 = vpop.f32.mrf.mxu0
        %v1105 = vadd.f32 %v853, %v1104
        %v1106 = vpop.f32.mrf.mxu0
        %v1107 = vadd.f32 %v857, %v1106
        %v1108 = vpop.f32.mrf.mxu0
        %v1109 = vadd.f32 %v853, %v1108
        %v1110 = vpop.f32.mrf.mxu0
        %v1111 = vadd.f32 %v857, %v1110
        %1112 = vmatprep.mubr.bf16.mxu0 %v809
        %1113 = vmatmul.mubr.bf16.gmra.mxu0 %v808
        %v1114 = vpop.f32.mrf.mxu0
        %v1115 = vadd.f32 %v853, %v1114
        %v1116 = vpop.f32.mrf.mxu0
        %v1117 = vadd.f32 %v857, %v1116
        %v1118 = vpop.f32.mrf.mxu0
        %v1119 = vadd.f32 %v853, %v1118
        %v1120 = vpop.f32.mrf.mxu0
        %v1121 = vadd.f32 %v857, %v1120
        %1122 = vmatprep.mubr.bf16.mxu0 %v811
        %1123 = vmatmul.mubr.bf16.gmra.mxu0 %v810
        %v1124 = vpop.f32.mrf.mxu0
        %v1125 = vadd.f32 %v853, %v1124
        %v1126 = vpop.f32.mrf.mxu0
        %v1127 = vadd.f32 %v857, %v1126
        %v1128 = vpop.f32.mrf.mxu0
        %v1129 = vadd.f32 %v853, %v1128
        %v1130 = vpop.f32.mrf.mxu0
        %v1131 = vadd.f32 %v857, %v1130
        %1132 = vmatprep.mubr.bf16.mxu0 %v813
        %1133 = vmatmul.mubr.bf16.gmra.mxu0 %v812
        %v1134 = vpop.f32.mrf.mxu0
        %v1135 = vadd.f32 %v853, %v1134
        %v1136 = vpop.f32.mrf.mxu0
        %v1137 = vadd.f32 %v857, %v1136
        %v1138 = vpop.f32.mrf.mxu0
        %v1139 = vadd.f32 %v853, %v1138
        %v1140 = vpop.f32.mrf.mxu0
        %v1141 = vadd.f32 %v857, %v1140
        %1142 = vmatprep.mubr.bf16.mxu0 %v815
        %1143 = vmatmul.mubr.bf16.gmra.mxu0 %v814
        %v1144 = vpop.f32.mrf.mxu0
        %v1145 = vadd.f32 %v853, %v1144
        %v1146 = vpop.f32.mrf.mxu0
        %v1147 = vadd.f32 %v857, %v1146
        %v1148 = vpop.f32.mrf.mxu0
        %v1149 = vadd.f32 %v853, %v1148
        %v1150 = vpop.f32.mrf.mxu0
        %v1151 = vadd.f32 %v857, %v1150
        %1152 = vdwg.mxu0
        %v1153 = vmax.f32 %v1055, 0.0
        %v1154 = vmax.f32 %v1057, 0.0
        %v1155 = vmax.f32 %v1059, 0.0
        %v1156 = vmax.f32 %v1061, 0.0
        %v1157 = vmax.f32 %v1065, 0.0
        %v1158 = vmax.f32 %v1067, 0.0
        %v1159 = vmax.f32 %v1069, 0.0
        %v1160 = vmax.f32 %v1071, 0.0
        %v1161 = vmax.f32 %v1075, 0.0
        %v1162 = vmax.f32 %v1077, 0.0
        %v1163 = vmax.f32 %v1079, 0.0
        %v1164 = vmax.f32 %v1081, 0.0
        %v1165 = vmax.f32 %v1085, 0.0
        %v1166 = vmax.f32 %v1087, 0.0
        %v1167 = vmax.f32 %v1089, 0.0
        %v1168 = vmax.f32 %v1091, 0.0
        %v1169 = vmax.f32 %v1095, 0.0
        %v1170 = vmax.f32 %v1097, 0.0
        %v1171 = vmax.f32 %v1099, 0.0
        %v1172 = vmax.f32 %v1101, 0.0
        %v1173 = vmax.f32 %v1105, 0.0
        %v1174 = vmax.f32 %v1107, 0.0
        %v1175 = vmax.f32 %v1109, 0.0
        %v1176 = vmax.f32 %v1111, 0.0
        %v1177 = vmax.f32 %v1115, 0.0
        %v1178 = vmax.f32 %v1117, 0.0
        %v1179 = vmax.f32 %v1119, 0.0
        %v1180 = vmax.f32 %v1121, 0.0
        %v1181 = vmax.f32 %v1125, 0.0
        %v1182 = vmax.f32 %v1127, 0.0
        %v1183 = vmax.f32 %v1129, 0.0
        %v1184 = vmax.f32 %v1131, 0.0
        %v1185 = vmax.f32 %v1135, 0.0
        %v1186 = vmax.f32 %v1137, 0.0
        %v1187 = vmax.f32 %v1139, 0.0
        %v1188 = vmax.f32 %v1141, 0.0
        %v1189 = vmax.f32 %v1145, 0.0
        %v1190 = vmax.f32 %v1147, 0.0
        %v1191 = vmax.f32 %v1149, 0.0
        %v1192 = vmax.f32 %v1151, 0.0
        %v1193 = vpack.c.bf16 %v1155, %v1153
        %v1194 = vpack.c.bf16 %v1156, %v1154
        %v1195 = vpack.c.bf16 %v1159, %v1157
        %v1196 = vpack.c.bf16 %v1160, %v1158
        %v1197 = vpack.c.bf16 %v1163, %v1161
        %v1198 = vpack.c.bf16 %v1164, %v1162
        %v1199 = vpack.c.bf16 %v1167, %v1165
        %v1200 = vpack.c.bf16 %v1168, %v1166
        %v1201 = vpack.c.bf16 %v1171, %v1169
        %v1202 = vpack.c.bf16 %v1172, %v1170
        %v1203 = vpack.c.bf16 %v1175, %v1173
        %v1204 = vpack.c.bf16 %v1176, %v1174
        %v1205 = vpack.c.bf16 %v1179, %v1177
        %v1206 = vpack.c.bf16 %v1180, %v1178
        %v1207 = vpack.c.bf16 %v1183, %v1181
        %v1208 = vpack.c.bf16 %v1184, %v1182
        %v1209 = vpack.c.bf16 %v1187, %v1185
        %v1210 = vpack.c.bf16 %v1188, %v1186
        %v1211 = vpack.c.bf16 %v1191, %v1189
        %v1212 = vpack.c.bf16 %v1192, %v1190
        %v1213 = vld [vmem:[#allocation5] sm:$0xff]
        %v1214 = vld [vmem:[#allocation5 + $0x8] sm:$0xff]
        %v1215 = vld [vmem:[#allocation5 + $0x10] sm:$0xff]
        %v1216 = vld [vmem:[#allocation5 + $0x18] sm:$0xff]
        %v1217 = vld [vmem:[#allocation5 + $0x20] sm:$0xff]
        %v1218 = vld [vmem:[#allocation5 + $0x28] sm:$0xff]
        %v1219 = vld [vmem:[#allocation5 + $0x30] sm:$0xff]
        %v1220 = vld [vmem:[#allocation5 + $0x38] sm:$0xff]
        %v1221 = vld [vmem:[#allocation5 + $0x40] sm:$0xff]
        %v1222 = vld [vmem:[#allocation5 + $0x48] sm:$0xff]
        %v1223 = vld [vmem:[#allocation5 + $0x50] sm:$0xff]
        %v1224 = vld [vmem:[#allocation5 + $0x58] sm:$0xff]
        %v1225 = vld [vmem:[#allocation5 + $0x60] sm:$0xff]
        %v1226 = vld [vmem:[#allocation5 + $0x68] sm:$0xff]
        %v1227 = vld [vmem:[#allocation5 + $0x70] sm:$0xff]
        %v1228 = vld [vmem:[#allocation5 + $0x78] sm:$0xff]
        %v1229 = vld [vmem:[#allocation5 + $0x80] sm:$0xff]
        %v1230 = vld [vmem:[#allocation5 + $0x88] sm:$0xff]
        %v1231 = vld [vmem:[#allocation5 + $0x90] sm:$0xff]
        %v1232 = vld [vmem:[#allocation5 + $0x98] sm:$0xff]
        %v1233 = vld [vmem:[#allocation5 + $0xa0] sm:$0xff]
        %v1234 = vld [vmem:[#allocation5 + $0xa8] sm:$0xff]
        %v1235 = vld [vmem:[#allocation5 + $0xb0] sm:$0xff]
        %v1236 = vld [vmem:[#allocation5 + $0xb8] sm:$0xff]
        %v1237 = vld [vmem:[#allocation5 + $0xc0] sm:$0xff]
        %v1238 = vld [vmem:[#allocation5 + $0xc8] sm:$0xff]
        %v1239 = vld [vmem:[#allocation5 + $0xd0] sm:$0xff]
        %v1240 = vld [vmem:[#allocation5 + $0xd8] sm:$0xff]
        %v1241 = vld [vmem:[#allocation5 + $0xe0] sm:$0xff]
        %v1242 = vld [vmem:[#allocation5 + $0xe8] sm:$0xff]
        %v1243 = vld [vmem:[#allocation5 + $0xf0] sm:$0xff]
        %v1244 = vld [vmem:[#allocation5 + $0xf8] sm:$0xff]
        %v1245 = vld [vmem:[%s6] sm:$0x3]
        %v1247 = vlaneseq
        %v1248 = vshrl.u32 %v1247, 7
        %v1249 = vsub.s32 0, %v1248
        %v1250 = vrot.slane %v1245, %v1249
        %v1251 = vlaneseq
        %v1252 = vshrl.u32 %v1251, 7
        %v1253 = vsub.s32 1, %v1252
        %v1254 = vrot.slane %v1245, %v1253
        %v1289 = vunpack.c.l.b16 %v1213
        %v1290 = vunpack.c.h.b16 %v1213
        %v1291 = vunpack.c.l.b16 %v1214
        %v1292 = vunpack.c.h.b16 %v1214
        %v1293 = vunpack.c.l.b16 %v1215
        %v1294 = vunpack.c.h.b16 %v1215
        %v1295 = vunpack.c.l.b16 %v1216
        %v1296 = vunpack.c.h.b16 %v1216
        %v1297 = vunpack.c.l.b16 %v1217
        %v1298 = vunpack.c.h.b16 %v1217
        %v1299 = vunpack.c.l.b16 %v1218
        %v1300 = vunpack.c.h.b16 %v1218
        %v1301 = vunpack.c.l.b16 %v1219
        %v1302 = vunpack.c.h.b16 %v1219
        %v1303 = vunpack.c.l.b16 %v1220
        %v1304 = vunpack.c.h.b16 %v1220
        %v1305 = vunpack.c.l.b16 %v1221
        %v1306 = vunpack.c.h.b16 %v1221
        %v1307 = vunpack.c.l.b16 %v1222
        %v1308 = vunpack.c.h.b16 %v1222
        %v1309 = vunpack.c.l.b16 %v1223
        %v1310 = vunpack.c.h.b16 %v1223
        %v1311 = vunpack.c.l.b16 %v1224
        %v1312 = vunpack.c.h.b16 %v1224
        %v1313 = vunpack.c.l.b16 %v1225
        %v1314 = vunpack.c.h.b16 %v1225
        %v1315 = vunpack.c.l.b16 %v1226
        %v1316 = vunpack.c.h.b16 %v1226
        %v1317 = vunpack.c.l.b16 %v1227
        %v1318 = vunpack.c.h.b16 %v1227
        %v1319 = vunpack.c.l.b16 %v1228
        %v1320 = vunpack.c.h.b16 %v1228
        %v1321 = vunpack.c.l.b16 %v1229
        %v1322 = vunpack.c.h.b16 %v1229
        %v1323 = vunpack.c.l.b16 %v1230
        %v1324 = vunpack.c.h.b16 %v1230
        %v1325 = vunpack.c.l.b16 %v1231
        %v1326 = vunpack.c.h.b16 %v1231
        %v1327 = vunpack.c.l.b16 %v1232
        %v1328 = vunpack.c.h.b16 %v1232
        %v1329 = vunpack.c.l.b16 %v1233
        %v1330 = vunpack.c.h.b16 %v1233
        %v1331 = vunpack.c.l.b16 %v1234
        %v1332 = vunpack.c.h.b16 %v1234
        %v1333 = vunpack.c.l.b16 %v1235
        %v1334 = vunpack.c.h.b16 %v1235
        %v1335 = vunpack.c.l.b16 %v1236
        %v1336 = vunpack.c.h.b16 %v1236
        %v1337 = vunpack.c.l.b16 %v1237
        %v1338 = vunpack.c.h.b16 %v1237
        %v1339 = vunpack.c.l.b16 %v1238
        %v1340 = vunpack.c.h.b16 %v1238
        %v1341 = vunpack.c.l.b16 %v1239
        %v1342 = vunpack.c.h.b16 %v1239
        %v1343 = vunpack.c.l.b16 %v1240
        %v1344 = vunpack.c.h.b16 %v1240
        %v1345 = vunpack.c.l.b16 %v1241
        %v1346 = vunpack.c.h.b16 %v1241
        %v1347 = vunpack.c.l.b16 %v1242
        %v1348 = vunpack.c.h.b16 %v1242
        %v1349 = vunpack.c.l.b16 %v1243
        %v1350 = vunpack.c.h.b16 %v1243
        %v1351 = vunpack.c.l.b16 %v1244
        %v1352 = vunpack.c.h.b16 %v1244
        %v1353 = vpack.c.b16 %v1291, %v1289
        %v1354 = vpack.c.b16 %v1292, %v1290
        %v1355 = vpack.c.b16 %v1295, %v1293
        %v1356 = vpack.c.b16 %v1296, %v1294
        %v1357 = vpack.c.b16 %v1299, %v1297
        %v1358 = vpack.c.b16 %v1300, %v1298
        %v1359 = vpack.c.b16 %v1303, %v1301
        %v1360 = vpack.c.b16 %v1304, %v1302
        %v1361 = vpack.c.b16 %v1307, %v1305
        %v1362 = vpack.c.b16 %v1308, %v1306
        %v1363 = vpack.c.b16 %v1311, %v1309
        %v1364 = vpack.c.b16 %v1312, %v1310
        %v1365 = vpack.c.b16 %v1315, %v1313
        %v1366 = vpack.c.b16 %v1316, %v1314
        %v1367 = vpack.c.b16 %v1319, %v1317
        %v1368 = vpack.c.b16 %v1320, %v1318
        %v1369 = vpack.c.b16 %v1323, %v1321
        %v1370 = vpack.c.b16 %v1324, %v1322
        %v1371 = vpack.c.b16 %v1327, %v1325
        %v1372 = vpack.c.b16 %v1328, %v1326
        %v1373 = vpack.c.b16 %v1331, %v1329
        %v1374 = vpack.c.b16 %v1332, %v1330
        %v1375 = vpack.c.b16 %v1335, %v1333
        %v1376 = vpack.c.b16 %v1336, %v1334
        %v1377 = vpack.c.b16 %v1339, %v1337
        %v1378 = vpack.c.b16 %v1340, %v1338
        %v1379 = vpack.c.b16 %v1343, %v1341
        %v1380 = vpack.c.b16 %v1344, %v1342
        %v1381 = vpack.c.b16 %v1347, %v1345
        %v1382 = vpack.c.b16 %v1348, %v1346
        %v1383 = vpack.c.b16 %v1351, %v1349
        %v1384 = vpack.c.b16 %v1352, %v1350
        %1417 = vmatprep.subr.bf16.mxu0 %v1368
        %1418 = vmatpush1.bf16.msra.mxu0 %v1367
        %1419 = vmatprep.subr.bf16.mxu0 %v1366
        %1420 = vmatpush1.bf16.msra.mxu0 %v1365
        %1421 = vmatprep.subr.bf16.mxu0 %v1364
        %1422 = vmatpush1.bf16.msra.mxu0 %v1363
        %1423 = vmatprep.subr.bf16.mxu0 %v1362
        %1424 = vmatpush1.bf16.msra.mxu0 %v1361
        %1425 = vmatprep.subr.bf16.mxu0 %v1360
        %1426 = vmatpush1.bf16.msra.mxu0 %v1359
        %1427 = vmatprep.subr.bf16.mxu0 %v1358
        %1428 = vmatpush1.bf16.msra.mxu0 %v1357
        %1429 = vmatprep.subr.bf16.mxu0 %v1356
        %1430 = vmatpush1.bf16.msra.mxu0 %v1355
        %1431 = vmatprep.subr.bf16.mxu0 %v1354
        %1432 = vmatpush1.bf16.msra.mxu0 %v1353
        %1433 = vmatprep.subr.bf16.mxu0 %v1384
        %1434 = vmatpush2.bf16.msra.mxu0 %v1383
        %1435 = vmatprep.subr.bf16.mxu0 %v1382
        %1436 = vmatpush2.bf16.msra.mxu0 %v1381
        %1437 = vmatprep.subr.bf16.mxu0 %v1380
        %1438 = vmatpush2.bf16.msra.mxu0 %v1379
        %1439 = vmatprep.subr.bf16.mxu0 %v1378
        %1440 = vmatpush2.bf16.msra.mxu0 %v1377
        %1441 = vmatprep.subr.bf16.mxu0 %v1376
        %1442 = vmatpush2.bf16.msra.mxu0 %v1375
        %1443 = vmatprep.subr.bf16.mxu0 %v1374
        %1444 = vmatpush2.bf16.msra.mxu0 %v1373
        %1445 = vmatprep.subr.bf16.mxu0 %v1372
        %1446 = vmatpush2.bf16.msra.mxu0 %v1371
        %1447 = vmatprep.subr.bf16.mxu0 %v1370
        %1448 = vmatpush2.bf16.msra.mxu0 %v1369
        %1449 = vmatprep.mubr.bf16.mxu0 %v1194
        %1450 = vmatmul.mubr.bf16.gmra.mxu0 %v1193
        %v1451 = vpop.f32.mrf.mxu0
        %v1452 = vadd.f32 %v1250, %v1451
        %v1453 = vpop.f32.mrf.mxu0
        %v1454 = vadd.f32 %v1254, %v1453
        %v1455 = vpop.f32.mrf.mxu0
        %v1456 = vadd.f32 %v1250, %v1455
        %v1457 = vpop.f32.mrf.mxu0
        %v1458 = vadd.f32 %v1254, %v1457
        %1459 = vmatprep.mubr.bf16.mxu0 %v1196
        %1460 = vmatmul.mubr.bf16.gmra.mxu0 %v1195
        %v1461 = vpop.f32.mrf.mxu0
        %v1462 = vadd.f32 %v1250, %v1461
        %v1463 = vpop.f32.mrf.mxu0
        %v1464 = vadd.f32 %v1254, %v1463
        %v1465 = vpop.f32.mrf.mxu0
        %v1466 = vadd.f32 %v1250, %v1465
        %v1467 = vpop.f32.mrf.mxu0
        %v1468 = vadd.f32 %v1254, %v1467
        %1469 = vmatprep.mubr.bf16.mxu0 %v1198
        %1470 = vmatmul.mubr.bf16.gmra.mxu0 %v1197
        %v1471 = vpop.f32.mrf.mxu0
        %v1472 = vadd.f32 %v1250, %v1471
        %v1473 = vpop.f32.mrf.mxu0
        %v1474 = vadd.f32 %v1254, %v1473
        %v1475 = vpop.f32.mrf.mxu0
        %v1476 = vadd.f32 %v1250, %v1475
        %v1477 = vpop.f32.mrf.mxu0
        %v1478 = vadd.f32 %v1254, %v1477
        %1479 = vmatprep.mubr.bf16.mxu0 %v1200
        %1480 = vmatmul.mubr.bf16.gmra.mxu0 %v1199
        %v1481 = vpop.f32.mrf.mxu0
        %v1482 = vadd.f32 %v1250, %v1481
        %v1483 = vpop.f32.mrf.mxu0
        %v1484 = vadd.f32 %v1254, %v1483
        %v1485 = vpop.f32.mrf.mxu0
        %v1486 = vadd.f32 %v1250, %v1485
        %v1487 = vpop.f32.mrf.mxu0
        %v1488 = vadd.f32 %v1254, %v1487
        %1489 = vmatprep.mubr.bf16.mxu0 %v1202
        %1490 = vmatmul.mubr.bf16.gmra.mxu0 %v1201
        %v1491 = vpop.f32.mrf.mxu0
        %v1492 = vadd.f32 %v1250, %v1491
        %v1493 = vpop.f32.mrf.mxu0
        %v1494 = vadd.f32 %v1254, %v1493
        %v1495 = vpop.f32.mrf.mxu0
        %v1496 = vadd.f32 %v1250, %v1495
        %v1497 = vpop.f32.mrf.mxu0
        %v1498 = vadd.f32 %v1254, %v1497
        %1499 = vmatprep.mubr.bf16.mxu0 %v1204
        %1500 = vmatmul.mubr.bf16.gmra.mxu0 %v1203
        %v1501 = vpop.f32.mrf.mxu0
        %v1502 = vadd.f32 %v1250, %v1501
        %v1503 = vpop.f32.mrf.mxu0
        %v1504 = vadd.f32 %v1254, %v1503
        %v1505 = vpop.f32.mrf.mxu0
        %v1506 = vadd.f32 %v1250, %v1505
        %v1507 = vpop.f32.mrf.mxu0
        %v1508 = vadd.f32 %v1254, %v1507
        %1509 = vmatprep.mubr.bf16.mxu0 %v1206
        %1510 = vmatmul.mubr.bf16.gmra.mxu0 %v1205
        %v1511 = vpop.f32.mrf.mxu0
        %v1512 = vadd.f32 %v1250, %v1511
        %v1513 = vpop.f32.mrf.mxu0
        %v1514 = vadd.f32 %v1254, %v1513
        %v1515 = vpop.f32.mrf.mxu0
        %v1516 = vadd.f32 %v1250, %v1515
        %v1517 = vpop.f32.mrf.mxu0
        %v1518 = vadd.f32 %v1254, %v1517
        %1519 = vmatprep.mubr.bf16.mxu0 %v1208
        %1520 = vmatmul.mubr.bf16.gmra.mxu0 %v1207
        %v1521 = vpop.f32.mrf.mxu0
        %v1522 = vadd.f32 %v1250, %v1521
        %v1523 = vpop.f32.mrf.mxu0
        %v1524 = vadd.f32 %v1254, %v1523
        %v1525 = vpop.f32.mrf.mxu0
        %v1526 = vadd.f32 %v1250, %v1525
        %v1527 = vpop.f32.mrf.mxu0
        %v1528 = vadd.f32 %v1254, %v1527
        %1529 = vmatprep.mubr.bf16.mxu0 %v1210
        %1530 = vmatmul.mubr.bf16.gmra.mxu0 %v1209
        %v1531 = vpop.f32.mrf.mxu0
        %v1532 = vadd.f32 %v1250, %v1531
        %v1533 = vpop.f32.mrf.mxu0
        %v1534 = vadd.f32 %v1254, %v1533
        %v1535 = vpop.f32.mrf.mxu0
        %v1536 = vadd.f32 %v1250, %v1535
        %v1537 = vpop.f32.mrf.mxu0
        %v1538 = vadd.f32 %v1254, %v1537
        %1539 = vmatprep.mubr.bf16.mxu0 %v1212
        %1540 = vmatmul.mubr.bf16.gmra.mxu0 %v1211
        %v1541 = vpop.f32.mrf.mxu0
        %v1542 = vadd.f32 %v1250, %v1541
        %v1543 = vpop.f32.mrf.mxu0
        %v1544 = vadd.f32 %v1254, %v1543
        %v1545 = vpop.f32.mrf.mxu0
        %v1546 = vadd.f32 %v1250, %v1545
        %v1547 = vpop.f32.mrf.mxu0
        %v1548 = vadd.f32 %v1254, %v1547
        %1549 = vdwg.mxu0
        %v1550 = vmax.f32 %v1452, 0.0
        %v1551 = vmax.f32 %v1454, 0.0
        %v1552 = vmax.f32 %v1456, 0.0
        %v1553 = vmax.f32 %v1458, 0.0
        %v1554 = vmax.f32 %v1462, 0.0
        %v1555 = vmax.f32 %v1464, 0.0
        %v1556 = vmax.f32 %v1466, 0.0
        %v1557 = vmax.f32 %v1468, 0.0
        %v1558 = vmax.f32 %v1472, 0.0
        %v1559 = vmax.f32 %v1474, 0.0
        %v1560 = vmax.f32 %v1476, 0.0
        %v1561 = vmax.f32 %v1478, 0.0
        %v1562 = vmax.f32 %v1482, 0.0
        %v1563 = vmax.f32 %v1484, 0.0
        %v1564 = vmax.f32 %v1486, 0.0
        %v1565 = vmax.f32 %v1488, 0.0
        %v1566 = vmax.f32 %v1492, 0.0
        %v1567 = vmax.f32 %v1494, 0.0
        %v1568 = vmax.f32 %v1496, 0.0
        %v1569 = vmax.f32 %v1498, 0.0
        %v1570 = vmax.f32 %v1502, 0.0
        %v1571 = vmax.f32 %v1504, 0.0
        %v1572 = vmax.f32 %v1506, 0.0
        %v1573 = vmax.f32 %v1508, 0.0
        %v1574 = vmax.f32 %v1512, 0.0
        %v1575 = vmax.f32 %v1514, 0.0
        %v1576 = vmax.f32 %v1516, 0.0
        %v1577 = vmax.f32 %v1518, 0.0
        %v1578 = vmax.f32 %v1522, 0.0
        %v1579 = vmax.f32 %v1524, 0.0
        %v1580 = vmax.f32 %v1526, 0.0
        %v1581 = vmax.f32 %v1528, 0.0
        %v1582 = vmax.f32 %v1532, 0.0
        %v1583 = vmax.f32 %v1534, 0.0
        %v1584 = vmax.f32 %v1536, 0.0
        %v1585 = vmax.f32 %v1538, 0.0
        %v1586 = vmax.f32 %v1542, 0.0
        %v1587 = vmax.f32 %v1544, 0.0
        %v1588 = vmax.f32 %v1546, 0.0
        %v1589 = vmax.f32 %v1548, 0.0
        %v1590 = vpack.c.bf16 %v1552, %v1550
        %v1591 = vpack.c.bf16 %v1553, %v1551
        %v1592 = vpack.c.bf16 %v1556, %v1554
        %v1593 = vpack.c.bf16 %v1557, %v1555
        %v1594 = vpack.c.bf16 %v1560, %v1558
        %v1595 = vpack.c.bf16 %v1561, %v1559
        %v1596 = vpack.c.bf16 %v1564, %v1562
        %v1597 = vpack.c.bf16 %v1565, %v1563
        %v1598 = vpack.c.bf16 %v1568, %v1566
        %v1599 = vpack.c.bf16 %v1569, %v1567
        %v1600 = vpack.c.bf16 %v1572, %v1570
        %v1601 = vpack.c.bf16 %v1573, %v1571
        %v1602 = vpack.c.bf16 %v1576, %v1574
        %v1603 = vpack.c.bf16 %v1577, %v1575
        %v1604 = vpack.c.bf16 %v1580, %v1578
        %v1605 = vpack.c.bf16 %v1581, %v1579
        %v1606 = vpack.c.bf16 %v1584, %v1582
        %v1607 = vpack.c.bf16 %v1585, %v1583
        %v1608 = vpack.c.bf16 %v1588, %v1586
        %v1609 = vpack.c.bf16 %v1589, %v1587
        %v1610 = vld [vmem:[#allocation7] sm:$0xff]
        %v1611 = vld [vmem:[#allocation7 + $0x8] sm:$0xff]
        %v1612 = vld [vmem:[#allocation7 + $0x10] sm:$0xff]
        %v1613 = vld [vmem:[#allocation7 + $0x18] sm:$0xff]
        %v1614 = vld [vmem:[#allocation7 + $0x20] sm:$0xff]
        %v1615 = vld [vmem:[#allocation7 + $0x28] sm:$0xff]
        %v1616 = vld [vmem:[#allocation7 + $0x30] sm:$0xff]
        %v1617 = vld [vmem:[#allocation7 + $0x38] sm:$0xff]
        %v1618 = vld [vmem:[#allocation7 + $0x40] sm:$0xff]
        %v1619 = vld [vmem:[#allocation7 + $0x48] sm:$0xff]
        %v1620 = vld [vmem:[#allocation7 + $0x50] sm:$0xff]
        %v1621 = vld [vmem:[#allocation7 + $0x58] sm:$0xff]
        %v1622 = vld [vmem:[#allocation7 + $0x60] sm:$0xff]
        %v1623 = vld [vmem:[#allocation7 + $0x68] sm:$0xff]
        %v1624 = vld [vmem:[#allocation7 + $0x70] sm:$0xff]
        %v1625 = vld [vmem:[#allocation7 + $0x78] sm:$0xff]
        %v1626 = vld [vmem:[#allocation7 + $0x80] sm:$0xff]
        %v1627 = vld [vmem:[#allocation7 + $0x88] sm:$0xff]
        %v1628 = vld [vmem:[#allocation7 + $0x90] sm:$0xff]
        %v1629 = vld [vmem:[#allocation7 + $0x98] sm:$0xff]
        %v1630 = vld [vmem:[#allocation7 + $0xa0] sm:$0xff]
        %v1631 = vld [vmem:[#allocation7 + $0xa8] sm:$0xff]
        %v1632 = vld [vmem:[#allocation7 + $0xb0] sm:$0xff]
        %v1633 = vld [vmem:[#allocation7 + $0xb8] sm:$0xff]
        %v1634 = vld [vmem:[#allocation7 + $0xc0] sm:$0xff]
        %v1635 = vld [vmem:[#allocation7 + $0xc8] sm:$0xff]
        %v1636 = vld [vmem:[#allocation7 + $0xd0] sm:$0xff]
        %v1637 = vld [vmem:[#allocation7 + $0xd8] sm:$0xff]
        %v1638 = vld [vmem:[#allocation7 + $0xe0] sm:$0xff]
        %v1639 = vld [vmem:[#allocation7 + $0xe8] sm:$0xff]
        %v1640 = vld [vmem:[#allocation7 + $0xf0] sm:$0xff]
        %v1641 = vld [vmem:[#allocation7 + $0xf8] sm:$0xff]
        %v1642 = vld [vmem:[%s8] sm:$0x3]
        %v1644 = vlaneseq
        %v1645 = vshrl.u32 %v1644, 7
        %v1646 = vsub.s32 0, %v1645
        %v1647 = vrot.slane %v1642, %v1646
        %v1648 = vlaneseq
        %v1649 = vshrl.u32 %v1648, 7
        %v1650 = vsub.s32 1, %v1649
        %v1651 = vrot.slane %v1642, %v1650
        %v1686 = vunpack.c.l.b16 %v1610
        %v1687 = vunpack.c.h.b16 %v1610
        %v1688 = vunpack.c.l.b16 %v1611
        %v1689 = vunpack.c.h.b16 %v1611
        %v1690 = vunpack.c.l.b16 %v1612
        %v1691 = vunpack.c.h.b16 %v1612
        %v1692 = vunpack.c.l.b16 %v1613
        %v1693 = vunpack.c.h.b16 %v1613
        %v1694 = vunpack.c.l.b16 %v1614
        %v1695 = vunpack.c.h.b16 %v1614
        %v1696 = vunpack.c.l.b16 %v1615
        %v1697 = vunpack.c.h.b16 %v1615
        %v1698 = vunpack.c.l.b16 %v1616
        %v1699 = vunpack.c.h.b16 %v1616
        %v1700 = vunpack.c.l.b16 %v1617
        %v1701 = vunpack.c.h.b16 %v1617
        %v1702 = vunpack.c.l.b16 %v1618
        %v1703 = vunpack.c.h.b16 %v1618
        %v1704 = vunpack.c.l.b16 %v1619
        %v1705 = vunpack.c.h.b16 %v1619
        %v1706 = vunpack.c.l.b16 %v1620
        %v1707 = vunpack.c.h.b16 %v1620
        %v1708 = vunpack.c.l.b16 %v1621
        %v1709 = vunpack.c.h.b16 %v1621
        %v1710 = vunpack.c.l.b16 %v1622
        %v1711 = vunpack.c.h.b16 %v1622
        %v1712 = vunpack.c.l.b16 %v1623
        %v1713 = vunpack.c.h.b16 %v1623
        %v1714 = vunpack.c.l.b16 %v1624
        %v1715 = vunpack.c.h.b16 %v1624
        %v1716 = vunpack.c.l.b16 %v1625
        %v1717 = vunpack.c.h.b16 %v1625
        %v1718 = vunpack.c.l.b16 %v1626
        %v1719 = vunpack.c.h.b16 %v1626
        %v1720 = vunpack.c.l.b16 %v1627
        %v1721 = vunpack.c.h.b16 %v1627
        %v1722 = vunpack.c.l.b16 %v1628
        %v1723 = vunpack.c.h.b16 %v1628
        %v1724 = vunpack.c.l.b16 %v1629
        %v1725 = vunpack.c.h.b16 %v1629
        %v1726 = vunpack.c.l.b16 %v1630
        %v1727 = vunpack.c.h.b16 %v1630
        %v1728 = vunpack.c.l.b16 %v1631
        %v1729 = vunpack.c.h.b16 %v1631
        %v1730 = vunpack.c.l.b16 %v1632
        %v1731 = vunpack.c.h.b16 %v1632
        %v1732 = vunpack.c.l.b16 %v1633
        %v1733 = vunpack.c.h.b16 %v1633
        %v1734 = vunpack.c.l.b16 %v1634
        %v1735 = vunpack.c.h.b16 %v1634
        %v1736 = vunpack.c.l.b16 %v1635
        %v1737 = vunpack.c.h.b16 %v1635
        %v1738 = vunpack.c.l.b16 %v1636
        %v1739 = vunpack.c.h.b16 %v1636
        %v1740 = vunpack.c.l.b16 %v1637
        %v1741 = vunpack.c.h.b16 %v1637
        %v1742 = vunpack.c.l.b16 %v1638
        %v1743 = vunpack.c.h.b16 %v1638
        %v1744 = vunpack.c.l.b16 %v1639
        %v1745 = vunpack.c.h.b16 %v1639
        %v1746 = vunpack.c.l.b16 %v1640
        %v1747 = vunpack.c.h.b16 %v1640
        %v1748 = vunpack.c.l.b16 %v1641
        %v1749 = vunpack.c.h.b16 %v1641
        %v1750 = vpack.c.b16 %v1688, %v1686
        %v1751 = vpack.c.b16 %v1689, %v1687
        %v1752 = vpack.c.b16 %v1692, %v1690
        %v1753 = vpack.c.b16 %v1693, %v1691
        %v1754 = vpack.c.b16 %v1696, %v1694
        %v1755 = vpack.c.b16 %v1697, %v1695
        %v1756 = vpack.c.b16 %v1700, %v1698
        %v1757 = vpack.c.b16 %v1701, %v1699
        %v1758 = vpack.c.b16 %v1704, %v1702
        %v1759 = vpack.c.b16 %v1705, %v1703
        %v1760 = vpack.c.b16 %v1708, %v1706
        %v1761 = vpack.c.b16 %v1709, %v1707
        %v1762 = vpack.c.b16 %v1712, %v1710
        %v1763 = vpack.c.b16 %v1713, %v1711
        %v1764 = vpack.c.b16 %v1716, %v1714
        %v1765 = vpack.c.b16 %v1717, %v1715
        %v1766 = vpack.c.b16 %v1720, %v1718
        %v1767 = vpack.c.b16 %v1721, %v1719
        %v1768 = vpack.c.b16 %v1724, %v1722
        %v1769 = vpack.c.b16 %v1725, %v1723
        %v1770 = vpack.c.b16 %v1728, %v1726
        %v1771 = vpack.c.b16 %v1729, %v1727
        %v1772 = vpack.c.b16 %v1732, %v1730
        %v1773 = vpack.c.b16 %v1733, %v1731
        %v1774 = vpack.c.b16 %v1736, %v1734
        %v1775 = vpack.c.b16 %v1737, %v1735
        %v1776 = vpack.c.b16 %v1740, %v1738
        %v1777 = vpack.c.b16 %v1741, %v1739
        %v1778 = vpack.c.b16 %v1744, %v1742
        %v1779 = vpack.c.b16 %v1745, %v1743
        %v1780 = vpack.c.b16 %v1748, %v1746
        %v1781 = vpack.c.b16 %v1749, %v1747
        %1814 = vmatprep.subr.bf16.mxu0 %v1765
        %1815 = vmatpush1.bf16.msra.mxu0 %v1764
        %1816 = vmatprep.subr.bf16.mxu0 %v1763
        %1817 = vmatpush1.bf16.msra.mxu0 %v1762
        %1818 = vmatprep.subr.bf16.mxu0 %v1761
        %1819 = vmatpush1.bf16.msra.mxu0 %v1760
        %1820 = vmatprep.subr.bf16.mxu0 %v1759
        %1821 = vmatpush1.bf16.msra.mxu0 %v1758
        %1822 = vmatprep.subr.bf16.mxu0 %v1757
        %1823 = vmatpush1.bf16.msra.mxu0 %v1756
        %1824 = vmatprep.subr.bf16.mxu0 %v1755
        %1825 = vmatpush1.bf16.msra.mxu0 %v1754
        %1826 = vmatprep.subr.bf16.mxu0 %v1753
        %1827 = vmatpush1.bf16.msra.mxu0 %v1752
        %1828 = vmatprep.subr.bf16.mxu0 %v1751
        %1829 = vmatpush1.bf16.msra.mxu0 %v1750
        %1830 = vmatprep.subr.bf16.mxu0 %v1781
        %1831 = vmatpush2.bf16.msra.mxu0 %v1780
        %1832 = vmatprep.subr.bf16.mxu0 %v1779
        %1833 = vmatpush2.bf16.msra.mxu0 %v1778
        %1834 = vmatprep.subr.bf16.mxu0 %v1777
        %1835 = vmatpush2.bf16.msra.mxu0 %v1776
        %1836 = vmatprep.subr.bf16.mxu0 %v1775
        %1837 = vmatpush2.bf16.msra.mxu0 %v1774
        %1838 = vmatprep.subr.bf16.mxu0 %v1773
        %1839 = vmatpush2.bf16.msra.mxu0 %v1772
        %1840 = vmatprep.subr.bf16.mxu0 %v1771
        %1841 = vmatpush2.bf16.msra.mxu0 %v1770
        %1842 = vmatprep.subr.bf16.mxu0 %v1769
        %1843 = vmatpush2.bf16.msra.mxu0 %v1768
        %1844 = vmatprep.subr.bf16.mxu0 %v1767
        %1845 = vmatpush2.bf16.msra.mxu0 %v1766
        %1846 = vmatprep.mubr.bf16.mxu0 %v1591
        %1847 = vmatmul.mubr.bf16.gmra.mxu0 %v1590
        %v1848 = vpop.f32.mrf.mxu0
        %v1849 = vadd.f32 %v1647, %v1848
        %v1850 = vpop.f32.mrf.mxu0
        %v1851 = vadd.f32 %v1651, %v1850
        %v1852 = vpop.f32.mrf.mxu0
        %v1853 = vadd.f32 %v1647, %v1852
        %v1854 = vpop.f32.mrf.mxu0
        %v1855 = vadd.f32 %v1651, %v1854
        %1856 = vmatprep.mubr.bf16.mxu0 %v1593
        %1857 = vmatmul.mubr.bf16.gmra.mxu0 %v1592
        %v1858 = vpop.f32.mrf.mxu0
        %v1859 = vadd.f32 %v1647, %v1858
        %v1860 = vpop.f32.mrf.mxu0
        %v1861 = vadd.f32 %v1651, %v1860
        %v1862 = vpop.f32.mrf.mxu0
        %v1863 = vadd.f32 %v1647, %v1862
        %v1864 = vpop.f32.mrf.mxu0
        %v1865 = vadd.f32 %v1651, %v1864
        %1866 = vmatprep.mubr.bf16.mxu0 %v1595
        %1867 = vmatmul.mubr.bf16.gmra.mxu0 %v1594
        %v1868 = vpop.f32.mrf.mxu0
        %v1869 = vadd.f32 %v1647, %v1868
        %v1870 = vpop.f32.mrf.mxu0
        %v1871 = vadd.f32 %v1651, %v1870
        %v1872 = vpop.f32.mrf.mxu0
        %v1873 = vadd.f32 %v1647, %v1872
        %v1874 = vpop.f32.mrf.mxu0
        %v1875 = vadd.f32 %v1651, %v1874
        %1876 = vmatprep.mubr.bf16.mxu0 %v1597
        %1877 = vmatmul.mubr.bf16.gmra.mxu0 %v1596
        %v1878 = vpop.f32.mrf.mxu0
        %v1879 = vadd.f32 %v1647, %v1878
        %v1880 = vpop.f32.mrf.mxu0
        %v1881 = vadd.f32 %v1651, %v1880
        %v1882 = vpop.f32.mrf.mxu0
        %v1883 = vadd.f32 %v1647, %v1882
        %v1884 = vpop.f32.mrf.mxu0
        %v1885 = vadd.f32 %v1651, %v1884
        %1886 = vmatprep.mubr.bf16.mxu0 %v1599
        %1887 = vmatmul.mubr.bf16.gmra.mxu0 %v1598
        %v1888 = vpop.f32.mrf.mxu0
        %v1889 = vadd.f32 %v1647, %v1888
        %v1890 = vpop.f32.mrf.mxu0
        %v1891 = vadd.f32 %v1651, %v1890
        %v1892 = vpop.f32.mrf.mxu0
        %v1893 = vadd.f32 %v1647, %v1892
        %v1894 = vpop.f32.mrf.mxu0
        %v1895 = vadd.f32 %v1651, %v1894
        %1896 = vmatprep.mubr.bf16.mxu0 %v1601
        %1897 = vmatmul.mubr.bf16.gmra.mxu0 %v1600
        %v1898 = vpop.f32.mrf.mxu0
        %v1899 = vadd.f32 %v1647, %v1898
        %v1900 = vpop.f32.mrf.mxu0
        %v1901 = vadd.f32 %v1651, %v1900
        %v1902 = vpop.f32.mrf.mxu0
        %v1903 = vadd.f32 %v1647, %v1902
        %v1904 = vpop.f32.mrf.mxu0
        %v1905 = vadd.f32 %v1651, %v1904
        %1906 = vmatprep.mubr.bf16.mxu0 %v1603
        %1907 = vmatmul.mubr.bf16.gmra.mxu0 %v1602
        %v1908 = vpop.f32.mrf.mxu0
        %v1909 = vadd.f32 %v1647, %v1908
        %v1910 = vpop.f32.mrf.mxu0
        %v1911 = vadd.f32 %v1651, %v1910
        %v1912 = vpop.f32.mrf.mxu0
        %v1913 = vadd.f32 %v1647, %v1912
        %v1914 = vpop.f32.mrf.mxu0
        %v1915 = vadd.f32 %v1651, %v1914
        %1916 = vmatprep.mubr.bf16.mxu0 %v1605
        %1917 = vmatmul.mubr.bf16.gmra.mxu0 %v1604
        %v1918 = vpop.f32.mrf.mxu0
        %v1919 = vadd.f32 %v1647, %v1918
        %v1920 = vpop.f32.mrf.mxu0
        %v1921 = vadd.f32 %v1651, %v1920
        %v1922 = vpop.f32.mrf.mxu0
        %v1923 = vadd.f32 %v1647, %v1922
        %v1924 = vpop.f32.mrf.mxu0
        %v1925 = vadd.f32 %v1651, %v1924
        %1926 = vmatprep.mubr.bf16.mxu0 %v1607
        %1927 = vmatmul.mubr.bf16.gmra.mxu0 %v1606
        %v1928 = vpop.f32.mrf.mxu0
        %v1929 = vadd.f32 %v1647, %v1928
        %v1930 = vpop.f32.mrf.mxu0
        %v1931 = vadd.f32 %v1651, %v1930
        %v1932 = vpop.f32.mrf.mxu0
        %v1933 = vadd.f32 %v1647, %v1932
        %v1934 = vpop.f32.mrf.mxu0
        %v1935 = vadd.f32 %v1651, %v1934
        %1936 = vmatprep.mubr.bf16.mxu0 %v1609
        %1937 = vmatmul.mubr.bf16.gmra.mxu0 %v1608
        %v1938 = vpop.f32.mrf.mxu0
        %v1939 = vadd.f32 %v1647, %v1938
        %v1940 = vpop.f32.mrf.mxu0
        %v1941 = vadd.f32 %v1651, %v1940
        %v1942 = vpop.f32.mrf.mxu0
        %v1943 = vadd.f32 %v1647, %v1942
        %v1944 = vpop.f32.mrf.mxu0
        %v1945 = vadd.f32 %v1651, %v1944
        %1946 = vdwg.mxu0
        %v1947 = vmax.f32 %v1849, 0.0
        %v1948 = vmax.f32 %v1851, 0.0
        %v1949 = vmax.f32 %v1853, 0.0
        %v1950 = vmax.f32 %v1855, 0.0
        %v1951 = vmax.f32 %v1859, 0.0
        %v1952 = vmax.f32 %v1861, 0.0
        %v1953 = vmax.f32 %v1863, 0.0
        %v1954 = vmax.f32 %v1865, 0.0
        %v1955 = vmax.f32 %v1869, 0.0
        %v1956 = vmax.f32 %v1871, 0.0
        %v1957 = vmax.f32 %v1873, 0.0
        %v1958 = vmax.f32 %v1875, 0.0
        %v1959 = vmax.f32 %v1879, 0.0
        %v1960 = vmax.f32 %v1881, 0.0
        %v1961 = vmax.f32 %v1883, 0.0
        %v1962 = vmax.f32 %v1885, 0.0
        %v1963 = vmax.f32 %v1889, 0.0
        %v1964 = vmax.f32 %v1891, 0.0
        %v1965 = vmax.f32 %v1893, 0.0
        %v1966 = vmax.f32 %v1895, 0.0
        %v1967 = vmax.f32 %v1899, 0.0
        %v1968 = vmax.f32 %v1901, 0.0
        %v1969 = vmax.f32 %v1903, 0.0
        %v1970 = vmax.f32 %v1905, 0.0
        %v1971 = vmax.f32 %v1909, 0.0
        %v1972 = vmax.f32 %v1911, 0.0
        %v1973 = vmax.f32 %v1913, 0.0
        %v1974 = vmax.f32 %v1915, 0.0
        %v1975 = vmax.f32 %v1919, 0.0
        %v1976 = vmax.f32 %v1921, 0.0
        %v1977 = vmax.f32 %v1923, 0.0
        %v1978 = vmax.f32 %v1925, 0.0
        %v1979 = vmax.f32 %v1929, 0.0
        %v1980 = vmax.f32 %v1931, 0.0
        %v1981 = vmax.f32 %v1933, 0.0
        %v1982 = vmax.f32 %v1935, 0.0
        %v1983 = vmax.f32 %v1939, 0.0
        %v1984 = vmax.f32 %v1941, 0.0
        %v1985 = vmax.f32 %v1943, 0.0
        %v1986 = vmax.f32 %v1945, 0.0
        %v1987 = vpack.c.bf16 %v1949, %v1947
        %v1988 = vpack.c.bf16 %v1950, %v1948
        %v1989 = vpack.c.bf16 %v1953, %v1951
        %v1990 = vpack.c.bf16 %v1954, %v1952
        %v1991 = vpack.c.bf16 %v1957, %v1955
        %v1992 = vpack.c.bf16 %v1958, %v1956
        %v1993 = vpack.c.bf16 %v1961, %v1959
        %v1994 = vpack.c.bf16 %v1962, %v1960
        %v1995 = vpack.c.bf16 %v1965, %v1963
        %v1996 = vpack.c.bf16 %v1966, %v1964
        %v1997 = vpack.c.bf16 %v1969, %v1967
        %v1998 = vpack.c.bf16 %v1970, %v1968
        %v1999 = vpack.c.bf16 %v1973, %v1971
        %v2000 = vpack.c.bf16 %v1974, %v1972
        %v2001 = vpack.c.bf16 %v1977, %v1975
        %v2002 = vpack.c.bf16 %v1978, %v1976
        %v2003 = vpack.c.bf16 %v1981, %v1979
        %v2004 = vpack.c.bf16 %v1982, %v1980
        %v2005 = vpack.c.bf16 %v1985, %v1983
        %v2006 = vpack.c.bf16 %v1986, %v1984
        %v2007 = vld [vmem:[#allocation8] sm:$0xff]
        %v2008 = vld [vmem:[#allocation8 + $0x8] sm:$0xff]
        %v2009 = vld [vmem:[#allocation8 + $0x10] sm:$0xff]
        %v2010 = vld [vmem:[#allocation8 + $0x18] sm:$0xff]
        %v2011 = vld [vmem:[#allocation8 + $0x20] sm:$0xff]
        %v2012 = vld [vmem:[#allocation8 + $0x28] sm:$0xff]
        %v2013 = vld [vmem:[#allocation8 + $0x30] sm:$0xff]
        %v2014 = vld [vmem:[#allocation8 + $0x38] sm:$0xff]
        %v2015 = vld [vmem:[#allocation8 + $0x40] sm:$0xff]
        %v2016 = vld [vmem:[#allocation8 + $0x48] sm:$0xff]
        %v2017 = vld [vmem:[#allocation8 + $0x50] sm:$0xff]
        %v2018 = vld [vmem:[#allocation8 + $0x58] sm:$0xff]
        %v2019 = vld [vmem:[#allocation8 + $0x60] sm:$0xff]
        %v2020 = vld [vmem:[#allocation8 + $0x68] sm:$0xff]
        %v2021 = vld [vmem:[#allocation8 + $0x70] sm:$0xff]
        %v2022 = vld [vmem:[#allocation8 + $0x78] sm:$0xff]
        %v2023 = vld [vmem:[#allocation8 + $0x80] sm:$0xff]
        %v2024 = vld [vmem:[#allocation8 + $0x88] sm:$0xff]
        %v2025 = vld [vmem:[#allocation8 + $0x90] sm:$0xff]
        %v2026 = vld [vmem:[#allocation8 + $0x98] sm:$0xff]
        %v2027 = vld [vmem:[#allocation8 + $0xa0] sm:$0xff]
        %v2028 = vld [vmem:[#allocation8 + $0xa8] sm:$0xff]
        %v2029 = vld [vmem:[#allocation8 + $0xb0] sm:$0xff]
        %v2030 = vld [vmem:[#allocation8 + $0xb8] sm:$0xff]
        %v2031 = vld [vmem:[#allocation8 + $0xc0] sm:$0xff]
        %v2032 = vld [vmem:[#allocation8 + $0xc8] sm:$0xff]
        %v2033 = vld [vmem:[#allocation8 + $0xd0] sm:$0xff]
        %v2034 = vld [vmem:[#allocation8 + $0xd8] sm:$0xff]
        %v2035 = vld [vmem:[#allocation8 + $0xe0] sm:$0xff]
        %v2036 = vld [vmem:[#allocation8 + $0xe8] sm:$0xff]
        %v2037 = vld [vmem:[#allocation8 + $0xf0] sm:$0xff]
        %v2038 = vld [vmem:[#allocation8 + $0xf8] sm:$0xff]
        %v2039 = vld [vmem:[%s10] sm:$0x3]
        %v2041 = vlaneseq
        %v2042 = vshrl.u32 %v2041, 7
        %v2043 = vsub.s32 0, %v2042
        %v2044 = vrot.slane %v2039, %v2043
        %v2045 = vlaneseq
        %v2046 = vshrl.u32 %v2045, 7
        %v2047 = vsub.s32 1, %v2046
        %v2048 = vrot.slane %v2039, %v2047
        %v2083 = vunpack.c.l.b16 %v2007
        %v2084 = vunpack.c.h.b16 %v2007
        %v2085 = vunpack.c.l.b16 %v2008
        %v2086 = vunpack.c.h.b16 %v2008
        %v2087 = vunpack.c.l.b16 %v2009
        %v2088 = vunpack.c.h.b16 %v2009
        %v2089 = vunpack.c.l.b16 %v2010
        %v2090 = vunpack.c.h.b16 %v2010
        %v2091 = vunpack.c.l.b16 %v2011
        %v2092 = vunpack.c.h.b16 %v2011
        %v2093 = vunpack.c.l.b16 %v2012
        %v2094 = vunpack.c.h.b16 %v2012
        %v2095 = vunpack.c.l.b16 %v2013
        %v2096 = vunpack.c.h.b16 %v2013
        %v2097 = vunpack.c.l.b16 %v2014
        %v2098 = vunpack.c.h.b16 %v2014
        %v2099 = vunpack.c.l.b16 %v2015
        %v2100 = vunpack.c.h.b16 %v2015
        %v2101 = vunpack.c.l.b16 %v2016
        %v2102 = vunpack.c.h.b16 %v2016
        %v2103 = vunpack.c.l.b16 %v2017
        %v2104 = vunpack.c.h.b16 %v2017
        %v2105 = vunpack.c.l.b16 %v2018
        %v2106 = vunpack.c.h.b16 %v2018
        %v2107 = vunpack.c.l.b16 %v2019
        %v2108 = vunpack.c.h.b16 %v2019
        %v2109 = vunpack.c.l.b16 %v2020
        %v2110 = vunpack.c.h.b16 %v2020
        %v2111 = vunpack.c.l.b16 %v2021
        %v2112 = vunpack.c.h.b16 %v2021
        %v2113 = vunpack.c.l.b16 %v2022
        %v2114 = vunpack.c.h.b16 %v2022
        %v2115 = vunpack.c.l.b16 %v2023
        %v2116 = vunpack.c.h.b16 %v2023
        %v2117 = vunpack.c.l.b16 %v2024
        %v2118 = vunpack.c.h.b16 %v2024
        %v2119 = vunpack.c.l.b16 %v2025
        %v2120 = vunpack.c.h.b16 %v2025
        %v2121 = vunpack.c.l.b16 %v2026
        %v2122 = vunpack.c.h.b16 %v2026
        %v2123 = vunpack.c.l.b16 %v2027
        %v2124 = vunpack.c.h.b16 %v2027
        %v2125 = vunpack.c.l.b16 %v2028
        %v2126 = vunpack.c.h.b16 %v2028
        %v2127 = vunpack.c.l.b16 %v2029
        %v2128 = vunpack.c.h.b16 %v2029
        %v2129 = vunpack.c.l.b16 %v2030
        %v2130 = vunpack.c.h.b16 %v2030
        %v2131 = vunpack.c.l.b16 %v2031
        %v2132 = vunpack.c.h.b16 %v2031
        %v2133 = vunpack.c.l.b16 %v2032
        %v2134 = vunpack.c.h.b16 %v2032
        %v2135 = vunpack.c.l.b16 %v2033
        %v2136 = vunpack.c.h.b16 %v2033
        %v2137 = vunpack.c.l.b16 %v2034
        %v2138 = vunpack.c.h.b16 %v2034
        %v2139 = vunpack.c.l.b16 %v2035
        %v2140 = vunpack.c.h.b16 %v2035
        %v2141 = vunpack.c.l.b16 %v2036
        %v2142 = vunpack.c.h.b16 %v2036
        %v2143 = vunpack.c.l.b16 %v2037
        %v2144 = vunpack.c.h.b16 %v2037
        %v2145 = vunpack.c.l.b16 %v2038
        %v2146 = vunpack.c.h.b16 %v2038
        %v2147 = vpack.c.b16 %v2085, %v2083
        %v2148 = vpack.c.b16 %v2086, %v2084
        %v2149 = vpack.c.b16 %v2089, %v2087
        %v2150 = vpack.c.b16 %v2090, %v2088
        %v2151 = vpack.c.b16 %v2093, %v2091
        %v2152 = vpack.c.b16 %v2094, %v2092
        %v2153 = vpack.c.b16 %v2097, %v2095
        %v2154 = vpack.c.b16 %v2098, %v2096
        %v2155 = vpack.c.b16 %v2101, %v2099
        %v2156 = vpack.c.b16 %v2102, %v2100
        %v2157 = vpack.c.b16 %v2105, %v2103
        %v2158 = vpack.c.b16 %v2106, %v2104
        %v2159 = vpack.c.b16 %v2109, %v2107
        %v2160 = vpack.c.b16 %v2110, %v2108
        %v2161 = vpack.c.b16 %v2113, %v2111
        %v2162 = vpack.c.b16 %v2114, %v2112
        %v2163 = vpack.c.b16 %v2117, %v2115
        %v2164 = vpack.c.b16 %v2118, %v2116
        %v2165 = vpack.c.b16 %v2121, %v2119
        %v2166 = vpack.c.b16 %v2122, %v2120
        %v2167 = vpack.c.b16 %v2125, %v2123
        %v2168 = vpack.c.b16 %v2126, %v2124
        %v2169 = vpack.c.b16 %v2129, %v2127
        %v2170 = vpack.c.b16 %v2130, %v2128
        %v2171 = vpack.c.b16 %v2133, %v2131
        %v2172 = vpack.c.b16 %v2134, %v2132
        %v2173 = vpack.c.b16 %v2137, %v2135
        %v2174 = vpack.c.b16 %v2138, %v2136
        %v2175 = vpack.c.b16 %v2141, %v2139
        %v2176 = vpack.c.b16 %v2142, %v2140
        %v2177 = vpack.c.b16 %v2145, %v2143
        %v2178 = vpack.c.b16 %v2146, %v2144
        %2211 = vmatprep.subr.bf16.mxu0 %v2162
        %2212 = vmatpush1.bf16.msra.mxu0 %v2161
        %2213 = vmatprep.subr.bf16.mxu0 %v2160
        %2214 = vmatpush1.bf16.msra.mxu0 %v2159
        %2215 = vmatprep.subr.bf16.mxu0 %v2158
        %2216 = vmatpush1.bf16.msra.mxu0 %v2157
        %2217 = vmatprep.subr.bf16.mxu0 %v2156
        %2218 = vmatpush1.bf16.msra.mxu0 %v2155
        %2219 = vmatprep.subr.bf16.mxu0 %v2154
        %2220 = vmatpush1.bf16.msra.mxu0 %v2153
        %2221 = vmatprep.subr.bf16.mxu0 %v2152
        %2222 = vmatpush1.bf16.msra.mxu0 %v2151
        %2223 = vmatprep.subr.bf16.mxu0 %v2150
        %2224 = vmatpush1.bf16.msra.mxu0 %v2149
        %2225 = vmatprep.subr.bf16.mxu0 %v2148
        %2226 = vmatpush1.bf16.msra.mxu0 %v2147
        %2227 = vmatprep.subr.bf16.mxu0 %v2178
        %2228 = vmatpush2.bf16.msra.mxu0 %v2177
        %2229 = vmatprep.subr.bf16.mxu0 %v2176
        %2230 = vmatpush2.bf16.msra.mxu0 %v2175
        %2231 = vmatprep.subr.bf16.mxu0 %v2174
        %2232 = vmatpush2.bf16.msra.mxu0 %v2173
        %2233 = vmatprep.subr.bf16.mxu0 %v2172
        %2234 = vmatpush2.bf16.msra.mxu0 %v2171
        %2235 = vmatprep.subr.bf16.mxu0 %v2170
        %2236 = vmatpush2.bf16.msra.mxu0 %v2169
        %2237 = vmatprep.subr.bf16.mxu0 %v2168
        %2238 = vmatpush2.bf16.msra.mxu0 %v2167
        %2239 = vmatprep.subr.bf16.mxu0 %v2166
        %2240 = vmatpush2.bf16.msra.mxu0 %v2165
        %2241 = vmatprep.subr.bf16.mxu0 %v2164
        %2242 = vmatpush2.bf16.msra.mxu0 %v2163
        %2243 = vmatprep.mubr.bf16.mxu0 %v1988
        %2244 = vmatmul.mubr.bf16.gmra.mxu0 %v1987
        %v2245 = vpop.f32.mrf.mxu0
        %v2246 = vadd.f32 %v2044, %v2245
        %v2247 = vpop.f32.mrf.mxu0
        %v2248 = vadd.f32 %v2048, %v2247
        %v2249 = vpop.f32.mrf.mxu0
        %v2250 = vadd.f32 %v2044, %v2249
        %v2251 = vpop.f32.mrf.mxu0
        %v2252 = vadd.f32 %v2048, %v2251
        %2253 = vmatprep.mubr.bf16.mxu0 %v1990
        %2254 = vmatmul.mubr.bf16.gmra.mxu0 %v1989
        %v2255 = vpop.f32.mrf.mxu0
        %v2256 = vadd.f32 %v2044, %v2255
        %v2257 = vpop.f32.mrf.mxu0
        %v2258 = vadd.f32 %v2048, %v2257
        %v2259 = vpop.f32.mrf.mxu0
        %v2260 = vadd.f32 %v2044, %v2259
        %v2261 = vpop.f32.mrf.mxu0
        %v2262 = vadd.f32 %v2048, %v2261
        %2263 = vmatprep.mubr.bf16.mxu0 %v1992
        %2264 = vmatmul.mubr.bf16.gmra.mxu0 %v1991
        %v2265 = vpop.f32.mrf.mxu0
        %v2266 = vadd.f32 %v2044, %v2265
        %v2267 = vpop.f32.mrf.mxu0
        %v2268 = vadd.f32 %v2048, %v2267
        %v2269 = vpop.f32.mrf.mxu0
        %v2270 = vadd.f32 %v2044, %v2269
        %v2271 = vpop.f32.mrf.mxu0
        %v2272 = vadd.f32 %v2048, %v2271
        %2273 = vmatprep.mubr.bf16.mxu0 %v1994
        %2274 = vmatmul.mubr.bf16.gmra.mxu0 %v1993
        %v2275 = vpop.f32.mrf.mxu0
        %v2276 = vadd.f32 %v2044, %v2275
        %v2277 = vpop.f32.mrf.mxu0
        %v2278 = vadd.f32 %v2048, %v2277
        %v2279 = vpop.f32.mrf.mxu0
        %v2280 = vadd.f32 %v2044, %v2279
        %v2281 = vpop.f32.mrf.mxu0
        %v2282 = vadd.f32 %v2048, %v2281
        %2283 = vmatprep.mubr.bf16.mxu0 %v1996
        %2284 = vmatmul.mubr.bf16.gmra.mxu0 %v1995
        %v2285 = vpop.f32.mrf.mxu0
        %v2286 = vadd.f32 %v2044, %v2285
        %v2287 = vpop.f32.mrf.mxu0
        %v2288 = vadd.f32 %v2048, %v2287
        %v2289 = vpop.f32.mrf.mxu0
        %v2290 = vadd.f32 %v2044, %v2289
        %v2291 = vpop.f32.mrf.mxu0
        %v2292 = vadd.f32 %v2048, %v2291
        %2293 = vmatprep.mubr.bf16.mxu0 %v1998
        %2294 = vmatmul.mubr.bf16.gmra.mxu0 %v1997
        %v2295 = vpop.f32.mrf.mxu0
        %v2296 = vadd.f32 %v2044, %v2295
        %v2297 = vpop.f32.mrf.mxu0
        %v2298 = vadd.f32 %v2048, %v2297
        %v2299 = vpop.f32.mrf.mxu0
        %v2300 = vadd.f32 %v2044, %v2299
        %v2301 = vpop.f32.mrf.mxu0
        %v2302 = vadd.f32 %v2048, %v2301
        %2303 = vmatprep.mubr.bf16.mxu0 %v2000
        %2304 = vmatmul.mubr.bf16.gmra.mxu0 %v1999
        %v2305 = vpop.f32.mrf.mxu0
        %v2306 = vadd.f32 %v2044, %v2305
        %v2307 = vpop.f32.mrf.mxu0
        %v2308 = vadd.f32 %v2048, %v2307
        %v2309 = vpop.f32.mrf.mxu0
        %v2310 = vadd.f32 %v2044, %v2309
        %v2311 = vpop.f32.mrf.mxu0
        %v2312 = vadd.f32 %v2048, %v2311
        %2313 = vmatprep.mubr.bf16.mxu0 %v2002
        %2314 = vmatmul.mubr.bf16.gmra.mxu0 %v2001
        %v2315 = vpop.f32.mrf.mxu0
        %v2316 = vadd.f32 %v2044, %v2315
        %v2317 = vpop.f32.mrf.mxu0
        %v2318 = vadd.f32 %v2048, %v2317
        %v2319 = vpop.f32.mrf.mxu0
        %v2320 = vadd.f32 %v2044, %v2319
        %v2321 = vpop.f32.mrf.mxu0
        %v2322 = vadd.f32 %v2048, %v2321
        %2323 = vmatprep.mubr.bf16.mxu0 %v2004
        %2324 = vmatmul.mubr.bf16.gmra.mxu0 %v2003
        %v2325 = vpop.f32.mrf.mxu0
        %v2326 = vadd.f32 %v2044, %v2325
        %v2327 = vpop.f32.mrf.mxu0
        %v2328 = vadd.f32 %v2048, %v2327
        %v2329 = vpop.f32.mrf.mxu0
        %v2330 = vadd.f32 %v2044, %v2329
        %v2331 = vpop.f32.mrf.mxu0
        %v2332 = vadd.f32 %v2048, %v2331
        %2333 = vmatprep.mubr.bf16.mxu0 %v2006
        %2334 = vmatmul.mubr.bf16.gmra.mxu0 %v2005
        %v2335 = vpop.f32.mrf.mxu0
        %v2336 = vadd.f32 %v2044, %v2335
        %v2337 = vpop.f32.mrf.mxu0
        %v2338 = vadd.f32 %v2048, %v2337
        %v2339 = vpop.f32.mrf.mxu0
        %v2340 = vadd.f32 %v2044, %v2339
        %v2341 = vpop.f32.mrf.mxu0
        %v2342 = vadd.f32 %v2048, %v2341
        %2343 = vdwg.mxu0
        %v2344 = vmax.f32 %v2246, 0.0
        %v2345 = vmax.f32 %v2248, 0.0
        %v2346 = vmax.f32 %v2250, 0.0
        %v2347 = vmax.f32 %v2252, 0.0
        %v2348 = vmax.f32 %v2256, 0.0
        %v2349 = vmax.f32 %v2258, 0.0
        %v2350 = vmax.f32 %v2260, 0.0
        %v2351 = vmax.f32 %v2262, 0.0
        %v2352 = vmax.f32 %v2266, 0.0
        %v2353 = vmax.f32 %v2268, 0.0
        %v2354 = vmax.f32 %v2270, 0.0
        %v2355 = vmax.f32 %v2272, 0.0
        %v2356 = vmax.f32 %v2276, 0.0
        %v2357 = vmax.f32 %v2278, 0.0
        %v2358 = vmax.f32 %v2280, 0.0
        %v2359 = vmax.f32 %v2282, 0.0
        %v2360 = vmax.f32 %v2286, 0.0
        %v2361 = vmax.f32 %v2288, 0.0
        %v2362 = vmax.f32 %v2290, 0.0
        %v2363 = vmax.f32 %v2292, 0.0
        %v2364 = vmax.f32 %v2296, 0.0
        %v2365 = vmax.f32 %v2298, 0.0
        %v2366 = vmax.f32 %v2300, 0.0
        %v2367 = vmax.f32 %v2302, 0.0
        %v2368 = vmax.f32 %v2306, 0.0
        %v2369 = vmax.f32 %v2308, 0.0
        %v2370 = vmax.f32 %v2310, 0.0
        %v2371 = vmax.f32 %v2312, 0.0
        %v2372 = vmax.f32 %v2316, 0.0
        %v2373 = vmax.f32 %v2318, 0.0
        %v2374 = vmax.f32 %v2320, 0.0
        %v2375 = vmax.f32 %v2322, 0.0
        %v2376 = vmax.f32 %v2326, 0.0
        %v2377 = vmax.f32 %v2328, 0.0
        %v2378 = vmax.f32 %v2330, 0.0
        %v2379 = vmax.f32 %v2332, 0.0
        %v2380 = vmax.f32 %v2336, 0.0
        %v2381 = vmax.f32 %v2338, 0.0
        %v2382 = vmax.f32 %v2340, 0.0
        %v2383 = vmax.f32 %v2342, 0.0
        %v2384 = vpack.c.bf16 %v2346, %v2344
        %v2385 = vpack.c.bf16 %v2347, %v2345
        %v2386 = vpack.c.bf16 %v2350, %v2348
        %v2387 = vpack.c.bf16 %v2351, %v2349
        %v2388 = vpack.c.bf16 %v2354, %v2352
        %v2389 = vpack.c.bf16 %v2355, %v2353
        %v2390 = vpack.c.bf16 %v2358, %v2356
        %v2391 = vpack.c.bf16 %v2359, %v2357
        %v2392 = vpack.c.bf16 %v2362, %v2360
        %v2393 = vpack.c.bf16 %v2363, %v2361
        %v2394 = vpack.c.bf16 %v2366, %v2364
        %v2395 = vpack.c.bf16 %v2367, %v2365
        %v2396 = vpack.c.bf16 %v2370, %v2368
        %v2397 = vpack.c.bf16 %v2371, %v2369
        %v2398 = vpack.c.bf16 %v2374, %v2372
        %v2399 = vpack.c.bf16 %v2375, %v2373
        %v2400 = vpack.c.bf16 %v2378, %v2376
        %v2401 = vpack.c.bf16 %v2379, %v2377
        %v2402 = vpack.c.bf16 %v2382, %v2380
        %v2403 = vpack.c.bf16 %v2383, %v2381
        %v2404 = vld [vmem:[%s11] sm:$0xf]
        %v2405 = vld [vmem:[%s11 + $0x4] sm:$0xf]
        %v2406 = vld [vmem:[%s11 + $0x8] sm:$0xf]
        %v2407 = vld [vmem:[%s11 + $0xc] sm:$0xf]
        %v2408 = vld [vmem:[%s11 + $0x10] sm:$0xf]
        %v2409 = vld [vmem:[%s11 + $0x14] sm:$0xf]
        %v2410 = vld [vmem:[%s11 + $0x18] sm:$0xf]
        %v2411 = vld [vmem:[%s11 + $0x1c] sm:$0xf]
        %v2412 = vld [vmem:[%s11 + $0x20] sm:$0xf]
        %v2413 = vld [vmem:[%s11 + $0x24] sm:$0xf]
        %v2414 = vld [vmem:[%s11 + $0x28] sm:$0xf]
        %v2415 = vld [vmem:[%s11 + $0x2c] sm:$0xf]
        %v2416 = vld [vmem:[%s11 + $0x30] sm:$0xf]
        %v2417 = vld [vmem:[%s11 + $0x34] sm:$0xf]
        %v2418 = vld [vmem:[%s11 + $0x38] sm:$0xf]
        %v2419 = vld [vmem:[%s11 + $0x3c] sm:$0xf]
        %v2420 = vld [vmem:[%s11 + $0x40] sm:$0xf]
        %v2421 = vld [vmem:[%s11 + $0x44] sm:$0xf]
        %v2422 = vld [vmem:[%s11 + $0x48] sm:$0xf]
        %v2423 = vld [vmem:[%s11 + $0x4c] sm:$0xf]
        %v2424 = vld [vmem:[%s11 + $0x50] sm:$0xf]
        %v2425 = vld [vmem:[%s11 + $0x54] sm:$0xf]
        %v2426 = vld [vmem:[%s11 + $0x58] sm:$0xf]
        %v2427 = vld [vmem:[%s11 + $0x5c] sm:$0xf]
        %v2428 = vld [vmem:[%s11 + $0x60] sm:$0xf]
        %v2429 = vld [vmem:[%s11 + $0x64] sm:$0xf]
        %v2430 = vld [vmem:[%s11 + $0x68] sm:$0xf]
        %v2431 = vld [vmem:[%s11 + $0x6c] sm:$0xf]
        %v2432 = vld [vmem:[%s11 + $0x70] sm:$0xf]
        %v2433 = vld [vmem:[%s11 + $0x74] sm:$0xf]
        %v2434 = vld [vmem:[%s11 + $0x78] sm:$0xf]
        %v2435 = vld [vmem:[%s11 + $0x7c] sm:$0xf]
        %v2436 = vld [vmem:[%s12] sm:$0x1]
        %v2438 = vlaneseq
        %v2439 = vshrl.u32 %v2438, 7
        %v2440 = vsub.s32 0, %v2439
        %v2441 = vrot.slane %v2436, %v2440
        %v2475 = vunpack.c.l.b16 %v2404
        %v2476 = vunpack.c.l.b16 %v2405
        %v2477 = vunpack.c.l.b16 %v2406
        %v2478 = vunpack.c.l.b16 %v2407
        %v2479 = vunpack.c.l.b16 %v2408
        %v2480 = vunpack.c.l.b16 %v2409
        %v2481 = vunpack.c.l.b16 %v2410
        %v2482 = vunpack.c.l.b16 %v2411
        %v2483 = vunpack.c.l.b16 %v2412
        %v2484 = vunpack.c.l.b16 %v2413
        %v2485 = vunpack.c.l.b16 %v2414
        %v2486 = vunpack.c.l.b16 %v2415
        %v2487 = vunpack.c.l.b16 %v2416
        %v2488 = vunpack.c.l.b16 %v2417
        %v2489 = vunpack.c.l.b16 %v2418
        %v2490 = vunpack.c.l.b16 %v2419
        %v2491 = vunpack.c.l.b16 %v2420
        %v2492 = vunpack.c.l.b16 %v2421
        %v2493 = vunpack.c.l.b16 %v2422
        %v2494 = vunpack.c.l.b16 %v2423
        %v2495 = vunpack.c.l.b16 %v2424
        %v2496 = vunpack.c.l.b16 %v2425
        %v2497 = vunpack.c.l.b16 %v2426
        %v2498 = vunpack.c.l.b16 %v2427
        %v2499 = vunpack.c.l.b16 %v2428
        %v2500 = vunpack.c.l.b16 %v2429
        %v2501 = vunpack.c.l.b16 %v2430
        %v2502 = vunpack.c.l.b16 %v2431
        %v2503 = vunpack.c.l.b16 %v2432
        %v2504 = vunpack.c.l.b16 %v2433
        %v2505 = vunpack.c.l.b16 %v2434
        %v2506 = vunpack.c.l.b16 %v2435
        %v2507 = vpack.c.b16 %v2476, %v2475
        %v2508 = vpack.c.b16 %v2478, %v2477
        %v2509 = vpack.c.b16 %v2480, %v2479
        %v2510 = vpack.c.b16 %v2482, %v2481
        %v2511 = vpack.c.b16 %v2484, %v2483
        %v2512 = vpack.c.b16 %v2486, %v2485
        %v2513 = vpack.c.b16 %v2488, %v2487
        %v2514 = vpack.c.b16 %v2490, %v2489
        %v2515 = vpack.c.b16 %v2492, %v2491
        %v2516 = vpack.c.b16 %v2494, %v2493
        %v2517 = vpack.c.b16 %v2496, %v2495
        %v2518 = vpack.c.b16 %v2498, %v2497
        %v2519 = vpack.c.b16 %v2500, %v2499
        %v2520 = vpack.c.b16 %v2502, %v2501
        %v2521 = vpack.c.b16 %v2504, %v2503
        %v2522 = vpack.c.b16 %v2506, %v2505
        %2539 = vmatprep.subr.bf16.mxu0 0
        %2540 = vmatpush1.bf16.msra.mxu0 %v2514
        %2541 = vmatprep.subr.bf16.mxu0 0
        %2542 = vmatpush1.bf16.msra.mxu0 %v2513
        %2543 = vmatprep.subr.bf16.mxu0 0
        %2544 = vmatpush1.bf16.msra.mxu0 %v2512
        %2545 = vmatprep.subr.bf16.mxu0 0
        %2546 = vmatpush1.bf16.msra.mxu0 %v2511
        %2547 = vmatprep.subr.bf16.mxu0 0
        %2548 = vmatpush1.bf16.msra.mxu0 %v2510
        %2549 = vmatprep.subr.bf16.mxu0 0
        %2550 = vmatpush1.bf16.msra.mxu0 %v2509
        %2551 = vmatprep.subr.bf16.mxu0 0
        %2552 = vmatpush1.bf16.msra.mxu0 %v2508
        %2553 = vmatprep.subr.bf16.mxu0 0
        %2554 = vmatpush1.bf16.msra.mxu0 %v2507
        %2555 = vmatprep.subr.bf16.mxu0 0
        %2556 = vmatpush2.bf16.msra.mxu0 %v2522
        %2557 = vmatprep.subr.bf16.mxu0 0
        %2558 = vmatpush2.bf16.msra.mxu0 %v2521
        %2559 = vmatprep.subr.bf16.mxu0 0
        %2560 = vmatpush2.bf16.msra.mxu0 %v2520
        %2561 = vmatprep.subr.bf16.mxu0 0
        %2562 = vmatpush2.bf16.msra.mxu0 %v2519
        %2563 = vmatprep.subr.bf16.mxu0 0
        %2564 = vmatpush2.bf16.msra.mxu0 %v2518
        %2565 = vmatprep.subr.bf16.mxu0 0
        %2566 = vmatpush2.bf16.msra.mxu0 %v2517
        %2567 = vmatprep.subr.bf16.mxu0 0
        %2568 = vmatpush2.bf16.msra.mxu0 %v2516
        %2569 = vmatprep.subr.bf16.mxu0 0
        %2570 = vmatpush2.bf16.msra.mxu0 %v2515
        %2571 = vmatprep.mubr.bf16.mxu0 %v2385
        %2572 = vmatmul.mubr.bf16.gmra.mxu0 %v2384
        %v2573 = vpop.f32.mrf.mxu0
        %v2574 = vadd.f32 %v2441, %v2573
        %v2575 = vpop.f32.mrf.mxu0
        %v2576 = vpop.f32.mrf.mxu0
        %v2577 = vadd.f32 %v2441, %v2576
        %v2578 = vpop.f32.mrf.mxu0
        %2579 = vmatprep.mubr.bf16.mxu0 %v2387
        %2580 = vmatmul.mubr.bf16.gmra.mxu0 %v2386
        %v2581 = vpop.f32.mrf.mxu0
        %v2582 = vadd.f32 %v2441, %v2581
        %v2583 = vpop.f32.mrf.mxu0
        %v2584 = vpop.f32.mrf.mxu0
        %v2585 = vadd.f32 %v2441, %v2584
        %v2586 = vpop.f32.mrf.mxu0
        %2587 = vmatprep.mubr.bf16.mxu0 %v2389
        %2588 = vmatmul.mubr.bf16.gmra.mxu0 %v2388
        %v2589 = vpop.f32.mrf.mxu0
        %v2590 = vadd.f32 %v2441, %v2589
        %v2591 = vpop.f32.mrf.mxu0
        %v2592 = vpop.f32.mrf.mxu0
        %v2593 = vadd.f32 %v2441, %v2592
        %v2594 = vpop.f32.mrf.mxu0
        %2595 = vmatprep.mubr.bf16.mxu0 %v2391
        %2596 = vmatmul.mubr.bf16.gmra.mxu0 %v2390
        %v2597 = vpop.f32.mrf.mxu0
        %v2598 = vadd.f32 %v2441, %v2597
        %v2599 = vpop.f32.mrf.mxu0
        %v2600 = vpop.f32.mrf.mxu0
        %v2601 = vadd.f32 %v2441, %v2600
        %v2602 = vpop.f32.mrf.mxu0
        %2603 = vmatprep.mubr.bf16.mxu0 %v2393
        %2604 = vmatmul.mubr.bf16.gmra.mxu0 %v2392
        %v2605 = vpop.f32.mrf.mxu0
        %v2606 = vadd.f32 %v2441, %v2605
        %v2607 = vpop.f32.mrf.mxu0
        %v2608 = vpop.f32.mrf.mxu0
        %v2609 = vadd.f32 %v2441, %v2608
        %v2610 = vpop.f32.mrf.mxu0
        %2611 = vmatprep.mubr.bf16.mxu0 %v2395
        %2612 = vmatmul.mubr.bf16.gmra.mxu0 %v2394
        %v2613 = vpop.f32.mrf.mxu0
        %v2614 = vadd.f32 %v2441, %v2613
        %v2615 = vpop.f32.mrf.mxu0
        %v2616 = vpop.f32.mrf.mxu0
        %v2617 = vadd.f32 %v2441, %v2616
        %v2618 = vpop.f32.mrf.mxu0
        %2619 = vmatprep.mubr.bf16.mxu0 %v2397
        %2620 = vmatmul.mubr.bf16.gmra.mxu0 %v2396
        %v2621 = vpop.f32.mrf.mxu0
        %v2622 = vadd.f32 %v2441, %v2621
        %v2623 = vpop.f32.mrf.mxu0
        %v2624 = vpop.f32.mrf.mxu0
        %v2625 = vadd.f32 %v2441, %v2624
        %v2626 = vpop.f32.mrf.mxu0
        %2627 = vmatprep.mubr.bf16.mxu0 %v2399
        %2628 = vmatmul.mubr.bf16.gmra.mxu0 %v2398
        %v2629 = vpop.f32.mrf.mxu0
        %v2630 = vadd.f32 %v2441, %v2629
        %v2631 = vpop.f32.mrf.mxu0
        %v2632 = vpop.f32.mrf.mxu0
        %v2633 = vadd.f32 %v2441, %v2632
        %v2634 = vpop.f32.mrf.mxu0
        %2635 = vmatprep.mubr.bf16.mxu0 %v2401
        %2636 = vmatmul.mubr.bf16.gmra.mxu0 %v2400
        %v2637 = vpop.f32.mrf.mxu0
        %v2638 = vadd.f32 %v2441, %v2637
        %v2639 = vpop.f32.mrf.mxu0
        %v2640 = vpop.f32.mrf.mxu0
        %v2641 = vadd.f32 %v2441, %v2640
        %v2642 = vpop.f32.mrf.mxu0
        %2643 = vmatprep.mubr.bf16.mxu0 %v2403
        %2644 = vmatmul.mubr.bf16.gmra.mxu0 %v2402
        %v2645 = vpop.f32.mrf.mxu0
        %v2646 = vadd.f32 %v2441, %v2645
        %v2647 = vpop.f32.mrf.mxu0
        %v2648 = vpop.f32.mrf.mxu0
        %v2649 = vadd.f32 %v2441, %v2648
        %v2650 = vpop.f32.mrf.mxu0
        %2651 = vdwg.mxu0
        %2652 = vst [vmem:[%s505] sm:$0xff] %v2574
        %2653 = vst [vmem:[%s505 + $0x8] sm:$0xff] %v2577
        %2654 = vst [vmem:[%s505 + $0x10] sm:$0xff] %v2582
        %2655 = vst [vmem:[%s505 + $0x18] sm:$0xff] %v2585
        %2656 = vst [vmem:[%s505 + $0x20] sm:$0xff] %v2590
        %2657 = vst [vmem:[%s505 + $0x28] sm:$0xff] %v2593
        %2658 = vst [vmem:[%s505 + $0x30] sm:$0xff] %v2598
        %2659 = vst [vmem:[%s505 + $0x38] sm:$0xff] %v2601
        %2660 = vst [vmem:[%s505 + $0x40] sm:$0xff] %v2606
        %2661 = vst [vmem:[%s505 + $0x48] sm:$0xff] %v2609
        %2662 = vst [vmem:[%s505 + $0x50] sm:$0xff] %v2614
        %2663 = vst [vmem:[%s505 + $0x58] sm:$0xff] %v2617
        %2664 = vst [vmem:[%s505 + $0x60] sm:$0xff] %v2622
        %2665 = vst [vmem:[%s505 + $0x68] sm:$0xff] %v2625
        %2666 = vst [vmem:[%s505 + $0x70] sm:$0xff] %v2630
        %2667 = vst [vmem:[%s505 + $0x78] sm:$0xff] %v2633
        %2668 = vst [vmem:[%s505 + $0x80] sm:$0xff] %v2638
        %2669 = vst [vmem:[%s505 + $0x88] sm:$0xff] %v2641
        %2670 = vst [vmem:[%s505 + $0x90] sm:$0xff] %v2646
        %2671 = vst [vmem:[%s505 + $0x98] sm:$0xff] %v2649
        %s2672 = sand.u32 %s316, 1
        %s2673 = scalar_lea.sflag [#allocation4], %s2672
        %s2674 = sand.u32 %s316, 1
        %s2675 = smul.addr %s2674, 160
        %s2676 = scalar_lea.vmem [#allocation10], %s2675
        // Predicated region
        $region89: #{tpu_custom_call.1} parent=71 // pred_check
          %p2677 = pneg %p326
        $region90: #{tpu_custom_call.1} parent=71 // pred_check_branch
          %2679 = sbr.rel (%p2677) target = $region92
        $region91: #{tpu_custom_call.1} parent=71 // pred_region
          %s2680 = smul.u32 20, %s30
          %s2681 = ssub.s32 38, %s2680
          %p2682 = scmp.lt.s32.totalorder %s2681, 20
          %s2683 = scalar_select %p2682, %s2681, 20
          %s2684 = smul.u32 128, %s2683
          %s2686 = ssub.s32 2560, %s2684
          %2687 = vsyncadd %s2673, %s2686
          %p2688 = scmp.ne.s32.totalorder 0, %s2684
          %s2689 = smul.addr %s2680, 128
          %s2690 = scalar_lea.hbm %s13, %s2689
          %s2691 = smul.u32 8, %s2683
          %s2692 = sshll.u32 %s2676, 4
          %s2693 = int_to_ptr.vmem [resolvable:$true] %s2692
          %s2694 = sshll.u32 %s2691, 4
          %2698 = dma.vmem_to_hbm [thread:$0]  (%p2688), %s2693, %s2694, %s2690, %s2673, 128, 128, 8
        $region92: #{tpu_custom_call.1} parent=71 // pred_fallthru
          _
      $region72: #{tpu_custom_call.1} parent=5 // pred_fallthru
        _
      %p2699 = scmp.le.s32.totalorder 2, %s25
      // Predicated region
      $region93: #{tpu_custom_call.1} parent=5 // pred_check
        %p2700 = pneg %p2699
      $region94: #{tpu_custom_call.1} parent=5 // pred_check_branch
        %2702 = sbr.rel (%p2700) target = $region96
      $region95: #{tpu_custom_call.1} parent=5 // pred_region
        %s2703 = ssub.s32 %s25, 2
        // Predicated region
        $region97: #{tpu_custom_call.1} parent=95 // pred_check
          %p2704 = pneg %p332
        $region98: #{tpu_custom_call.1} parent=95 // pred_check_branch
          %2706 = sbr.rel (%p2704) target = $region100
        $region99: #{tpu_custom_call.1} parent=95 // pred_region
          %s2707 = sand.u32 %s317, 1
          %s2708 = scalar_lea.sflag [#allocation4], %s2707
          %s2709 = sand.u32 %s317, 1
          %s2710 = smul.addr %s2709, 160
          %s2711 = scalar_lea.vmem [#allocation10], %s2710
          %2712 = dma.done %s2708, 2560
        $region100: #{tpu_custom_call.1} parent=95 // pred_fallthru
          _
      $region96: #{tpu_custom_call.1} parent=5 // pred_fallthru
        _
    $region6: #{tpu_custom_call.1} parent=1 // loop_footer
      %s29 = sadd.s32 1, %s25
    $region7: #{tpu_custom_call.1} parent=1 // loop_footer_branch
      %24 = sbr.rel target = $region3
    $region8: #{tpu_custom_call.1} parent=1 // loop_exit
      _
    %2713 = vsyncpa [#allocation3], 1
    %s2714 = scalar_lea.sflag [#allocation3], 1
    %2715 = vsyncpa %s2714, 1
    %2716 = vsyncpa [#allocation6], 1
    %2717 = vsyncpa [#allocation9], 1
    %2718 = vsyncpa [#allocation4], 1
    %s2719 = scalar_lea.sflag [#allocation4], 1
    %2720 = vsyncpa %s2719, 1

</llo_original>
